<compile_context>
chip_gen: v7x
topology: tpu7x:2x2x1
jax: 0.10.0
libtpu: 0.0.40
codegen_flags: <defaults>
</compile_context>

<pallas_src>
import functools

import jax
import jax.numpy as jnp
from jax.experimental import pallas as pl
from jax.experimental.pallas import tpu as pltpu

RESOLUTION = 30
DT = 0.001


# ----------------------------------------------------------------------------
# Pallas kernels
# ----------------------------------------------------------------------------
def _dend_matmul_kernel(x_ref, w_ref, b_ref, o_ref, *, scale, apply_relu):
    """One row-tile of out = dend(x @ w + b); dendritic dynamics = scale mul."""
    z = jnp.dot(x_ref[...], w_ref[...], preferred_element_type=jnp.float32)
    v = (z + b_ref[...]) * scale
    if apply_relu:
        v = jnp.maximum(v, 0.0)
    o_ref[...] = v


def _dend_mlp_kernel(x_ref, w1_ref, b1_ref, w2_ref, b2_ref, w3_ref, b3_ref,
                     o_ref, *, scale):
    """Fused fc1 -> relu -> fc2 -> relu -> fc3 for one row-tile of the batch."""
    h = jnp.dot(x_ref[...], w1_ref[...], preferred_element_type=jnp.float32)
    h = jnp.maximum((h + b1_ref[...]) * scale, 0.0)
    h = jnp.dot(h, w2_ref[...], preferred_element_type=jnp.float32)
    h = jnp.maximum((h + b2_ref[...]) * scale, 0.0)
    h = jnp.dot(h, w3_ref[...], preferred_element_type=jnp.float32)
    o_ref[...] = (h + b3_ref[...]) * scale


def _max4_kernel(a_ref, b_ref, c_ref, d_ref, o_ref):
    """Elementwise max of the four 2x2-window slabs (lane dim = channels)."""
    o_ref[...] = jnp.maximum(jnp.maximum(a_ref[...], b_ref[...]),
                             jnp.maximum(c_ref[...], d_ref[...]))


# ----------------------------------------------------------------------------
# Pallas wrappers
# ----------------------------------------------------------------------------
def _parallel_params():
    return pltpu.CompilerParams(dimension_semantics=("parallel",))


def dend_matmul(x, w_t, b, *, scale, relu, tm=512):
    """out = dend(x @ w_t + b), optionally ReLU'd.  x:(M,K), w_t:(K,N)."""
    M, K = x.shape
    Kw, Nout = w_t.shape
    assert K == Kw
    tm = min(tm, M)                       # tm == M (full) or a multiple of 8
    grid = (pl.cdiv(M, tm),)
    b2 = b.reshape(1, Nout).astype(jnp.float32)
    kernel = functools.partial(_dend_matmul_kernel, scale=scale, apply_relu=relu)
    return pl.pallas_call(
        kernel,
        out_shape=jax.ShapeDtypeStruct((M, Nout), jnp.float32),
        grid=grid,
        in_specs=[
            pl.BlockSpec((tm, K), lambda i: (i, 0)),     # row tile of patches
            pl.BlockSpec((K, Nout), lambda i: (0, 0)),   # weight (replicated)
            pl.BlockSpec((1, Nout), lambda i: (0, 0)),   # bias (replicated)
        ],
        out_specs=pl.BlockSpec((tm, Nout), lambda i: (i, 0)),
        compiler_params=_parallel_params(),
    )(x.astype(jnp.float32), w_t.astype(jnp.float32), b2)


def fused_dend_mlp(x, w1, b1, w2, b2, w3, b3, *, scale, tm=256):
    """Fused fc1/fc2/fc3 stack.  x:(M,K), w_i already transposed to (in,out)."""
    M, K = x.shape
    tm = min(tm, M)
    grid = (pl.cdiv(M, tm),)
    Nout = w3.shape[1]
    args = (
        x.astype(jnp.float32),
        w1.astype(jnp.float32), b1.reshape(1, -1).astype(jnp.float32),
        w2.astype(jnp.float32), b2.reshape(1, -1).astype(jnp.float32),
        w3.astype(jnp.float32), b3.reshape(1, -1).astype(jnp.float32),
    )
    in_specs = [pl.BlockSpec((tm, K), lambda i: (i, 0))]
    for w, bb in ((w1, b1), (w2, b2), (w3, b3)):
        in_specs.append(pl.BlockSpec(tuple(w.shape), lambda i: (0, 0)))
        in_specs.append(pl.BlockSpec((1, bb.shape[-1]), lambda i: (0, 0)))
    kernel = functools.partial(_dend_mlp_kernel, scale=scale)
    return pl.pallas_call(
        kernel,
        out_shape=jax.ShapeDtypeStruct((M, Nout), jnp.float32),
        grid=grid,
        in_specs=in_specs,
        out_specs=pl.BlockSpec((tm, Nout), lambda i: (i, 0)),
        compiler_params=_parallel_params(),
    )(*args)


def maxpool2x2_nhwc(x, *, tm=1024):
    """MaxPool2d(2,2) on an NHWC tensor, channels kept on the lane axis."""
    N, H, W, C = x.shape
    OH, OW = H // 2, W // 2
    M = N * OH * OW
    # Four strided slabs covering the 2x2 windows (layout glue in XLA).
    a = x[:, 0::2, 0::2, :].reshape(M, C)
    b = x[:, 0::2, 1::2, :].reshape(M, C)
    c = x[:, 1::2, 0::2, :].reshape(M, C)
    d = x[:, 1::2, 1::2, :].reshape(M, C)
    tm = min(tm, M)
    out = pl.pallas_call(
        _max4_kernel,
        out_shape=jax.ShapeDtypeStruct((M, C), x.dtype),
        grid=(pl.cdiv(M, tm),),
        in_specs=[pl.BlockSpec((tm, C), lambda i: (i, 0))] * 4,
        out_specs=pl.BlockSpec((tm, C), lambda i: (i, 0)),
        compiler_params=_parallel_params(),
    )(a, b, c, d)
    return out.reshape(N, OH, OW, C)


# ----------------------------------------------------------------------------
# Layout glue (im2col / weight reordering); compute stays in Pallas.
# ----------------------------------------------------------------------------
def im2col_nhwc(x, k):
    """NHWC -> (N*OH*OW, k*k*C); column order (ki, kj, c)."""
    N, H, W, C = x.shape
    OH, OW = H - k + 1, W - k + 1
    cols = []
    for i in range(k):
        for j in range(k):
            cols.append(x[:, i:i + OH, j:j + OW, :])       # (N, OH, OW, C)
    patches = jnp.concatenate(cols, axis=-1)               # (N, OH, OW, k*k*C)
    return patches.reshape(N * OH * OW, k * k * C), OH, OW


def dend_conv2d_nhwc(x, w, b, *, scale, relu=True, tm=512):
    """DendriticConv2d equivalent.  x: NHWC, w: (out_c, in_c, k, k) torch layout."""
    out_c, in_c, k, _ = w.shape
    N = x.shape[0]
    patches, OH, OW = im2col_nhwc(x, k)
    # Reorder torch weight (oc, c, ki, kj) -> columns (ki, kj, c) to match patches.
    w_t = w.transpose(0, 2, 3, 1).reshape(out_c, k * k * in_c).T   # (K, out_c)
    y = dend_matmul(patches, w_t, b, scale=scale, relu=relu, tm=tm)
    return y.reshape(N, OH, OW, out_c)                     # stay in NHWC


def cifar_dend_conv_forward(params, x_nchw, *, resolution=RESOLUTION, dt=DT):
    # Closed form of the leaky dendritic integrator (compile-time constant).
    scale = float(1.0 - (1.0 - dt) ** resolution)

    x = jnp.transpose(x_nchw, (0, 2, 3, 1)).astype(jnp.float32)   # NCHW -> NHWC

    # x = pool(relu(conv1(x)))     (relu + dendritic scale fused in the kernel)
    x = dend_conv2d_nhwc(x, params["conv1_w"], params["conv1_b"],
                         scale=scale, relu=True)
    x = maxpool2x2_nhwc(x)
    # x = pool(relu(conv2(x)))
    x = dend_conv2d_nhwc(x, params["conv2_w"], params["conv2_b"],
                         scale=scale, relu=True)
    x = maxpool2x2_nhwc(x)

    # torch.flatten(x, 1) is in (C,H,W) order; we are NHWC, so permute fc1's
    # weight columns once instead of transposing the activation tensor.
    N, H, W, C = x.shape
    x = x.reshape(N, H * W * C)
    fc1_wt = (params["fc1_w"].reshape(-1, C, H, W)
              .transpose(0, 2, 3, 1)
              .reshape(-1, H * W * C).T)                   # (H*W*C, 120)

    # Fused fc1 -> relu -> fc2 -> relu -> fc3 in one pallas_call.
    return fused_dend_mlp(
        x,
        fc1_wt, params["fc1_b"],
        params["fc2_w"].T, params["fc2_b"],
        params["fc3_w"].T, params["fc3_b"],
        scale=scale,
    )


# ----------------------------------------------------------------------------
# Deterministic parameter init (shapes from CifarDendConv.__init__)
# ----------------------------------------------------------------------------
def init_params(key):
    ks = jax.random.split(key, 10)

    def u(k, shape, fan_in):
        bound = 1.0 / jnp.sqrt(float(fan_in))
        return jax.random.uniform(k, shape, jnp.float32, -bound, bound)

    return {
        "conv1_w": u(ks[0], (6, 3, 5, 5), 3 * 25),
        "conv1_b": u(ks[1], (6,), 3 * 25),
        "conv2_w": u(ks[2], (16, 6, 5, 5), 6 * 25),
        "conv2_b": u(ks[3], (16,), 6 * 25),
        "fc1_w": u(ks[4], (120, 16 * 5 * 5), 16 * 5 * 5),
        "fc1_b": u(ks[5], (120,), 16 * 5 * 5),
        "fc2_w": u(ks[6], (84, 120), 120),
        "fc2_b": u(ks[7], (84,), 120),
        "fc3_w": u(ks[8], (10, 84), 84),
        "fc3_b": u(ks[9], (10,), 84),
    }


if __name__ == "__main__":
    key = jax.random.PRNGKey(0)
    pkey, xkey = jax.random.split(key)
    params = init_params(pkey)
    # CIFAR-shaped input required by fc1 (16*5*5 after two conv+pool stages).
    x = jax.random.normal(xkey, (2, 3, 32, 32), jnp.float32)
    fwd = jax.jit(cifar_dend_conv_forward)
    out = jax.block_until_ready(fwd(params, x))
    assert out.shape == (2, 10), out.shape
    assert bool(jnp.all(jnp.isfinite(out)))
    print("KERNEL_OK")
</pallas_src>

<mosaic_0001>
module attributes {stable_mosaic.version = 11 : i64} {
  func.func @_dend_matmul_kernel(%arg0: i32, %arg1: memref<512x75xf32, #tpu.memory_space<vmem>>, %arg2: memref<75x6xf32, #tpu.memory_space<vmem>>, %arg3: memref<1x6xf32, #tpu.memory_space<vmem>>, %arg4: memref<512x6xf32, #tpu.memory_space<vmem>>) attributes {dimension_semantics = [#tpu.dimension_semantics<parallel>], iteration_bounds = array<i64: 4>, scalar_prefetch = 0 : i64, scratch_operands = 0 : i64, tpu.core_type = #tpu.core_type<tc>, window_params = [{transform_indices = @transform_0, window_bounds = array<i64: 512, 75>}, {pipeline_mode = #tpu.pipeline_mode<synchronous>, transform_indices = @transform_1, window_bounds = array<i64: 75, 6>}, {pipeline_mode = #tpu.pipeline_mode<synchronous>, transform_indices = @transform_2, window_bounds = array<i64: 1, 6>}, {transform_indices = @transform_3, window_bounds = array<i64: 512, 6>}]} {
    %c0 = arith.constant 0 : index
    %c0_0 = arith.constant 0 : index
    %0 = vector.load %arg1[%c0, %c0_0] : memref<512x75xf32, #tpu.memory_space<vmem>>, vector<512x75xf32>
    %c0_1 = arith.constant 0 : index
    %c0_2 = arith.constant 0 : index
    %1 = vector.load %arg2[%c0_1, %c0_2] : memref<75x6xf32, #tpu.memory_space<vmem>>, vector<75x6xf32>
    %cst = arith.constant dense<0.000000e+00> : vector<512x6xf32>
    %2 = tpu.matmul %0, %1, %cst {dimension_numbers = #tpu.dot_dimension_numbers<[1], [0], [0], [1], [0, 0, 1, 1], [], []>} : vector<512x75xf32>, vector<75x6xf32>, vector<512x6xf32> -> vector<512x6xf32>
    %c0_3 = arith.constant 0 : index
    %c0_4 = arith.constant 0 : index
    %3 = vector.load %arg3[%c0_3, %c0_4] : memref<1x6xf32, #tpu.memory_space<vmem>>, vector<1x6xf32>
    %4 = vector.broadcast %3 : vector<1x6xf32> to vector<512x6xf32>
    %5 = arith.addf %2, %4 : vector<512x6xf32>
    %cst_5 = arith.constant 0.0295690335 : f32
    %6 = vector.broadcast %cst_5 : f32 to vector<512x6xf32>
    %7 = arith.mulf %5, %6 : vector<512x6xf32>
    %cst_6 = arith.constant 0.000000e+00 : f32
    %8 = vector.broadcast %cst_6 : f32 to vector<512x6xf32>
    %9 = arith.maximumf %7, %8 : vector<512x6xf32>
    %c0_7 = arith.constant 0 : index
    %c0_8 = arith.constant 0 : index
    %10 = vector.load %arg4[%c0_7, %c0_8] : memref<512x6xf32, #tpu.memory_space<vmem>>, vector<512x6xf32>
    tpu.vector_store %arg4[%c0_7, %c0_8], %9 {strides = array<i32>} : memref<512x6xf32, #tpu.memory_space<vmem>>, vector<512x6xf32>,
    return
  }
  func.func @transform_0(%arg0: i32) -> (i32, i32) {
    %c0_i32 = arith.constant 0 : i32
    %c0_i32_0 = arith.constant 0 : i32
    return %arg0, %c0_i32 : i32, i32
  }
  func.func @transform_1(%arg0: i32) -> (i32, i32) {
    %c0_i32 = arith.constant 0 : i32
    %c0_i32_0 = arith.constant 0 : i32
    %c0_i32_1 = arith.constant 0 : i32
    return %c0_i32, %c0_i32_0 : i32, i32
  }
  func.func @transform_2(%arg0: i32) -> (i32, i32) {
    %c0_i32 = arith.constant 0 : i32
    %c0_i32_0 = arith.constant 0 : i32
    %c0_i32_1 = arith.constant 0 : i32
    return %c0_i32, %c0_i32_0 : i32, i32
  }
  func.func @transform_3(%arg0: i32) -> (i32, i32) {
    %c0_i32 = arith.constant 0 : i32
    %c0_i32_0 = arith.constant 0 : i32
    return %arg0, %c0_i32 : i32, i32
  }
}

module attributes {stable_mosaic.version = 11 : i64} {
  func.func @_max4_kernel(%arg0: i32, %arg1: memref<392x6xf32, #tpu.memory_space<vmem>>, %arg2: memref<392x6xf32, #tpu.memory_space<vmem>>, %arg3: memref<392x6xf32, #tpu.memory_space<vmem>>, %arg4: memref<392x6xf32, #tpu.memory_space<vmem>>, %arg5: memref<392x6xf32, #tpu.memory_space<vmem>>) attributes {dimension_semantics = [#tpu.dimension_semantics<parallel>], iteration_bounds = array<i64: 1>, scalar_prefetch = 0 : i64, scratch_operands = 0 : i64, tpu.core_type = #tpu.core_type<tc>, window_params = [{transform_indices = @transform_0, window_bounds = array<i64: 392, 6>}, {transform_indices = @transform_1, window_bounds = array<i64: 392, 6>}, {transform_indices = @transform_2, window_bounds = array<i64: 392, 6>}, {transform_indices = @transform_3, window_bounds = array<i64: 392, 6>}, {transform_indices = @transform_4, window_bounds = array<i64: 392, 6>}]} {
    %c0 = arith.constant 0 : index
    %c0_0 = arith.constant 0 : index
    %0 = vector.load %arg1[%c0, %c0_0] : memref<392x6xf32, #tpu.memory_space<vmem>>, vector<392x6xf32>
    %c0_1 = arith.constant 0 : index
    %c0_2 = arith.constant 0 : index
    %1 = vector.load %arg2[%c0_1, %c0_2] : memref<392x6xf32, #tpu.memory_space<vmem>>, vector<392x6xf32>
    %2 = arith.maximumf %0, %1 : vector<392x6xf32>
    %c0_3 = arith.constant 0 : index
    %c0_4 = arith.constant 0 : index
    %3 = vector.load %arg3[%c0_3, %c0_4] : memref<392x6xf32, #tpu.memory_space<vmem>>, vector<392x6xf32>
    %c0_5 = arith.constant 0 : index
    %c0_6 = arith.constant 0 : index
    %4 = vector.load %arg4[%c0_5, %c0_6] : memref<392x6xf32, #tpu.memory_space<vmem>>, vector<392x6xf32>
    %5 = arith.maximumf %3, %4 : vector<392x6xf32>
    %6 = arith.maximumf %2, %5 : vector<392x6xf32>
    %c0_7 = arith.constant 0 : index
    %c0_8 = arith.constant 0 : index
    %7 = vector.load %arg5[%c0_7, %c0_8] : memref<392x6xf32, #tpu.memory_space<vmem>>, vector<392x6xf32>
    tpu.vector_store %arg5[%c0_7, %c0_8], %6 {strides = array<i32>} : memref<392x6xf32, #tpu.memory_space<vmem>>, vector<392x6xf32>,
    return
  }
  func.func @transform_0(%arg0: i32) -> (i32, i32) {
    %c0_i32 = arith.constant 0 : i32
    %c0_i32_0 = arith.constant 0 : i32
    return %arg0, %c0_i32 : i32, i32
  }
  func.func @transform_1(%arg0: i32) -> (i32, i32) {
    %c0_i32 = arith.constant 0 : i32
    %c0_i32_0 = arith.constant 0 : i32
    return %arg0, %c0_i32 : i32, i32
  }
  func.func @transform_2(%arg0: i32) -> (i32, i32) {
    %c0_i32 = arith.constant 0 : i32
    %c0_i32_0 = arith.constant 0 : i32
    return %arg0, %c0_i32 : i32, i32
  }
  func.func @transform_3(%arg0: i32) -> (i32, i32) {
    %c0_i32 = arith.constant 0 : i32
    %c0_i32_0 = arith.constant 0 : i32
    return %arg0, %c0_i32 : i32, i32
  }
  func.func @transform_4(%arg0: i32) -> (i32, i32) {
    %c0_i32 = arith.constant 0 : i32
    %c0_i32_0 = arith.constant 0 : i32
    return %arg0, %c0_i32 : i32, i32
  }
}

module attributes {stable_mosaic.version = 11 : i64} {
  func.func @_dend_matmul_kernel(%arg0: i32, %arg1: memref<200x150xf32, #tpu.memory_space<vmem>>, %arg2: memref<150x16xf32, #tpu.memory_space<vmem>>, %arg3: memref<1x16xf32, #tpu.memory_space<vmem>>, %arg4: memref<200x16xf32, #tpu.memory_space<vmem>>) attributes {dimension_semantics = [#tpu.dimension_semantics<parallel>], iteration_bounds = array<i64: 1>, scalar_prefetch = 0 : i64, scratch_operands = 0 : i64, tpu.core_type = #tpu.core_type<tc>, window_params = [{transform_indices = @transform_0, window_bounds = array<i64: 200, 150>}, {pipeline_mode = #tpu.pipeline_mode<synchronous>, transform_indices = @transform_1, window_bounds = array<i64: 150, 16>}, {pipeline_mode = #tpu.pipeline_mode<synchronous>, transform_indices = @transform_2, window_bounds = array<i64: 1, 16>}, {transform_indices = @transform_3, window_bounds = array<i64: 200, 16>}]} {
    %c0 = arith.constant 0 : index
    %c0_0 = arith.constant 0 : index
    %0 = vector.load %arg1[%c0, %c0_0] : memref<200x150xf32, #tpu.memory_space<vmem>>, vector<200x150xf32>
    %c0_1 = arith.constant 0 : index
    %c0_2 = arith.constant 0 : index
    %1 = vector.load %arg2[%c0_1, %c0_2] : memref<150x16xf32, #tpu.memory_space<vmem>>, vector<150x16xf32>
    %cst = arith.constant dense<0.000000e+00> : vector<200x16xf32>
    %2 = tpu.matmul %0, %1, %cst {dimension_numbers = #tpu.dot_dimension_numbers<[1], [0], [0], [1], [0, 0, 1, 1], [], []>} : vector<200x150xf32>, vector<150x16xf32>, vector<200x16xf32> -> vector<200x16xf32>
    %c0_3 = arith.constant 0 : index
    %c0_4 = arith.constant 0 : index
    %3 = vector.load %arg3[%c0_3, %c0_4] : memref<1x16xf32, #tpu.memory_space<vmem>>, vector<1x16xf32>
    %4 = vector.broadcast %3 : vector<1x16xf32> to vector<200x16xf32>
    %5 = arith.addf %2, %4 : vector<200x16xf32>
    %cst_5 = arith.constant 0.0295690335 : f32
    %6 = vector.broadcast %cst_5 : f32 to vector<200x16xf32>
    %7 = arith.mulf %5, %6 : vector<200x16xf32>
    %cst_6 = arith.constant 0.000000e+00 : f32
    %8 = vector.broadcast %cst_6 : f32 to vector<200x16xf32>
    %9 = arith.maximumf %7, %8 : vector<200x16xf32>
    %c0_7 = arith.constant 0 : index
    %c0_8 = arith.constant 0 : index
    %10 = vector.load %arg4[%c0_7, %c0_8] : memref<200x16xf32, #tpu.memory_space<vmem>>, vector<200x16xf32>
    tpu.vector_store %arg4[%c0_7, %c0_8], %9 {strides = array<i32>} : memref<200x16xf32, #tpu.memory_space<vmem>>, vector<200x16xf32>,
    return
  }
  func.func @transform_0(%arg0: i32) -> (i32, i32) {
    %c0_i32 = arith.constant 0 : i32
    %c0_i32_0 = arith.constant 0 : i32
    return %arg0, %c0_i32 : i32, i32
  }
  func.func @transform_1(%arg0: i32) -> (i32, i32) {
    %c0_i32 = arith.constant 0 : i32
    %c0_i32_0 = arith.constant 0 : i32
    %c0_i32_1 = arith.constant 0 : i32
    return %c0_i32, %c0_i32_0 : i32, i32
  }
  func.func @transform_2(%arg0: i32) -> (i32, i32) {
    %c0_i32 = arith.constant 0 : i32
    %c0_i32_0 = arith.constant 0 : i32
    %c0_i32_1 = arith.constant 0 : i32
    return %c0_i32, %c0_i32_0 : i32, i32
  }
  func.func @transform_3(%arg0: i32) -> (i32, i32) {
    %c0_i32 = arith.constant 0 : i32
    %c0_i32_0 = arith.constant 0 : i32
    return %arg0, %c0_i32 : i32, i32
  }
}

module attributes {stable_mosaic.version = 11 : i64} {
  func.func @_max4_kernel(%arg0: i32, %arg1: memref<50x16xf32, #tpu.memory_space<vmem>>, %arg2: memref<50x16xf32, #tpu.memory_space<vmem>>, %arg3: memref<50x16xf32, #tpu.memory_space<vmem>>, %arg4: memref<50x16xf32, #tpu.memory_space<vmem>>, %arg5: memref<50x16xf32, #tpu.memory_space<vmem>>) attributes {dimension_semantics = [#tpu.dimension_semantics<parallel>], iteration_bounds = array<i64: 1>, scalar_prefetch = 0 : i64, scratch_operands = 0 : i64, tpu.core_type = #tpu.core_type<tc>, window_params = [{transform_indices = @transform_0, window_bounds = array<i64: 50, 16>}, {transform_indices = @transform_1, window_bounds = array<i64: 50, 16>}, {transform_indices = @transform_2, window_bounds = array<i64: 50, 16>}, {transform_indices = @transform_3, window_bounds = array<i64: 50, 16>}, {transform_indices = @transform_4, window_bounds = array<i64: 50, 16>}]} {
    %c0 = arith.constant 0 : index
    %c0_0 = arith.constant 0 : index
    %0 = vector.load %arg1[%c0, %c0_0] : memref<50x16xf32, #tpu.memory_space<vmem>>, vector<50x16xf32>
    %c0_1 = arith.constant 0 : index
    %c0_2 = arith.constant 0 : index
    %1 = vector.load %arg2[%c0_1, %c0_2] : memref<50x16xf32, #tpu.memory_space<vmem>>, vector<50x16xf32>
    %2 = arith.maximumf %0, %1 : vector<50x16xf32>
    %c0_3 = arith.constant 0 : index
    %c0_4 = arith.constant 0 : index
    %3 = vector.load %arg3[%c0_3, %c0_4] : memref<50x16xf32, #tpu.memory_space<vmem>>, vector<50x16xf32>
    %c0_5 = arith.constant 0 : index
    %c0_6 = arith.constant 0 : index
    %4 = vector.load %arg4[%c0_5, %c0_6] : memref<50x16xf32, #tpu.memory_space<vmem>>, vector<50x16xf32>
    %5 = arith.maximumf %3, %4 : vector<50x16xf32>
    %6 = arith.maximumf %2, %5 : vector<50x16xf32>
    %c0_7 = arith.constant 0 : index
    %c0_8 = arith.constant 0 : index
    %7 = vector.load %arg5[%c0_7, %c0_8] : memref<50x16xf32, #tpu.memory_space<vmem>>, vector<50x16xf32>
    tpu.vector_store %arg5[%c0_7, %c0_8], %6 {strides = array<i32>} : memref<50x16xf32, #tpu.memory_space<vmem>>, vector<50x16xf32>,
    return
  }
  func.func @transform_0(%arg0: i32) -> (i32, i32) {
    %c0_i32 = arith.constant 0 : i32
    %c0_i32_0 = arith.constant 0 : i32
    return %arg0, %c0_i32 : i32, i32
  }
  func.func @transform_1(%arg0: i32) -> (i32, i32) {
    %c0_i32 = arith.constant 0 : i32
    %c0_i32_0 = arith.constant 0 : i32
    return %arg0, %c0_i32 : i32, i32
  }
  func.func @transform_2(%arg0: i32) -> (i32, i32) {
    %c0_i32 = arith.constant 0 : i32
    %c0_i32_0 = arith.constant 0 : i32
    return %arg0, %c0_i32 : i32, i32
  }
  func.func @transform_3(%arg0: i32) -> (i32, i32) {
    %c0_i32 = arith.constant 0 : i32
    %c0_i32_0 = arith.constant 0 : i32
    return %arg0, %c0_i32 : i32, i32
  }
  func.func @transform_4(%arg0: i32) -> (i32, i32) {
    %c0_i32 = arith.constant 0 : i32
    %c0_i32_0 = arith.constant 0 : i32
    return %arg0, %c0_i32 : i32, i32
  }
}

module attributes {stable_mosaic.version = 11 : i64} {
  func.func @_dend_mlp_kernel(%arg0: i32, %arg1: memref<2x400xf32, #tpu.memory_space<vmem>>, %arg2: memref<400x120xf32, #tpu.memory_space<vmem>>, %arg3: memref<1x120xf32, #tpu.memory_space<vmem>>, %arg4: memref<120x84xf32, #tpu.memory_space<vmem>>, %arg5: memref<1x84xf32, #tpu.memory_space<vmem>>, %arg6: memref<84x10xf32, #tpu.memory_space<vmem>>, %arg7: memref<1x10xf32, #tpu.memory_space<vmem>>, %arg8: memref<2x10xf32, #tpu.memory_space<vmem>>) attributes {dimension_semantics = [#tpu.dimension_semantics<parallel>], iteration_bounds = array<i64: 1>, scalar_prefetch = 0 : i64, scratch_operands = 0 : i64, tpu.core_type = #tpu.core_type<tc>, window_params = [{transform_indices = @transform_0, window_bounds = array<i64: 2, 400>}, {pipeline_mode = #tpu.pipeline_mode<synchronous>, transform_indices = @transform_1, window_bounds = array<i64: 400, 120>}, {pipeline_mode = #tpu.pipeline_mode<synchronous>, transform_indices = @transform_2, window_bounds = array<i64: 1, 120>}, {pipeline_mode = #tpu.pipeline_mode<synchronous>, transform_indices = @transform_3, window_bounds = array<i64: 120, 84>}, {pipeline_mode = #tpu.pipeline_mode<synchronous>, transform_indices = @transform_4, window_bounds = array<i64: 1, 84>}, {pipeline_mode = #tpu.pipeline_mode<synchronous>, transform_indices = @transform_5, window_bounds = array<i64: 84, 10>}, {pipeline_mode = #tpu.pipeline_mode<synchronous>, transform_indices = @transform_6, window_bounds = array<i64: 1, 10>}, {transform_indices = @transform_7, window_bounds = array<i64: 2, 10>}]} {
    %c0 = arith.constant 0 : index
    %c0_0 = arith.constant 0 : index
    %0 = vector.load %arg1[%c0, %c0_0] : memref<2x400xf32, #tpu.memory_space<vmem>>, vector<2x400xf32>
    %c0_1 = arith.constant 0 : index
    %c0_2 = arith.constant 0 : index
    %1 = vector.load %arg2[%c0_1, %c0_2] : memref<400x120xf32, #tpu.memory_space<vmem>>, vector<400x120xf32>
    %cst = arith.constant dense<0.000000e+00> : vector<2x120xf32>
    %2 = tpu.matmul %0, %1, %cst {dimension_numbers = #tpu.dot_dimension_numbers<[1], [0], [0], [1], [0, 0, 1, 1], [], []>} : vector<2x400xf32>, vector<400x120xf32>, vector<2x120xf32> -> vector<2x120xf32>
    %c0_3 = arith.constant 0 : index
    %c0_4 = arith.constant 0 : index
    %3 = vector.load %arg3[%c0_3, %c0_4] : memref<1x120xf32, #tpu.memory_space<vmem>>, vector<1x120xf32>
    %4 = vector.broadcast %3 : vector<1x120xf32> to vector<2x120xf32>
    %5 = arith.addf %2, %4 : vector<2x120xf32>
    %cst_5 = arith.constant 0.0295690335 : f32
    %6 = vector.broadcast %cst_5 : f32 to vector<2x120xf32>
    %7 = arith.mulf %5, %6 : vector<2x120xf32>
    %cst_6 = arith.constant 0.000000e+00 : f32
    %8 = vector.broadcast %cst_6 : f32 to vector<2x120xf32>
    %9 = arith.maximumf %7, %8 : vector<2x120xf32>
    %c0_7 = arith.constant 0 : index
    %c0_8 = arith.constant 0 : index
    %10 = vector.load %arg4[%c0_7, %c0_8] : memref<120x84xf32, #tpu.memory_space<vmem>>, vector<120x84xf32>
    %cst_9 = arith.constant dense<0.000000e+00> : vector<2x84xf32>
    %11 = tpu.matmul %9, %10, %cst_9 {dimension_numbers = #tpu.dot_dimension_numbers<[1], [0], [0], [1], [0, 0, 1, 1], [], []>} : vector<2x120xf32>, vector<120x84xf32>, vector<2x84xf32> -> vector<2x84xf32>
    %c0_10 = arith.constant 0 : index
    %c0_11 = arith.constant 0 : index
    %12 = vector.load %arg5[%c0_10, %c0_11] : memref<1x84xf32, #tpu.memory_space<vmem>>, vector<1x84xf32>
    %13 = vector.broadcast %12 : vector<1x84xf32> to vector<2x84xf32>
    %14 = arith.addf %11, %13 : vector<2x84xf32>
    %cst_12 = arith.constant 0.0295690335 : f32
    %15 = vector.broadcast %cst_12 : f32 to vector<2x84xf32>
    %16 = arith.mulf %14, %15 : vector<2x84xf32>
    %cst_13 = arith.constant 0.000000e+00 : f32
    %17 = vector.broadcast %cst_13 : f32 to vector<2x84xf32>
    %18 = arith.maximumf %16, %17 : vector<2x84xf32>
    %c0_14 = arith.constant 0 : index
    %c0_15 = arith.constant 0 : index
    %19 = vector.load %arg6[%c0_14, %c0_15] : memref<84x10xf32, #tpu.memory_space<vmem>>, vector<84x10xf32>
    %cst_16 = arith.constant dense<0.000000e+00> : vector<2x10xf32>
    %20 = tpu.matmul %18, %19, %cst_16 {dimension_numbers = #tpu.dot_dimension_numbers<[1], [0], [0], [1], [0, 0, 1, 1], [], []>} : vector<2x84xf32>, vector<84x10xf32>, vector<2x10xf32> -> vector<2x10xf32>
    %c0_17 = arith.constant 0 : index
    %c0_18 = arith.constant 0 : index
    %21 = vector.load %arg7[%c0_17, %c0_18] : memref<1x10xf32, #tpu.memory_space<vmem>>, vector<1x10xf32>
    %22 = vector.broadcast %21 : vector<1x10xf32> to vector<2x10xf32>
    %23 = arith.addf %20, %22 : vector<2x10xf32>
    %cst_19 = arith.constant 0.0295690335 : f32
    %24 = vector.broadcast %cst_19 : f32 to vector<2x10xf32>
    %25 = arith.mulf %23, %24 : vector<2x10xf32>
    %c0_20 = arith.constant 0 : index
    %c0_21 = arith.constant 0 : index
    %26 = vector.load %arg8[%c0_20, %c0_21] : memref<2x10xf32, #tpu.memory_space<vmem>>, vector<2x10xf32>
    tpu.vector_store %arg8[%c0_20, %c0_21], %25 {strides = array<i32>} : memref<2x10xf32, #tpu.memory_space<vmem>>, vector<2x10xf32>,
    return
  }
  func.func @transform_0(%arg0: i32) -> (i32, i32) {
    %c0_i32 = arith.constant 0 : i32
    %c0_i32_0 = arith.constant 0 : i32
    return %arg0, %c0_i32 : i32, i32
  }
  func.func @transform_1(%arg0: i32) -> (i32, i32) {
    %c0_i32 = arith.constant 0 : i32
    %c0_i32_0 = arith.constant 0 : i32
    %c0_i32_1 = arith.constant 0 : i32
    return %c0_i32, %c0_i32_0 : i32, i32
  }
  func.func @transform_2(%arg0: i32) -> (i32, i32) {
    %c0_i32 = arith.constant 0 : i32
    %c0_i32_0 = arith.constant 0 : i32
    %c0_i32_1 = arith.constant 0 : i32
    return %c0_i32, %c0_i32_0 : i32, i32
  }
  func.func @transform_3(%arg0: i32) -> (i32, i32) {
    %c0_i32 = arith.constant 0 : i32
    %c0_i32_0 = arith.constant 0 : i32
    %c0_i32_1 = arith.constant 0 : i32
    return %c0_i32, %c0_i32_0 : i32, i32
  }
  func.func @transform_4(%arg0: i32) -> (i32, i32) {
    %c0_i32 = arith.constant 0 : i32
    %c0_i32_0 = arith.constant 0 : i32
    %c0_i32_1 = arith.constant 0 : i32
    return %c0_i32, %c0_i32_0 : i32, i32
  }
  func.func @transform_5(%arg0: i32) -> (i32, i32) {
    %c0_i32 = arith.constant 0 : i32
    %c0_i32_0 = arith.constant 0 : i32
    %c0_i32_1 = arith.constant 0 : i32
    return %c0_i32, %c0_i32_0 : i32, i32
  }
  func.func @transform_6(%arg0: i32) -> (i32, i32) {
    %c0_i32 = arith.constant 0 : i32
    %c0_i32_0 = arith.constant 0 : i32
    %c0_i32_1 = arith.constant 0 : i32
    return %c0_i32, %c0_i32_0 : i32, i32
  }
  func.func @transform_7(%arg0: i32) -> (i32, i32) {
    %c0_i32 = arith.constant 0 : i32
    %c0_i32_0 = arith.constant 0 : i32
    return %arg0, %c0_i32 : i32, i32
  }
}

</mosaic_0001>

<llo_original>
// kernel: cifar_dend_conv_forward.5
$region0: #{cifar_dend_conv_forward.5}
  #allocation0 [shape = 'u32[]', space=smem, size = 0x4, offset = 0x4, fixed_abs, tag = 'smem constant byte address 0x4 - core index']
  #allocation1 [shape = 'u32[144,128]{1,0:T(1,128)}', space=vmem, size = 0x12000, scoped, tag = 'internal scratch']
  %s0 = inlined_call_operand.vmem [shape: f32[1568,75], index: 0, kind: input, shape index: {}]
  %s1 = inlined_call_operand.vmem [shape: f32[75,6], index: 1, kind: input, shape index: {}]
  %s2 = inlined_call_operand.vmem [shape: f32[1,6], index: 2, kind: input, shape index: {}]
  %s3 = inlined_call_operand.vmem [shape: f32[1568,6], index: 3, kind: output, shape index: {}]
  %s4 = sld [smem:[#allocation0]]
  $region93: #{cifar_dend_conv_forward.5} parent=0
    _
  %s6 = ssub.s32 1, %s4
  %s7 = scalar_select 0, %s6, %s4
  $region1: #{cifar_dend_conv_forward.5} parent=0
    #allocation2 [shape = 'u8[524288]{0}', space=vmem, size = 0x80000, scoped, tag = 'output window, operand 0']
    loop: start=0, step=1, limit=6
    $region2: #{cifar_dend_conv_forward.5} parent=1 // loop_pre_header
      _
    $region3: #{cifar_dend_conv_forward.5} parent=1 // loop_header
      %s9 = sphi 0, %s13
      %p10 = scmp.ge.s32.totalorder %s9, 6
      %s19 = sphi 0, %s21
      %s22 = sphi 0, %s19
      %s23 = sphi 0, %s22
      %s39 = sphi 0, %s23
      %s43 = sphi 0, %s43
      %s45 = sphi 0, %s43
      %s46 = sphi 0, %s45
      %s60 = sphi 0, %s46
      %s64 = sphi 0, %s64
      %s66 = sphi 0, %s64
      %s67 = sphi 0, %s66
      %s81 = sphi 0, %s67
      %s87 = sphi 0, %s89
      %s90 = sphi 0, %s87
      %s91 = sphi 0, %s90
      %s107 = sphi 0, %s91
    $region4: #{cifar_dend_conv_forward.5} parent=1 // loop_header_branch
      %12 = sbr.rel (%p10) target = $region8
    $region5: #{cifar_dend_conv_forward.5} parent=1 // loop_body
      %s14 = ssub.s32 %s9, 1
      %s15 = ssub.s32 %s9, 2
      %s16 = sadd.s32 %s9, 1
      %s17 = ssub.s32 %s9, %s16
      %p18 = scmp.eq.s32.totalorder %s17, 0
      %s20 = sadd.s32 %s19, 1
      %s21 = scalar_select %p18, %s19, %s20
      %p24 = pneg %p18
      %p25 = scmp.eq.s32.totalorder %s9, 3
      %p26 = por %p24, %p25
      %p27 = scmp.ne.s32.totalorder %s19, %s22
      %p28 = scmp.eq.s32.totalorder %s9, 0
      %p29 = por %p27, %p28
      %p30 = scmp.ne.s32.totalorder %s19, %s22
      %p31 = scmp.eq.s32.totalorder %s14, 3
      %p32 = por %p30, %p31
      %p33 = scmp.ne.s32.totalorder %s22, %s23
      %p34 = scmp.eq.s32.totalorder %s14, 0
      %p35 = por %p33, %p34
      %p36 = scmp.ne.s32.totalorder %s22, %s23
      %p37 = scmp.eq.s32.totalorder %s15, 3
      %p38 = por %p36, %p37
      %p40 = scmp.ne.s32.totalorder %s23, %s39
      %p41 = scmp.eq.s32.totalorder %s15, 0
      %p42 = por %p40, %p41
      %s44 = sadd.s32 %s43, 1
      %p47 = scmp.eq.s32.totalorder %s9, 3
      %p48 = scmp.ne.s32.totalorder %s43, %s45
      %p49 = scmp.eq.s32.totalorder %s9, 0
      %p50 = por %p48, %p49
      %p51 = scmp.ne.s32.totalorder %s43, %s45
      %p52 = scmp.eq.s32.totalorder %s14, 3
      %p53 = por %p51, %p52
      %p54 = scmp.ne.s32.totalorder %s45, %s46
      %p55 = scmp.eq.s32.totalorder %s14, 0
      %p56 = por %p54, %p55
      %p57 = scmp.ne.s32.totalorder %s45, %s46
      %p58 = scmp.eq.s32.totalorder %s15, 3
      %p59 = por %p57, %p58
      %p61 = scmp.ne.s32.totalorder %s46, %s60
      %p62 = scmp.eq.s32.totalorder %s15, 0
      %p63 = por %p61, %p62
      %s65 = sadd.s32 %s64, 1
      %p68 = scmp.eq.s32.totalorder %s9, 3
      %p69 = scmp.ne.s32.totalorder %s64, %s66
      %p70 = scmp.eq.s32.totalorder %s9, 0
      %p71 = por %p69, %p70
      %p72 = scmp.ne.s32.totalorder %s64, %s66
      %p73 = scmp.eq.s32.totalorder %s14, 3
      %p74 = por %p72, %p73
      %p75 = scmp.ne.s32.totalorder %s66, %s67
      %p76 = scmp.eq.s32.totalorder %s14, 0
      %p77 = por %p75, %p76
      %p78 = scmp.ne.s32.totalorder %s66, %s67
      %p79 = scmp.eq.s32.totalorder %s15, 3
      %p80 = por %p78, %p79
      %p82 = scmp.ne.s32.totalorder %s67, %s81
      %p83 = scmp.eq.s32.totalorder %s15, 0
      %p84 = por %p82, %p83
      %s85 = ssub.s32 %s9, %s16
      %p86 = scmp.eq.s32.totalorder %s85, 0
      %s88 = sadd.s32 %s87, 1
      %s89 = scalar_select %p86, %s87, %s88
      %p92 = pneg %p86
      %p93 = scmp.eq.s32.totalorder %s9, 3
      %p94 = por %p92, %p93
      %p95 = scmp.ne.s32.totalorder %s87, %s90
      %p96 = scmp.eq.s32.totalorder %s9, 0
      %p97 = por %p95, %p96
      %p98 = scmp.ne.s32.totalorder %s87, %s90
      %p99 = scmp.eq.s32.totalorder %s14, 3
      %p100 = por %p98, %p99
      %p101 = scmp.ne.s32.totalorder %s90, %s91
      %p102 = scmp.eq.s32.totalorder %s14, 0
      %p103 = por %p101, %p102
      %p104 = scmp.ne.s32.totalorder %s90, %s91
      %p105 = scmp.eq.s32.totalorder %s15, 3
      %p106 = por %p104, %p105
      %p108 = scmp.ne.s32.totalorder %s91, %s107
      %p109 = scmp.eq.s32.totalorder %s15, 0
      %p110 = por %p108, %p109
      %p111 = scmp.le.s32.totalorder 1, %s9
      %p112 = scmp.lt.s32.totalorder %s9, 5
      %p113 = pnand %p111, %p112
      %p114 = pneg %p113
      // Predicated region
      $region9: #{cifar_dend_conv_forward.5} parent=5 // pred_check
        _
      $region10: #{cifar_dend_conv_forward.5} parent=5 // pred_check_branch
        %116 = sbr.rel (%p113) target = $region12
      $region11: #{cifar_dend_conv_forward.5} parent=5 // pred_region
        %s117 = ssub.s32 %s9, 1
        // Predicated region
        $region13: #{cifar_dend_conv_forward.5} parent=11 // pred_check
          %p118 = pneg %p56
        $region14: #{cifar_dend_conv_forward.5} parent=11 // pred_check_branch
          %120 = sbr.rel (%p118) target = $region16
        $region15: #{cifar_dend_conv_forward.5} parent=11 // pred_region
          _
        $region16: #{cifar_dend_conv_forward.5} parent=11 // pred_fallthru
          _
        // Predicated region
        $region17: #{cifar_dend_conv_forward.5} parent=11 // pred_check
          %p121 = pneg %p77
        $region18: #{cifar_dend_conv_forward.5} parent=11 // pred_check_branch
          %123 = sbr.rel (%p121) target = $region20
        $region19: #{cifar_dend_conv_forward.5} parent=11 // pred_region
          _
        $region20: #{cifar_dend_conv_forward.5} parent=11 // pred_fallthru
          _
      $region12: #{cifar_dend_conv_forward.5} parent=5 // pred_fallthru
        _
      %p124 = scmp.lt.s32.totalorder %s9, 4
      // Predicated region
      $region21: #{cifar_dend_conv_forward.5} parent=5 // pred_check
        %p125 = pneg %p124
      $region22: #{cifar_dend_conv_forward.5} parent=5 // pred_check_branch
        %127 = sbr.rel (%p125) target = $region24
      $region23: #{cifar_dend_conv_forward.5} parent=5 // pred_region
        // Predicated region
        $region25: #{cifar_dend_conv_forward.5} parent=23 // pred_check
          %p128 = pneg %p29
        $region26: #{cifar_dend_conv_forward.5} parent=23 // pred_check_branch
          %130 = sbr.rel (%p128) target = $region28
        $region27: #{cifar_dend_conv_forward.5} parent=23 // pred_region
          %s131 = smul.u32 64, %s9
          %s132 = ssub.s32 196, %s131
          %p133 = scmp.lt.s32.totalorder %s132, 64
          %s134 = scalar_select %p133, %s132, 64
          %s135 = smul.u32 128, %s134
          %p136 = scmp.lt.s32.totalorder %s131, 195
          %s137 = scalar_select %p136, %s131, 195
          %s138 = smul.addr %s137, 8
          %s139 = scalar_lea.vmem %s0, %s138
          %s140 = smul.u32 64, %s9
          %s141 = ssub.s32 196, %s140
          %p142 = scmp.lt.s32.totalorder %s141, 64
          %s143 = scalar_select %p142, %s141, 64
          %s144 = smul.u32 128, %s143
        $region28: #{cifar_dend_conv_forward.5} parent=23 // pred_fallthru
          _
      $region24: #{cifar_dend_conv_forward.5} parent=5 // pred_fallthru
        _
      %p145 = scmp.le.s32.totalorder 1, %s9
      %p146 = scmp.lt.s32.totalorder %s9, 5
      %p147 = pnand %p145, %p146
      %p148 = pneg %p147
      // Predicated region
      $region29: #{cifar_dend_conv_forward.5} parent=5 // pred_check
        _
      $region30: #{cifar_dend_conv_forward.5} parent=5 // pred_check_branch
        %150 = sbr.rel (%p147) target = $region32
      $region31: #{cifar_dend_conv_forward.5} parent=5 // pred_region
        %s151 = ssub.s32 %s9, 1
        %s152 = smul.u32 64, %s14
        %s153 = ssub.s32 196, %s152
        %p154 = scmp.lt.s32.totalorder %s153, 64
        %s155 = scalar_select %p154, %s153, 64
        %s156 = smul.u32 128, %s155
        %p157 = scmp.lt.s32.totalorder %s152, 195
        %s158 = scalar_select %p157, %s152, 195
        %s159 = smul.addr %s158, 8
        %s160 = scalar_lea.vmem %s0, %s159
        %p161 = pneg %p35
        %p162 = pneg %p32
        %p163 = pneg %p56
        %p164 = pneg %p53
        %p165 = pneg %p77
        %p166 = pneg %p74
        %p167 = pneg %p103
        %p168 = pneg %p100
        %s169 = sand.u32 %s90, 1
        %s170 = sand.u32 %s90, 1
        %s171 = smul.addr %s170, 512
        %s172 = scalar_lea.vmem [#allocation2], %s171
        %s173 = smul.u32 64, %s14
        %s174 = ssub.s32 196, %s173
        %p175 = scmp.lt.s32.totalorder %s174, 64
        %s176 = scalar_select %p175, %s174, 64
        %s177 = smul.u32 128, %s176
        %p178 = scmp.lt.s32.totalorder %s173, 195
        %s179 = scalar_select %p178, %s173, 195
        %s180 = smul.addr %s179, 8
        %s181 = scalar_lea.vmem %s0, %s180
        %s182 = smul.u32 64, %s14
        %s183 = ssub.s32 196, %s182
        %p184 = scmp.lt.s32.totalorder %s183, 64
        %s185 = scalar_select %p184, %s183, 64
        %s186 = smul.u32 128, %s185
        %s187 = smul.u32 64, %s14
        %s188 = ssub.s32 196, %s187
        %p189 = scmp.lt.s32.totalorder %s188, 64
        %s190 = scalar_select %p189, %s188, 64
        %s191 = smul.u32 128, %s190
        %v192 = vld [vmem:[%s181] sm:$0xff]
        %v193 = vld [vmem:[%s181 + $0x8] sm:$0xff]
        %v194 = vld [vmem:[%s181 + $0x10] sm:$0xff]
        %v195 = vld [vmem:[%s181 + $0x18] sm:$0xff]
        %v196 = vld [vmem:[%s181 + $0x20] sm:$0xff]
        %v197 = vld [vmem:[%s181 + $0x28] sm:$0xff]
        %v198 = vld [vmem:[%s181 + $0x30] sm:$0xff]
        %v199 = vld [vmem:[%s181 + $0x38] sm:$0xff]
        %v200 = vld [vmem:[%s181 + $0x40] sm:$0xff]
        %v201 = vld [vmem:[%s181 + $0x48] sm:$0xff]
        %v202 = vld [vmem:[%s181 + $0x50] sm:$0xff]
        %v203 = vld [vmem:[%s181 + $0x58] sm:$0xff]
        %v204 = vld [vmem:[%s181 + $0x60] sm:$0xff]
        %v205 = vld [vmem:[%s181 + $0x68] sm:$0xff]
        %v206 = vld [vmem:[%s181 + $0x70] sm:$0xff]
        %v207 = vld [vmem:[%s181 + $0x78] sm:$0xff]
        %v208 = vld [vmem:[%s181 + $0x80] sm:$0xff]
        %v209 = vld [vmem:[%s181 + $0x88] sm:$0xff]
        %v210 = vld [vmem:[%s181 + $0x90] sm:$0xff]
        %v211 = vld [vmem:[%s181 + $0x98] sm:$0xff]
        %v212 = vld [vmem:[%s181 + $0xa0] sm:$0xff]
        %v213 = vld [vmem:[%s181 + $0xa8] sm:$0xff]
        %v214 = vld [vmem:[%s181 + $0xb0] sm:$0xff]
        %v215 = vld [vmem:[%s181 + $0xb8] sm:$0xff]
        %v216 = vld [vmem:[%s181 + $0xc0] sm:$0xff]
        %v217 = vld [vmem:[%s181 + $0xc8] sm:$0xff]
        %v218 = vld [vmem:[%s181 + $0xd0] sm:$0xff]
        %v219 = vld [vmem:[%s181 + $0xd8] sm:$0xff]
        %v220 = vld [vmem:[%s181 + $0xe0] sm:$0xff]
        %v221 = vld [vmem:[%s181 + $0xe8] sm:$0xff]
        %v222 = vld [vmem:[%s181 + $0xf0] sm:$0xff]
        %v223 = vld [vmem:[%s181 + $0xf8] sm:$0xff]
        %v224 = vld [vmem:[%s181 + $0x100] sm:$0xff]
        %v225 = vld [vmem:[%s181 + $0x108] sm:$0xff]
        %v226 = vld [vmem:[%s181 + $0x110] sm:$0xff]
        %v227 = vld [vmem:[%s181 + $0x118] sm:$0xff]
        %v228 = vld [vmem:[%s181 + $0x120] sm:$0xff]
        %v229 = vld [vmem:[%s181 + $0x128] sm:$0xff]
        %v230 = vld [vmem:[%s181 + $0x130] sm:$0xff]
        %v231 = vld [vmem:[%s181 + $0x138] sm:$0xff]
        %v232 = vld [vmem:[%s181 + $0x140] sm:$0xff]
        %v233 = vld [vmem:[%s181 + $0x148] sm:$0xff]
        %v234 = vld [vmem:[%s181 + $0x150] sm:$0xff]
        %v235 = vld [vmem:[%s181 + $0x158] sm:$0xff]
        %v236 = vld [vmem:[%s181 + $0x160] sm:$0xff]
        %v237 = vld [vmem:[%s181 + $0x168] sm:$0xff]
        %v238 = vld [vmem:[%s181 + $0x170] sm:$0xff]
        %v239 = vld [vmem:[%s181 + $0x178] sm:$0xff]
        %v240 = vld [vmem:[%s181 + $0x180] sm:$0xff]
        %v241 = vld [vmem:[%s181 + $0x188] sm:$0xff]
        %v242 = vld [vmem:[%s181 + $0x190] sm:$0xff]
        %v243 = vld [vmem:[%s181 + $0x198] sm:$0xff]
        %v244 = vld [vmem:[%s181 + $0x1a0] sm:$0xff]
        %v245 = vld [vmem:[%s181 + $0x1a8] sm:$0xff]
        %v246 = vld [vmem:[%s181 + $0x1b0] sm:$0xff]
        %v247 = vld [vmem:[%s181 + $0x1b8] sm:$0xff]
        %v248 = vld [vmem:[%s181 + $0x1c0] sm:$0xff]
        %v249 = vld [vmem:[%s181 + $0x1c8] sm:$0xff]
        %v250 = vld [vmem:[%s181 + $0x1d0] sm:$0xff]
        %v251 = vld [vmem:[%s181 + $0x1d8] sm:$0xff]
        %v252 = vld [vmem:[%s181 + $0x1e0] sm:$0xff]
        %v253 = vld [vmem:[%s181 + $0x1e8] sm:$0xff]
        %v254 = vld [vmem:[%s181 + $0x1f0] sm:$0xff]
        %v255 = vld [vmem:[%s181 + $0x1f8] sm:$0xff]
        %v256 = vld [vmem:[%s1] sm:$0xff]
        %v257 = vld [vmem:[%s1 + $0x8] sm:$0xff]
        %v258 = vld [vmem:[%s1 + $0x10] sm:$0xff]
        %v259 = vld [vmem:[%s1 + $0x18] sm:$0xff]
        %v260 = vld [vmem:[%s1 + $0x20] sm:$0xff]
        %v261 = vld [vmem:[%s1 + $0x28] sm:$0xff]
        %v262 = vld [vmem:[%s1 + $0x30] sm:$0xff]
        %v263 = vld [vmem:[%s1 + $0x38] sm:$0xff]
        %v264 = vld [vmem:[%s1 + $0x40] sm:$0xff]
        %v265 = vld [vmem:[%s1 + $0x48] sm:$0x7]
        %v266 = vld [vmem:[%s2] sm:$0x1]
        %v268 = vlaneseq
        %v269 = vshrl.u32 %v268, 7
        %v270 = vsub.s32 0, %v269
        %v271 = vrot.slane %v266, %v270
        %vm273 = vcmask 613376
        %v275 = vsel %vm273, %v192, 0
        %v278 = vsel %vm273, %v193, 0
        %v281 = vsel %vm273, %v194, 0
        %v284 = vsel %vm273, %v195, 0
        %v287 = vsel %vm273, %v196, 0
        %v290 = vsel %vm273, %v197, 0
        %v293 = vsel %vm273, %v198, 0
        %v296 = vsel %vm273, %v199, 0
        %v299 = vsel %vm273, %v200, 0
        %v302 = vsel %vm273, %v201, 0
        %v305 = vsel %vm273, %v202, 0
        %v308 = vsel %vm273, %v203, 0
        %v311 = vsel %vm273, %v204, 0
        %v314 = vsel %vm273, %v205, 0
        %v317 = vsel %vm273, %v206, 0
        %v320 = vsel %vm273, %v207, 0
        %v323 = vsel %vm273, %v208, 0
        %v326 = vsel %vm273, %v209, 0
        %v329 = vsel %vm273, %v210, 0
        %v332 = vsel %vm273, %v211, 0
        %v335 = vsel %vm273, %v212, 0
        %v338 = vsel %vm273, %v213, 0
        %v341 = vsel %vm273, %v214, 0
        %v344 = vsel %vm273, %v215, 0
        %v347 = vsel %vm273, %v216, 0
        %v350 = vsel %vm273, %v217, 0
        %v353 = vsel %vm273, %v218, 0
        %v356 = vsel %vm273, %v219, 0
        %v359 = vsel %vm273, %v220, 0
        %v362 = vsel %vm273, %v221, 0
        %v365 = vsel %vm273, %v222, 0
        %v368 = vsel %vm273, %v223, 0
        %v371 = vsel %vm273, %v224, 0
        %v374 = vsel %vm273, %v225, 0
        %v377 = vsel %vm273, %v226, 0
        %v380 = vsel %vm273, %v227, 0
        %v383 = vsel %vm273, %v228, 0
        %v386 = vsel %vm273, %v229, 0
        %v389 = vsel %vm273, %v230, 0
        %v392 = vsel %vm273, %v231, 0
        %v395 = vsel %vm273, %v232, 0
        %v398 = vsel %vm273, %v233, 0
        %v401 = vsel %vm273, %v234, 0
        %v404 = vsel %vm273, %v235, 0
        %v407 = vsel %vm273, %v236, 0
        %v410 = vsel %vm273, %v237, 0
        %v413 = vsel %vm273, %v238, 0
        %v416 = vsel %vm273, %v239, 0
        %v419 = vsel %vm273, %v240, 0
        %v422 = vsel %vm273, %v241, 0
        %v425 = vsel %vm273, %v242, 0
        %v428 = vsel %vm273, %v243, 0
        %v431 = vsel %vm273, %v244, 0
        %v434 = vsel %vm273, %v245, 0
        %v437 = vsel %vm273, %v246, 0
        %v440 = vsel %vm273, %v247, 0
        %v443 = vsel %vm273, %v248, 0
        %v446 = vsel %vm273, %v249, 0
        %v449 = vsel %vm273, %v250, 0
        %v452 = vsel %vm273, %v251, 0
        %v455 = vsel %vm273, %v252, 0
        %v458 = vsel %vm273, %v253, 0
        %v461 = vsel %vm273, %v254, 0
        %v464 = vsel %vm273, %v255, 0
        %vm466 = vcmask 1042432
        %v468 = vsel %vm466, %v265, 0
        %470 = vmatprep.subr.mxu0 0.0
        %471 = vmatpush1.msra.mxu0 %v256
        %472 = vmatprep.subr.mxu0 0.0
        %473 = vmatpush1.msra.mxu0 %v257
        %474 = vmatprep.subr.mxu0 0.0
        %475 = vmatpush1.msra.mxu0 %v258
        %476 = vmatprep.subr.mxu0 0.0
        %477 = vmatpush1.msra.mxu0 %v259
        %478 = vmatprep.subr.mxu0 0.0
        %479 = vmatpush1.msra.mxu0 %v260
        %480 = vmatprep.subr.mxu0 0.0
        %481 = vmatpush1.msra.mxu0 %v261
        %482 = vmatprep.subr.mxu0 0.0
        %483 = vmatpush1.msra.mxu0 %v262
        %484 = vmatprep.subr.mxu0 0.0
        %485 = vmatpush1.msra.mxu0 %v263
        %486 = vmatprep.subr.mxu0 0.0
        %487 = vmatpush1.msra.mxu0 %v264
        %488 = vmatprep.subr.mxu0 0.0
        %489 = vmatpush1.msra.mxu0 %v468
        %490 = vmatprep.subr.mxu0 0.0
        %491 = vmatpush1.msra.mxu0 0.0
        %492 = vmatprep.subr.mxu0 0.0
        %493 = vmatpush1.msra.mxu0 0.0
        %494 = vmatprep.subr.mxu0 0.0
        %495 = vmatpush1.msra.mxu0 0.0
        %496 = vmatprep.subr.mxu0 0.0
        %497 = vmatpush1.msra.mxu0 0.0
        %498 = vmatprep.subr.mxu0 0.0
        %499 = vmatpush1.msra.mxu0 0.0
        %500 = vmatprep.subr.mxu0 0.0
        %501 = vmatpush1.msra.mxu0 0.0
        %502 = vmatprep.subr.mxu0 0.0
        %503 = vmatpush1.msra.mxu0 0.0
        %504 = vmatprep.subr.mxu0 0.0
        %505 = vmatpush1.msra.mxu0 0.0
        %506 = vmatprep.subr.mxu0 0.0
        %507 = vmatpush1.msra.mxu0 0.0
        %508 = vmatprep.subr.mxu0 0.0
        %509 = vmatpush1.msra.mxu0 0.0
        %510 = vmatprep.subr.mxu0 0.0
        %511 = vmatpush1.msra.mxu0 0.0
        %512 = vmatprep.subr.mxu0 0.0
        %513 = vmatpush1.msra.mxu0 0.0
        %514 = vmatprep.subr.mxu0 0.0
        %515 = vmatpush1.msra.mxu0 0.0
        %516 = vmatprep.subr.mxu0 0.0
        %517 = vmatpush1.msra.mxu0 0.0
        %518 = vmatprep.subr.mxu0 0.0
        %519 = vmatpush1.msra.mxu0 0.0
        %520 = vmatprep.subr.mxu0 0.0
        %521 = vmatpush1.msra.mxu0 0.0
        %522 = vmatprep.subr.mxu0 0.0
        %523 = vmatpush1.msra.mxu0 0.0
        %524 = vmatprep.subr.mxu0 0.0
        %525 = vmatpush1.msra.mxu0 0.0
        %526 = vmatprep.subr.mxu0 0.0
        %527 = vmatpush1.msra.mxu0 0.0
        %528 = vmatprep.subr.mxu0 0.0
        %529 = vmatpush1.msra.mxu0 0.0
        %530 = vmatprep.subr.mxu0 0.0
        %531 = vmatpush1.msra.mxu0 0.0
        %532 = vmatprep.subr.mxu0 0.0
        %533 = vmatpush1.msra.mxu0 0.0
        %534 = vmatprep.mubr.f32.mxu0 0.0
        %535 = vmatmul.mubr.f32.gmra.mrb[0].mxu0 %v275
        %v536 = vpop.f32.mrb[0].mxu0
        %v537 = vadd.f32 %v271, %v536
        %v538 = vpop.f32.mrb[0].mxu0
        %539 = vmatprep.mubr.f32.mxu0 0.0
        %540 = vmatmul.mubr.f32.gmra.mrb[0].mxu0 %v278
        %v541 = vpop.f32.mrb[0].mxu0
        %v542 = vadd.f32 %v271, %v541
        %v543 = vpop.f32.mrb[0].mxu0
        %544 = vmatprep.mubr.f32.mxu0 0.0
        %545 = vmatmul.mubr.f32.gmra.mrb[0].mxu0 %v281
        %v546 = vpop.f32.mrb[0].mxu0
        %v547 = vadd.f32 %v271, %v546
        %v548 = vpop.f32.mrb[0].mxu0
        %549 = vmatprep.mubr.f32.mxu0 0.0
        %550 = vmatmul.mubr.f32.gmra.mrb[0].mxu0 %v284
        %v551 = vpop.f32.mrb[0].mxu0
        %v552 = vadd.f32 %v271, %v551
        %v553 = vpop.f32.mrb[0].mxu0
        %554 = vmatprep.mubr.f32.mxu0 0.0
        %555 = vmatmul.mubr.f32.gmra.mrb[0].mxu0 %v287
        %v556 = vpop.f32.mrb[0].mxu0
        %v557 = vadd.f32 %v271, %v556
        %v558 = vpop.f32.mrb[0].mxu0
        %559 = vmatprep.mubr.f32.mxu0 0.0
        %560 = vmatmul.mubr.f32.gmra.mrb[0].mxu0 %v290
        %v561 = vpop.f32.mrb[0].mxu0
        %v562 = vadd.f32 %v271, %v561
        %v563 = vpop.f32.mrb[0].mxu0
        %564 = vmatprep.mubr.f32.mxu0 0.0
        %565 = vmatmul.mubr.f32.gmra.mrb[0].mxu0 %v293
        %v566 = vpop.f32.mrb[0].mxu0
        %v567 = vadd.f32 %v271, %v566
        %v568 = vpop.f32.mrb[0].mxu0
        %569 = vmatprep.mubr.f32.mxu0 0.0
        %570 = vmatmul.mubr.f32.gmra.mrb[0].mxu0 %v296
        %v571 = vpop.f32.mrb[0].mxu0
        %v572 = vadd.f32 %v271, %v571
        %v573 = vpop.f32.mrb[0].mxu0
        %574 = vmatprep.mubr.f32.mxu0 0.0
        %575 = vmatmul.mubr.f32.gmra.mrb[0].mxu0 %v299
        %v576 = vpop.f32.mrb[0].mxu0
        %v577 = vadd.f32 %v271, %v576
        %v578 = vpop.f32.mrb[0].mxu0
        %579 = vmatprep.mubr.f32.mxu0 0.0
        %580 = vmatmul.mubr.f32.gmra.mrb[0].mxu0 %v302
        %v581 = vpop.f32.mrb[0].mxu0
        %v582 = vadd.f32 %v271, %v581
        %v583 = vpop.f32.mrb[0].mxu0
        %584 = vmatprep.mubr.f32.mxu0 0.0
        %585 = vmatmul.mubr.f32.gmra.mrb[0].mxu0 %v305
        %v586 = vpop.f32.mrb[0].mxu0
        %v587 = vadd.f32 %v271, %v586
        %v588 = vpop.f32.mrb[0].mxu0
        %589 = vmatprep.mubr.f32.mxu0 0.0
        %590 = vmatmul.mubr.f32.gmra.mrb[0].mxu0 %v308
        %v591 = vpop.f32.mrb[0].mxu0
        %v592 = vadd.f32 %v271, %v591
        %v593 = vpop.f32.mrb[0].mxu0
        %594 = vmatprep.mubr.f32.mxu0 0.0
        %595 = vmatmul.mubr.f32.gmra.mrb[0].mxu0 %v311
        %v596 = vpop.f32.mrb[0].mxu0
        %v597 = vadd.f32 %v271, %v596
        %v598 = vpop.f32.mrb[0].mxu0
        %599 = vmatprep.mubr.f32.mxu0 0.0
        %600 = vmatmul.mubr.f32.gmra.mrb[0].mxu0 %v314
        %v601 = vpop.f32.mrb[0].mxu0
        %v602 = vadd.f32 %v271, %v601
        %v603 = vpop.f32.mrb[0].mxu0
        %604 = vmatprep.mubr.f32.mxu0 0.0
        %605 = vmatmul.mubr.f32.gmra.mrb[0].mxu0 %v317
        %v606 = vpop.f32.mrb[0].mxu0
        %v607 = vadd.f32 %v271, %v606
        %v608 = vpop.f32.mrb[0].mxu0
        %609 = vmatprep.mubr.f32.mxu0 0.0
        %610 = vmatmul.mubr.f32.gmra.mrb[0].mxu0 %v320
        %v611 = vpop.f32.mrb[0].mxu0
        %v612 = vadd.f32 %v271, %v611
        %v613 = vpop.f32.mrb[0].mxu0
        %614 = vmatprep.mubr.f32.mxu0 0.0
        %615 = vmatmul.mubr.f32.gmra.mrb[0].mxu0 %v323
        %v616 = vpop.f32.mrb[0].mxu0
        %v617 = vadd.f32 %v271, %v616
        %v618 = vpop.f32.mrb[0].mxu0
        %619 = vmatprep.mubr.f32.mxu0 0.0
        %620 = vmatmul.mubr.f32.gmra.mrb[0].mxu0 %v326
        %v621 = vpop.f32.mrb[0].mxu0
        %v622 = vadd.f32 %v271, %v621
        %v623 = vpop.f32.mrb[0].mxu0
        %624 = vmatprep.mubr.f32.mxu0 0.0
        %625 = vmatmul.mubr.f32.gmra.mrb[0].mxu0 %v329
        %v626 = vpop.f32.mrb[0].mxu0
        %v627 = vadd.f32 %v271, %v626
        %v628 = vpop.f32.mrb[0].mxu0
        %629 = vmatprep.mubr.f32.mxu0 0.0
        %630 = vmatmul.mubr.f32.gmra.mrb[0].mxu0 %v332
        %v631 = vpop.f32.mrb[0].mxu0
        %v632 = vadd.f32 %v271, %v631
        %v633 = vpop.f32.mrb[0].mxu0
        %634 = vmatprep.mubr.f32.mxu0 0.0
        %635 = vmatmul.mubr.f32.gmra.mrb[0].mxu0 %v335
        %v636 = vpop.f32.mrb[0].mxu0
        %v637 = vadd.f32 %v271, %v636
        %v638 = vpop.f32.mrb[0].mxu0
        %639 = vmatprep.mubr.f32.mxu0 0.0
        %640 = vmatmul.mubr.f32.gmra.mrb[0].mxu0 %v338
        %v641 = vpop.f32.mrb[0].mxu0
        %v642 = vadd.f32 %v271, %v641
        %v643 = vpop.f32.mrb[0].mxu0
        %644 = vmatprep.mubr.f32.mxu0 0.0
        %645 = vmatmul.mubr.f32.gmra.mrb[0].mxu0 %v341
        %v646 = vpop.f32.mrb[0].mxu0
        %v647 = vadd.f32 %v271, %v646
        %v648 = vpop.f32.mrb[0].mxu0
        %649 = vmatprep.mubr.f32.mxu0 0.0
        %650 = vmatmul.mubr.f32.gmra.mrb[0].mxu0 %v344
        %v651 = vpop.f32.mrb[0].mxu0
        %v652 = vadd.f32 %v271, %v651
        %v653 = vpop.f32.mrb[0].mxu0
        %654 = vmatprep.mubr.f32.mxu0 0.0
        %655 = vmatmul.mubr.f32.gmra.mrb[0].mxu0 %v347
        %v656 = vpop.f32.mrb[0].mxu0
        %v657 = vadd.f32 %v271, %v656
        %v658 = vpop.f32.mrb[0].mxu0
        %659 = vmatprep.mubr.f32.mxu0 0.0
        %660 = vmatmul.mubr.f32.gmra.mrb[0].mxu0 %v350
        %v661 = vpop.f32.mrb[0].mxu0
        %v662 = vadd.f32 %v271, %v661
        %v663 = vpop.f32.mrb[0].mxu0
        %664 = vmatprep.mubr.f32.mxu0 0.0
        %665 = vmatmul.mubr.f32.gmra.mrb[0].mxu0 %v353
        %v666 = vpop.f32.mrb[0].mxu0
        %v667 = vadd.f32 %v271, %v666
        %v668 = vpop.f32.mrb[0].mxu0
        %669 = vmatprep.mubr.f32.mxu0 0.0
        %670 = vmatmul.mubr.f32.gmra.mrb[0].mxu0 %v356
        %v671 = vpop.f32.mrb[0].mxu0
        %v672 = vadd.f32 %v271, %v671
        %v673 = vpop.f32.mrb[0].mxu0
        %674 = vmatprep.mubr.f32.mxu0 0.0
        %675 = vmatmul.mubr.f32.gmra.mrb[0].mxu0 %v359
        %v676 = vpop.f32.mrb[0].mxu0
        %v677 = vadd.f32 %v271, %v676
        %v678 = vpop.f32.mrb[0].mxu0
        %679 = vmatprep.mubr.f32.mxu0 0.0
        %680 = vmatmul.mubr.f32.gmra.mrb[0].mxu0 %v362
        %v681 = vpop.f32.mrb[0].mxu0
        %v682 = vadd.f32 %v271, %v681
        %v683 = vpop.f32.mrb[0].mxu0
        %684 = vmatprep.mubr.f32.mxu0 0.0
        %685 = vmatmul.mubr.f32.gmra.mrb[0].mxu0 %v365
        %v686 = vpop.f32.mrb[0].mxu0
        %v687 = vadd.f32 %v271, %v686
        %v688 = vpop.f32.mrb[0].mxu0
        %689 = vmatprep.mubr.f32.mxu0 0.0
        %690 = vmatmul.mubr.f32.gmra.mrb[0].mxu0 %v368
        %v691 = vpop.f32.mrb[0].mxu0
        %v692 = vadd.f32 %v271, %v691
        %v693 = vpop.f32.mrb[0].mxu0
        %694 = vmatprep.mubr.f32.mxu0 0.0
        %695 = vmatmul.mubr.f32.gmra.mrb[0].mxu0 %v371
        %v696 = vpop.f32.mrb[0].mxu0
        %v697 = vadd.f32 %v271, %v696
        %v698 = vpop.f32.mrb[0].mxu0
        %699 = vmatprep.mubr.f32.mxu0 0.0
        %700 = vmatmul.mubr.f32.gmra.mrb[0].mxu0 %v374
        %v701 = vpop.f32.mrb[0].mxu0
        %v702 = vadd.f32 %v271, %v701
        %v703 = vpop.f32.mrb[0].mxu0
        %704 = vmatprep.mubr.f32.mxu0 0.0
        %705 = vmatmul.mubr.f32.gmra.mrb[0].mxu0 %v377
        %v706 = vpop.f32.mrb[0].mxu0
        %v707 = vadd.f32 %v271, %v706
        %v708 = vpop.f32.mrb[0].mxu0
        %709 = vmatprep.mubr.f32.mxu0 0.0
        %710 = vmatmul.mubr.f32.gmra.mrb[0].mxu0 %v380
        %v711 = vpop.f32.mrb[0].mxu0
        %v712 = vadd.f32 %v271, %v711
        %v713 = vpop.f32.mrb[0].mxu0
        %714 = vmatprep.mubr.f32.mxu0 0.0
        %715 = vmatmul.mubr.f32.gmra.mrb[0].mxu0 %v383
        %v716 = vpop.f32.mrb[0].mxu0
        %v717 = vadd.f32 %v271, %v716
        %v718 = vpop.f32.mrb[0].mxu0
        %719 = vmatprep.mubr.f32.mxu0 0.0
        %720 = vmatmul.mubr.f32.gmra.mrb[0].mxu0 %v386
        %v721 = vpop.f32.mrb[0].mxu0
        %v722 = vadd.f32 %v271, %v721
        %v723 = vpop.f32.mrb[0].mxu0
        %724 = vmatprep.mubr.f32.mxu0 0.0
        %725 = vmatmul.mubr.f32.gmra.mrb[0].mxu0 %v389
        %v726 = vpop.f32.mrb[0].mxu0
        %v727 = vadd.f32 %v271, %v726
        %v728 = vpop.f32.mrb[0].mxu0
        %729 = vmatprep.mubr.f32.mxu0 0.0
        %730 = vmatmul.mubr.f32.gmra.mrb[0].mxu0 %v392
        %v731 = vpop.f32.mrb[0].mxu0
        %v732 = vadd.f32 %v271, %v731
        %v733 = vpop.f32.mrb[0].mxu0
        %734 = vmatprep.mubr.f32.mxu0 0.0
        %735 = vmatmul.mubr.f32.gmra.mrb[0].mxu0 %v395
        %v736 = vpop.f32.mrb[0].mxu0
        %v737 = vadd.f32 %v271, %v736
        %v738 = vpop.f32.mrb[0].mxu0
        %739 = vmatprep.mubr.f32.mxu0 0.0
        %740 = vmatmul.mubr.f32.gmra.mrb[0].mxu0 %v398
        %v741 = vpop.f32.mrb[0].mxu0
        %v742 = vadd.f32 %v271, %v741
        %v743 = vpop.f32.mrb[0].mxu0
        %744 = vmatprep.mubr.f32.mxu0 0.0
        %745 = vmatmul.mubr.f32.gmra.mrb[0].mxu0 %v401
        %v746 = vpop.f32.mrb[0].mxu0
        %v747 = vadd.f32 %v271, %v746
        %v748 = vpop.f32.mrb[0].mxu0
        %749 = vmatprep.mubr.f32.mxu0 0.0
        %750 = vmatmul.mubr.f32.gmra.mrb[0].mxu0 %v404
        %v751 = vpop.f32.mrb[0].mxu0
        %v752 = vadd.f32 %v271, %v751
        %v753 = vpop.f32.mrb[0].mxu0
        %754 = vmatprep.mubr.f32.mxu0 0.0
        %755 = vmatmul.mubr.f32.gmra.mrb[0].mxu0 %v407
        %v756 = vpop.f32.mrb[0].mxu0
        %v757 = vadd.f32 %v271, %v756
        %v758 = vpop.f32.mrb[0].mxu0
        %759 = vmatprep.mubr.f32.mxu0 0.0
        %760 = vmatmul.mubr.f32.gmra.mrb[0].mxu0 %v410
        %v761 = vpop.f32.mrb[0].mxu0
        %v762 = vadd.f32 %v271, %v761
        %v763 = vpop.f32.mrb[0].mxu0
        %764 = vmatprep.mubr.f32.mxu0 0.0
        %765 = vmatmul.mubr.f32.gmra.mrb[0].mxu0 %v413
        %v766 = vpop.f32.mrb[0].mxu0
        %v767 = vadd.f32 %v271, %v766
        %v768 = vpop.f32.mrb[0].mxu0
        %769 = vmatprep.mubr.f32.mxu0 0.0
        %770 = vmatmul.mubr.f32.gmra.mrb[0].mxu0 %v416
        %v771 = vpop.f32.mrb[0].mxu0
        %v772 = vadd.f32 %v271, %v771
        %v773 = vpop.f32.mrb[0].mxu0
        %774 = vmatprep.mubr.f32.mxu0 0.0
        %775 = vmatmul.mubr.f32.gmra.mrb[0].mxu0 %v419
        %v776 = vpop.f32.mrb[0].mxu0
        %v777 = vadd.f32 %v271, %v776
        %v778 = vpop.f32.mrb[0].mxu0
        %779 = vmatprep.mubr.f32.mxu0 0.0
        %780 = vmatmul.mubr.f32.gmra.mrb[0].mxu0 %v422
        %v781 = vpop.f32.mrb[0].mxu0
        %v782 = vadd.f32 %v271, %v781
        %v783 = vpop.f32.mrb[0].mxu0
        %784 = vmatprep.mubr.f32.mxu0 0.0
        %785 = vmatmul.mubr.f32.gmra.mrb[0].mxu0 %v425
        %v786 = vpop.f32.mrb[0].mxu0
        %v787 = vadd.f32 %v271, %v786
        %v788 = vpop.f32.mrb[0].mxu0
        %789 = vmatprep.mubr.f32.mxu0 0.0
        %790 = vmatmul.mubr.f32.gmra.mrb[0].mxu0 %v428
        %v791 = vpop.f32.mrb[0].mxu0
        %v792 = vadd.f32 %v271, %v791
        %v793 = vpop.f32.mrb[0].mxu0
        %794 = vmatprep.mubr.f32.mxu0 0.0
        %795 = vmatmul.mubr.f32.gmra.mrb[0].mxu0 %v431
        %v796 = vpop.f32.mrb[0].mxu0
        %v797 = vadd.f32 %v271, %v796
        %v798 = vpop.f32.mrb[0].mxu0
        %799 = vmatprep.mubr.f32.mxu0 0.0
        %800 = vmatmul.mubr.f32.gmra.mrb[0].mxu0 %v434
        %v801 = vpop.f32.mrb[0].mxu0
        %v802 = vadd.f32 %v271, %v801
        %v803 = vpop.f32.mrb[0].mxu0
        %804 = vmatprep.mubr.f32.mxu0 0.0
        %805 = vmatmul.mubr.f32.gmra.mrb[0].mxu0 %v437
        %v806 = vpop.f32.mrb[0].mxu0
        %v807 = vadd.f32 %v271, %v806
        %v808 = vpop.f32.mrb[0].mxu0
        %809 = vmatprep.mubr.f32.mxu0 0.0
        %810 = vmatmul.mubr.f32.gmra.mrb[0].mxu0 %v440
        %v811 = vpop.f32.mrb[0].mxu0
        %v812 = vadd.f32 %v271, %v811
        %v813 = vpop.f32.mrb[0].mxu0
        %814 = vmatprep.mubr.f32.mxu0 0.0
        %815 = vmatmul.mubr.f32.gmra.mrb[0].mxu0 %v443
        %v816 = vpop.f32.mrb[0].mxu0
        %v817 = vadd.f32 %v271, %v816
        %v818 = vpop.f32.mrb[0].mxu0
        %819 = vmatprep.mubr.f32.mxu0 0.0
        %820 = vmatmul.mubr.f32.gmra.mrb[0].mxu0 %v446
        %v821 = vpop.f32.mrb[0].mxu0
        %v822 = vadd.f32 %v271, %v821
        %v823 = vpop.f32.mrb[0].mxu0
        %824 = vmatprep.mubr.f32.mxu0 0.0
        %825 = vmatmul.mubr.f32.gmra.mrb[0].mxu0 %v449
        %v826 = vpop.f32.mrb[0].mxu0
        %v827 = vadd.f32 %v271, %v826
        %v828 = vpop.f32.mrb[0].mxu0
        %829 = vmatprep.mubr.f32.mxu0 0.0
        %830 = vmatmul.mubr.f32.gmra.mrb[0].mxu0 %v452
        %v831 = vpop.f32.mrb[0].mxu0
        %v832 = vadd.f32 %v271, %v831
        %v833 = vpop.f32.mrb[0].mxu0
        %834 = vmatprep.mubr.f32.mxu0 0.0
        %835 = vmatmul.mubr.f32.gmra.mrb[0].mxu0 %v455
        %v836 = vpop.f32.mrb[0].mxu0
        %v837 = vadd.f32 %v271, %v836
        %v838 = vpop.f32.mrb[0].mxu0
        %839 = vmatprep.mubr.f32.mxu0 0.0
        %840 = vmatmul.mubr.f32.gmra.mrb[0].mxu0 %v458
        %v841 = vpop.f32.mrb[0].mxu0
        %v842 = vadd.f32 %v271, %v841
        %v843 = vpop.f32.mrb[0].mxu0
        %844 = vmatprep.mubr.f32.mxu0 0.0
        %845 = vmatmul.mubr.f32.gmra.mrb[0].mxu0 %v461
        %v846 = vpop.f32.mrb[0].mxu0
        %v847 = vadd.f32 %v271, %v846
        %v848 = vpop.f32.mrb[0].mxu0
        %849 = vmatprep.mubr.f32.mxu0 0.0
        %850 = vmatmul.mubr.f32.gmra.mrb[0].mxu0 %v464
        %v851 = vpop.f32.mrb[0].mxu0
        %v852 = vadd.f32 %v271, %v851
        %v853 = vpop.f32.mrb[0].mxu0
        %854 = vdwg.mxu0
        %v855 = vmul.f32 %v537, 0.029569034
        %v856 = vmul.f32 %v542, 0.029569034
        %v857 = vmul.f32 %v547, 0.029569034
        %v858 = vmul.f32 %v552, 0.029569034
        %v859 = vmul.f32 %v557, 0.029569034
        %v860 = vmul.f32 %v562, 0.029569034
        %v861 = vmul.f32 %v567, 0.029569034
        %v862 = vmul.f32 %v572, 0.029569034
        %v863 = vmul.f32 %v577, 0.029569034
        %v864 = vmul.f32 %v582, 0.029569034
        %v865 = vmul.f32 %v587, 0.029569034
        %v866 = vmul.f32 %v592, 0.029569034
        %v867 = vmul.f32 %v597, 0.029569034
        %v868 = vmul.f32 %v602, 0.029569034
        %v869 = vmul.f32 %v607, 0.029569034
        %v870 = vmul.f32 %v612, 0.029569034
        %v871 = vmul.f32 %v617, 0.029569034
        %v872 = vmul.f32 %v622, 0.029569034
        %v873 = vmul.f32 %v627, 0.029569034
        %v874 = vmul.f32 %v632, 0.029569034
        %v875 = vmul.f32 %v637, 0.029569034
        %v876 = vmul.f32 %v642, 0.029569034
        %v877 = vmul.f32 %v647, 0.029569034
        %v878 = vmul.f32 %v652, 0.029569034
        %v879 = vmul.f32 %v657, 0.029569034
        %v880 = vmul.f32 %v662, 0.029569034
        %v881 = vmul.f32 %v667, 0.029569034
        %v882 = vmul.f32 %v672, 0.029569034
        %v883 = vmul.f32 %v677, 0.029569034
        %v884 = vmul.f32 %v682, 0.029569034
        %v885 = vmul.f32 %v687, 0.029569034
        %v886 = vmul.f32 %v692, 0.029569034
        %v887 = vmul.f32 %v697, 0.029569034
        %v888 = vmul.f32 %v702, 0.029569034
        %v889 = vmul.f32 %v707, 0.029569034
        %v890 = vmul.f32 %v712, 0.029569034
        %v891 = vmul.f32 %v717, 0.029569034
        %v892 = vmul.f32 %v722, 0.029569034
        %v893 = vmul.f32 %v727, 0.029569034
        %v894 = vmul.f32 %v732, 0.029569034
        %v895 = vmul.f32 %v737, 0.029569034
        %v896 = vmul.f32 %v742, 0.029569034
        %v897 = vmul.f32 %v747, 0.029569034
        %v898 = vmul.f32 %v752, 0.029569034
        %v899 = vmul.f32 %v757, 0.029569034
        %v900 = vmul.f32 %v762, 0.029569034
        %v901 = vmul.f32 %v767, 0.029569034
        %v902 = vmul.f32 %v772, 0.029569034
        %v903 = vmul.f32 %v777, 0.029569034
        %v904 = vmul.f32 %v782, 0.029569034
        %v905 = vmul.f32 %v787, 0.029569034
        %v906 = vmul.f32 %v792, 0.029569034
        %v907 = vmul.f32 %v797, 0.029569034
        %v908 = vmul.f32 %v802, 0.029569034
        %v909 = vmul.f32 %v807, 0.029569034
        %v910 = vmul.f32 %v812, 0.029569034
        %v911 = vmul.f32 %v817, 0.029569034
        %v912 = vmul.f32 %v822, 0.029569034
        %v913 = vmul.f32 %v827, 0.029569034
        %v914 = vmul.f32 %v832, 0.029569034
        %v915 = vmul.f32 %v837, 0.029569034
        %v916 = vmul.f32 %v842, 0.029569034
        %v917 = vmul.f32 %v847, 0.029569034
        %v918 = vmul.f32 %v852, 0.029569034
        %v919 = vmax.f32 %v855, 0.0
        %v920 = vmax.f32 %v856, 0.0
        %v921 = vmax.f32 %v857, 0.0
        %v922 = vmax.f32 %v858, 0.0
        %v923 = vmax.f32 %v859, 0.0
        %v924 = vmax.f32 %v860, 0.0
        %v925 = vmax.f32 %v861, 0.0
        %v926 = vmax.f32 %v862, 0.0
        %v927 = vmax.f32 %v863, 0.0
        %v928 = vmax.f32 %v864, 0.0
        %v929 = vmax.f32 %v865, 0.0
        %v930 = vmax.f32 %v866, 0.0
        %v931 = vmax.f32 %v867, 0.0
        %v932 = vmax.f32 %v868, 0.0
        %v933 = vmax.f32 %v869, 0.0
        %v934 = vmax.f32 %v870, 0.0
        %v935 = vmax.f32 %v871, 0.0
        %v936 = vmax.f32 %v872, 0.0
        %v937 = vmax.f32 %v873, 0.0
        %v938 = vmax.f32 %v874, 0.0
        %v939 = vmax.f32 %v875, 0.0
        %v940 = vmax.f32 %v876, 0.0
        %v941 = vmax.f32 %v877, 0.0
        %v942 = vmax.f32 %v878, 0.0
        %v943 = vmax.f32 %v879, 0.0
        %v944 = vmax.f32 %v880, 0.0
        %v945 = vmax.f32 %v881, 0.0
        %v946 = vmax.f32 %v882, 0.0
        %v947 = vmax.f32 %v883, 0.0
        %v948 = vmax.f32 %v884, 0.0
        %v949 = vmax.f32 %v885, 0.0
        %v950 = vmax.f32 %v886, 0.0
        %v951 = vmax.f32 %v887, 0.0
        %v952 = vmax.f32 %v888, 0.0
        %v953 = vmax.f32 %v889, 0.0
        %v954 = vmax.f32 %v890, 0.0
        %v955 = vmax.f32 %v891, 0.0
        %v956 = vmax.f32 %v892, 0.0
        %v957 = vmax.f32 %v893, 0.0
        %v958 = vmax.f32 %v894, 0.0
        %v959 = vmax.f32 %v895, 0.0
        %v960 = vmax.f32 %v896, 0.0
        %v961 = vmax.f32 %v897, 0.0
        %v962 = vmax.f32 %v898, 0.0
        %v963 = vmax.f32 %v899, 0.0
        %v964 = vmax.f32 %v900, 0.0
        %v965 = vmax.f32 %v901, 0.0
        %v966 = vmax.f32 %v902, 0.0
        %v967 = vmax.f32 %v903, 0.0
        %v968 = vmax.f32 %v904, 0.0
        %v969 = vmax.f32 %v905, 0.0
        %v970 = vmax.f32 %v906, 0.0
        %v971 = vmax.f32 %v907, 0.0
        %v972 = vmax.f32 %v908, 0.0
        %v973 = vmax.f32 %v909, 0.0
        %v974 = vmax.f32 %v910, 0.0
        %v975 = vmax.f32 %v911, 0.0
        %v976 = vmax.f32 %v912, 0.0
        %v977 = vmax.f32 %v913, 0.0
        %v978 = vmax.f32 %v914, 0.0
        %v979 = vmax.f32 %v915, 0.0
        %v980 = vmax.f32 %v916, 0.0
        %v981 = vmax.f32 %v917, 0.0
        %v982 = vmax.f32 %v918, 0.0
        %vm983 = vcmask 48128
        %984 = vst.msk [vmem:[%s172] sm:$0xff] %vm983, %v919
        %985 = vst.msk [vmem:[%s172 + $0x8] sm:$0xff] %vm983, %v920
        %986 = vst.msk [vmem:[%s172 + $0x10] sm:$0xff] %vm983, %v921
        %987 = vst.msk [vmem:[%s172 + $0x18] sm:$0xff] %vm983, %v922
        %988 = vst.msk [vmem:[%s172 + $0x20] sm:$0xff] %vm983, %v923
        %989 = vst.msk [vmem:[%s172 + $0x28] sm:$0xff] %vm983, %v924
        %990 = vst.msk [vmem:[%s172 + $0x30] sm:$0xff] %vm983, %v925
        %991 = vst.msk [vmem:[%s172 + $0x38] sm:$0xff] %vm983, %v926
        %992 = vst.msk [vmem:[%s172 + $0x40] sm:$0xff] %vm983, %v927
        %993 = vst.msk [vmem:[%s172 + $0x48] sm:$0xff] %vm983, %v928
        %994 = vst.msk [vmem:[%s172 + $0x50] sm:$0xff] %vm983, %v929
        %995 = vst.msk [vmem:[%s172 + $0x58] sm:$0xff] %vm983, %v930
        %996 = vst.msk [vmem:[%s172 + $0x60] sm:$0xff] %vm983, %v931
        %997 = vst.msk [vmem:[%s172 + $0x68] sm:$0xff] %vm983, %v932
        %998 = vst.msk [vmem:[%s172 + $0x70] sm:$0xff] %vm983, %v933
        %999 = vst.msk [vmem:[%s172 + $0x78] sm:$0xff] %vm983, %v934
        %1000 = vst.msk [vmem:[%s172 + $0x80] sm:$0xff] %vm983, %v935
        %1001 = vst.msk [vmem:[%s172 + $0x88] sm:$0xff] %vm983, %v936
        %1002 = vst.msk [vmem:[%s172 + $0x90] sm:$0xff] %vm983, %v937
        %1003 = vst.msk [vmem:[%s172 + $0x98] sm:$0xff] %vm983, %v938
        %1004 = vst.msk [vmem:[%s172 + $0xa0] sm:$0xff] %vm983, %v939
        %1005 = vst.msk [vmem:[%s172 + $0xa8] sm:$0xff] %vm983, %v940
        %1006 = vst.msk [vmem:[%s172 + $0xb0] sm:$0xff] %vm983, %v941
        %1007 = vst.msk [vmem:[%s172 + $0xb8] sm:$0xff] %vm983, %v942
        %1008 = vst.msk [vmem:[%s172 + $0xc0] sm:$0xff] %vm983, %v943
        %1009 = vst.msk [vmem:[%s172 + $0xc8] sm:$0xff] %vm983, %v944
        %1010 = vst.msk [vmem:[%s172 + $0xd0] sm:$0xff] %vm983, %v945
        %1011 = vst.msk [vmem:[%s172 + $0xd8] sm:$0xff] %vm983, %v946
        %1012 = vst.msk [vmem:[%s172 + $0xe0] sm:$0xff] %vm983, %v947
        %1013 = vst.msk [vmem:[%s172 + $0xe8] sm:$0xff] %vm983, %v948
        %1014 = vst.msk [vmem:[%s172 + $0xf0] sm:$0xff] %vm983, %v949
        %1015 = vst.msk [vmem:[%s172 + $0xf8] sm:$0xff] %vm983, %v950
        %1016 = vst.msk [vmem:[%s172 + $0x100] sm:$0xff] %vm983, %v951
        %1017 = vst.msk [vmem:[%s172 + $0x108] sm:$0xff] %vm983, %v952
        %1018 = vst.msk [vmem:[%s172 + $0x110] sm:$0xff] %vm983, %v953
        %1019 = vst.msk [vmem:[%s172 + $0x118] sm:$0xff] %vm983, %v954
        %1020 = vst.msk [vmem:[%s172 + $0x120] sm:$0xff] %vm983, %v955
        %1021 = vst.msk [vmem:[%s172 + $0x128] sm:$0xff] %vm983, %v956
        %1022 = vst.msk [vmem:[%s172 + $0x130] sm:$0xff] %vm983, %v957
        %1023 = vst.msk [vmem:[%s172 + $0x138] sm:$0xff] %vm983, %v958
        %1024 = vst.msk [vmem:[%s172 + $0x140] sm:$0xff] %vm983, %v959
        %1025 = vst.msk [vmem:[%s172 + $0x148] sm:$0xff] %vm983, %v960
        %1026 = vst.msk [vmem:[%s172 + $0x150] sm:$0xff] %vm983, %v961
        %1027 = vst.msk [vmem:[%s172 + $0x158] sm:$0xff] %vm983, %v962
        %1028 = vst.msk [vmem:[%s172 + $0x160] sm:$0xff] %vm983, %v963
        %1029 = vst.msk [vmem:[%s172 + $0x168] sm:$0xff] %vm983, %v964
        %1030 = vst.msk [vmem:[%s172 + $0x170] sm:$0xff] %vm983, %v965
        %1031 = vst.msk [vmem:[%s172 + $0x178] sm:$0xff] %vm983, %v966
        %1032 = vst.msk [vmem:[%s172 + $0x180] sm:$0xff] %vm983, %v967
        %1033 = vst.msk [vmem:[%s172 + $0x188] sm:$0xff] %vm983, %v968
        %1034 = vst.msk [vmem:[%s172 + $0x190] sm:$0xff] %vm983, %v969
        %1035 = vst.msk [vmem:[%s172 + $0x198] sm:$0xff] %vm983, %v970
        %1036 = vst.msk [vmem:[%s172 + $0x1a0] sm:$0xff] %vm983, %v971
        %1037 = vst.msk [vmem:[%s172 + $0x1a8] sm:$0xff] %vm983, %v972
        %1038 = vst.msk [vmem:[%s172 + $0x1b0] sm:$0xff] %vm983, %v973
        %1039 = vst.msk [vmem:[%s172 + $0x1b8] sm:$0xff] %vm983, %v974
        %1040 = vst.msk [vmem:[%s172 + $0x1c0] sm:$0xff] %vm983, %v975
        %1041 = vst.msk [vmem:[%s172 + $0x1c8] sm:$0xff] %vm983, %v976
        %1042 = vst.msk [vmem:[%s172 + $0x1d0] sm:$0xff] %vm983, %v977
        %1043 = vst.msk [vmem:[%s172 + $0x1d8] sm:$0xff] %vm983, %v978
        %1044 = vst.msk [vmem:[%s172 + $0x1e0] sm:$0xff] %vm983, %v979
        %1045 = vst.msk [vmem:[%s172 + $0x1e8] sm:$0xff] %vm983, %v980
        %1046 = vst.msk [vmem:[%s172 + $0x1f0] sm:$0xff] %vm983, %v981
        %1047 = vst.msk [vmem:[%s172 + $0x1f8] sm:$0xff] %vm983, %v982
        %s1048 = sand.u32 %s90, 1
        %s1049 = sand.u32 %s90, 1
        %s1050 = smul.addr %s1049, 512
        %s1051 = scalar_lea.vmem [#allocation2], %s1050
        // Predicated region
        $region33: #{cifar_dend_conv_forward.5} parent=31 // pred_check
          %p1052 = pneg %p100
        $region34: #{cifar_dend_conv_forward.5} parent=31 // pred_check_branch
          %1054 = sbr.rel (%p1052) target = $region36
        $region35: #{cifar_dend_conv_forward.5} parent=31 // pred_region
          %s1055 = smul.u32 64, %s14
          %s1056 = ssub.s32 196, %s1055
          %p1057 = scmp.lt.s32.totalorder %s1056, 64
          %s1058 = scalar_select %p1057, %s1056, 64
          %s1059 = smul.u32 128, %s1058
          %p1060 = scmp.ne.s32.totalorder 0, %s1059
          %s1061 = smul.addr %s1055, 8
          %s1062 = scalar_lea.vmem %s3, %s1061
          // Predicated region
          $region37: #{cifar_dend_conv_forward.5} parent=35 // pred_check
            %p1063 = pneg %p1060
          $region38: #{cifar_dend_conv_forward.5} parent=35 // pred_check_branch
            %1065 = sbr.rel (%p1063) target = $region40
          $region39: #{cifar_dend_conv_forward.5} parent=35 // pred_region
            // Predicated region
            $region41: #{cifar_dend_conv_forward.5} parent=39 // pred_check
              _
            $region42: #{cifar_dend_conv_forward.5} parent=39 // pred_check_branch
              %1067 = sbr.rel (0) target = $region44
            $region43: #{cifar_dend_conv_forward.5} parent=39 // pred_region
              // Predicated region
              $region63: #{cifar_dend_conv_forward.5} parent=43 // pred_check
                _
              $region64: #{cifar_dend_conv_forward.5} parent=43 // pred_check_branch
                %1242 = sbr.rel (0) target = $region66
              $region65: #{cifar_dend_conv_forward.5} parent=43 // pred_region
                %s1243 = sshrl.u32 %s1058, 6
                // While loop
                $region67: #{cifar_dend_conv_forward.5} parent=65 // loop_pre_header
                  _
                $region68: #{cifar_dend_conv_forward.5} parent=65 // loop_header
                  %s1245 = sphi 0, %s1247
                  %p1246 = scmp.ge.s32.totalorder %s1245, %s1243
                  %s1250 = sphi 0, %s1383
                  %s1251 = sphi %s1051, %s1386
                  %s1252 = sphi %s1062, %s1387
                $region69: #{cifar_dend_conv_forward.5} parent=65 // loop_header_branch
                  %1249 = sbr.rel (%p1246) target = $region73
                $region70: #{cifar_dend_conv_forward.5} parent=65 // loop_body
                  %v1253 = vld [vmem:[%s1251] sm:$0xff]
                  %1254 = vst [vmem:[%s1252] sm:$0xff] %v1253
                  %v1255 = vld [vmem:[%s1251 + $0x8] sm:$0xff]
                  %1256 = vst [vmem:[%s1252 + $0x8] sm:$0xff] %v1255
                  %v1257 = vld [vmem:[%s1251 + $0x10] sm:$0xff]
                  %1258 = vst [vmem:[%s1252 + $0x10] sm:$0xff] %v1257
                  %v1259 = vld [vmem:[%s1251 + $0x18] sm:$0xff]
                  %1260 = vst [vmem:[%s1252 + $0x18] sm:$0xff] %v1259
                  %v1261 = vld [vmem:[%s1251 + $0x20] sm:$0xff]
                  %1262 = vst [vmem:[%s1252 + $0x20] sm:$0xff] %v1261
                  %v1263 = vld [vmem:[%s1251 + $0x28] sm:$0xff]
                  %1264 = vst [vmem:[%s1252 + $0x28] sm:$0xff] %v1263
                  %v1265 = vld [vmem:[%s1251 + $0x30] sm:$0xff]
                  %1266 = vst [vmem:[%s1252 + $0x30] sm:$0xff] %v1265
                  %v1267 = vld [vmem:[%s1251 + $0x38] sm:$0xff]
                  %1268 = vst [vmem:[%s1252 + $0x38] sm:$0xff] %v1267
                  %v1269 = vld [vmem:[%s1251 + $0x40] sm:$0xff]
                  %1270 = vst [vmem:[%s1252 + $0x40] sm:$0xff] %v1269
                  %v1271 = vld [vmem:[%s1251 + $0x48] sm:$0xff]
                  %1272 = vst [vmem:[%s1252 + $0x48] sm:$0xff] %v1271
                  %v1273 = vld [vmem:[%s1251 + $0x50] sm:$0xff]
                  %1274 = vst [vmem:[%s1252 + $0x50] sm:$0xff] %v1273
                  %v1275 = vld [vmem:[%s1251 + $0x58] sm:$0xff]
                  %1276 = vst [vmem:[%s1252 + $0x58] sm:$0xff] %v1275
                  %v1277 = vld [vmem:[%s1251 + $0x60] sm:$0xff]
                  %1278 = vst [vmem:[%s1252 + $0x60] sm:$0xff] %v1277
                  %v1279 = vld [vmem:[%s1251 + $0x68] sm:$0xff]
                  %1280 = vst [vmem:[%s1252 + $0x68] sm:$0xff] %v1279
                  %v1281 = vld [vmem:[%s1251 + $0x70] sm:$0xff]
                  %1282 = vst [vmem:[%s1252 + $0x70] sm:$0xff] %v1281
                  %v1283 = vld [vmem:[%s1251 + $0x78] sm:$0xff]
                  %1284 = vst [vmem:[%s1252 + $0x78] sm:$0xff] %v1283
                  %v1285 = vld [vmem:[%s1251 + $0x80] sm:$0xff]
                  %1286 = vst [vmem:[%s1252 + $0x80] sm:$0xff] %v1285
                  %v1287 = vld [vmem:[%s1251 + $0x88] sm:$0xff]
                  %1288 = vst [vmem:[%s1252 + $0x88] sm:$0xff] %v1287
                  %v1289 = vld [vmem:[%s1251 + $0x90] sm:$0xff]
                  %1290 = vst [vmem:[%s1252 + $0x90] sm:$0xff] %v1289
                  %v1291 = vld [vmem:[%s1251 + $0x98] sm:$0xff]
                  %1292 = vst [vmem:[%s1252 + $0x98] sm:$0xff] %v1291
                  %v1293 = vld [vmem:[%s1251 + $0xa0] sm:$0xff]
                  %1294 = vst [vmem:[%s1252 + $0xa0] sm:$0xff] %v1293
                  %v1295 = vld [vmem:[%s1251 + $0xa8] sm:$0xff]
                  %1296 = vst [vmem:[%s1252 + $0xa8] sm:$0xff] %v1295
                  %v1297 = vld [vmem:[%s1251 + $0xb0] sm:$0xff]
                  %1298 = vst [vmem:[%s1252 + $0xb0] sm:$0xff] %v1297
                  %v1299 = vld [vmem:[%s1251 + $0xb8] sm:$0xff]
                  %1300 = vst [vmem:[%s1252 + $0xb8] sm:$0xff] %v1299
                  %v1301 = vld [vmem:[%s1251 + $0xc0] sm:$0xff]
                  %1302 = vst [vmem:[%s1252 + $0xc0] sm:$0xff] %v1301
                  %v1303 = vld [vmem:[%s1251 + $0xc8] sm:$0xff]
                  %1304 = vst [vmem:[%s1252 + $0xc8] sm:$0xff] %v1303
                  %v1305 = vld [vmem:[%s1251 + $0xd0] sm:$0xff]
                  %1306 = vst [vmem:[%s1252 + $0xd0] sm:$0xff] %v1305
                  %v1307 = vld [vmem:[%s1251 + $0xd8] sm:$0xff]
                  %1308 = vst [vmem:[%s1252 + $0xd8] sm:$0xff] %v1307
                  %v1309 = vld [vmem:[%s1251 + $0xe0] sm:$0xff]
                  %1310 = vst [vmem:[%s1252 + $0xe0] sm:$0xff] %v1309
                  %v1311 = vld [vmem:[%s1251 + $0xe8] sm:$0xff]
                  %1312 = vst [vmem:[%s1252 + $0xe8] sm:$0xff] %v1311
                  %v1313 = vld [vmem:[%s1251 + $0xf0] sm:$0xff]
                  %1314 = vst [vmem:[%s1252 + $0xf0] sm:$0xff] %v1313
                  %v1315 = vld [vmem:[%s1251 + $0xf8] sm:$0xff]
                  %1316 = vst [vmem:[%s1252 + $0xf8] sm:$0xff] %v1315
                  %v1317 = vld [vmem:[%s1251 + $0x100] sm:$0xff]
                  %1318 = vst [vmem:[%s1252 + $0x100] sm:$0xff] %v1317
                  %v1319 = vld [vmem:[%s1251 + $0x108] sm:$0xff]
                  %1320 = vst [vmem:[%s1252 + $0x108] sm:$0xff] %v1319
                  %v1321 = vld [vmem:[%s1251 + $0x110] sm:$0xff]
                  %1322 = vst [vmem:[%s1252 + $0x110] sm:$0xff] %v1321
                  %v1323 = vld [vmem:[%s1251 + $0x118] sm:$0xff]
                  %1324 = vst [vmem:[%s1252 + $0x118] sm:$0xff] %v1323
                  %v1325 = vld [vmem:[%s1251 + $0x120] sm:$0xff]
                  %1326 = vst [vmem:[%s1252 + $0x120] sm:$0xff] %v1325
                  %v1327 = vld [vmem:[%s1251 + $0x128] sm:$0xff]
                  %1328 = vst [vmem:[%s1252 + $0x128] sm:$0xff] %v1327
                  %v1329 = vld [vmem:[%s1251 + $0x130] sm:$0xff]
                  %1330 = vst [vmem:[%s1252 + $0x130] sm:$0xff] %v1329
                  %v1331 = vld [vmem:[%s1251 + $0x138] sm:$0xff]
                  %1332 = vst [vmem:[%s1252 + $0x138] sm:$0xff] %v1331
                  %v1333 = vld [vmem:[%s1251 + $0x140] sm:$0xff]
                  %1334 = vst [vmem:[%s1252 + $0x140] sm:$0xff] %v1333
                  %v1335 = vld [vmem:[%s1251 + $0x148] sm:$0xff]
                  %1336 = vst [vmem:[%s1252 + $0x148] sm:$0xff] %v1335
                  %v1337 = vld [vmem:[%s1251 + $0x150] sm:$0xff]
                  %1338 = vst [vmem:[%s1252 + $0x150] sm:$0xff] %v1337
                  %v1339 = vld [vmem:[%s1251 + $0x158] sm:$0xff]
                  %1340 = vst [vmem:[%s1252 + $0x158] sm:$0xff] %v1339
                  %v1341 = vld [vmem:[%s1251 + $0x160] sm:$0xff]
                  %1342 = vst [vmem:[%s1252 + $0x160] sm:$0xff] %v1341
                  %v1343 = vld [vmem:[%s1251 + $0x168] sm:$0xff]
                  %1344 = vst [vmem:[%s1252 + $0x168] sm:$0xff] %v1343
                  %v1345 = vld [vmem:[%s1251 + $0x170] sm:$0xff]
                  %1346 = vst [vmem:[%s1252 + $0x170] sm:$0xff] %v1345
                  %v1347 = vld [vmem:[%s1251 + $0x178] sm:$0xff]
                  %1348 = vst [vmem:[%s1252 + $0x178] sm:$0xff] %v1347
                  %v1349 = vld [vmem:[%s1251 + $0x180] sm:$0xff]
                  %1350 = vst [vmem:[%s1252 + $0x180] sm:$0xff] %v1349
                  %v1351 = vld [vmem:[%s1251 + $0x188] sm:$0xff]
                  %1352 = vst [vmem:[%s1252 + $0x188] sm:$0xff] %v1351
                  %v1353 = vld [vmem:[%s1251 + $0x190] sm:$0xff]
                  %1354 = vst [vmem:[%s1252 + $0x190] sm:$0xff] %v1353
                  %v1355 = vld [vmem:[%s1251 + $0x198] sm:$0xff]
                  %1356 = vst [vmem:[%s1252 + $0x198] sm:$0xff] %v1355
                  %v1357 = vld [vmem:[%s1251 + $0x1a0] sm:$0xff]
                  %1358 = vst [vmem:[%s1252 + $0x1a0] sm:$0xff] %v1357
                  %v1359 = vld [vmem:[%s1251 + $0x1a8] sm:$0xff]
                  %1360 = vst [vmem:[%s1252 + $0x1a8] sm:$0xff] %v1359
                  %v1361 = vld [vmem:[%s1251 + $0x1b0] sm:$0xff]
                  %1362 = vst [vmem:[%s1252 + $0x1b0] sm:$0xff] %v1361
                  %v1363 = vld [vmem:[%s1251 + $0x1b8] sm:$0xff]
                  %1364 = vst [vmem:[%s1252 + $0x1b8] sm:$0xff] %v1363
                  %v1365 = vld [vmem:[%s1251 + $0x1c0] sm:$0xff]
                  %1366 = vst [vmem:[%s1252 + $0x1c0] sm:$0xff] %v1365
                  %v1367 = vld [vmem:[%s1251 + $0x1c8] sm:$0xff]
                  %1368 = vst [vmem:[%s1252 + $0x1c8] sm:$0xff] %v1367
                  %v1369 = vld [vmem:[%s1251 + $0x1d0] sm:$0xff]
                  %1370 = vst [vmem:[%s1252 + $0x1d0] sm:$0xff] %v1369
                  %v1371 = vld [vmem:[%s1251 + $0x1d8] sm:$0xff]
                  %1372 = vst [vmem:[%s1252 + $0x1d8] sm:$0xff] %v1371
                  %v1373 = vld [vmem:[%s1251 + $0x1e0] sm:$0xff]
                  %1374 = vst [vmem:[%s1252 + $0x1e0] sm:$0xff] %v1373
                  %v1375 = vld [vmem:[%s1251 + $0x1e8] sm:$0xff]
                  %1376 = vst [vmem:[%s1252 + $0x1e8] sm:$0xff] %v1375
                  %v1377 = vld [vmem:[%s1251 + $0x1f0] sm:$0xff]
                  %1378 = vst [vmem:[%s1252 + $0x1f0] sm:$0xff] %v1377
                  %v1379 = vld [vmem:[%s1251 + $0x1f8] sm:$0xff]
                  %1380 = vst [vmem:[%s1252 + $0x1f8] sm:$0xff] %v1379
                  %s1381 = sadd.s32 1, %s1250
                  %p1382 = scmp.ge.s32.totalorder %s1381, %s1243
                  %s1383 = scalar_select %p1382, 0, %s1381
                  %s1384 = smul.u32 %s1383, 512
                  %s1385 = smul.u32 %s1383, 512
                  %s1386 = scalar_lea.vmem %s1051, %s1384 [#allocation2]
                  %s1387 = scalar_lea.vmem %s1062, %s1385
                $region71: #{cifar_dend_conv_forward.5} parent=65 // loop_footer
                  %s1247 = sadd.s32 %s1245, 1
                $region72: #{cifar_dend_conv_forward.5} parent=65 // loop_footer_branch
                  %1244 = sbr.rel target = $region68
                $region73: #{cifar_dend_conv_forward.5} parent=65 // loop_exit
                  _
                %s1388 = sshrl.u32 %s1058, 6
                %s1389 = sand.u32 %s1058, 63
                %s1390 = smul.u32 %s1388, 64
                %s1391 = smul.u32 8, %s1390
                %s1392 = scalar_lea.vmem %s1051, %s1391 [#allocation2]
                %s1393 = smul.u32 8, %s1390
                %s1394 = scalar_lea.vmem %s1062, %s1393
                // While loop
                $region74: #{cifar_dend_conv_forward.5} parent=65 // loop_pre_header
                  _
                $region75: #{cifar_dend_conv_forward.5} parent=65 // loop_header
                  %s1396 = sphi 0, %s1398
                  %p1397 = scmp.ge.s32.totalorder %s1396, %s1389
                  %s1401 = sphi 0, %s1408
                  %s1402 = sphi %s1392, %s1411
                  %s1403 = sphi %s1394, %s1412
                $region76: #{cifar_dend_conv_forward.5} parent=65 // loop_header_branch
                  %1400 = sbr.rel (%p1397) target = $region80
                $region77: #{cifar_dend_conv_forward.5} parent=65 // loop_body
                  %v1404 = vld [vmem:[%s1402] sm:$0xff]
                  %1405 = vst [vmem:[%s1403] sm:$0xff] %v1404
                  %s1406 = sadd.s32 1, %s1401
                  %p1407 = scmp.ge.s32.totalorder %s1406, %s1389
                  %s1408 = scalar_select %p1407, 0, %s1406
                  %s1409 = smul.u32 %s1408, 8
                  %s1410 = smul.u32 %s1408, 8
                  %s1411 = scalar_lea.vmem %s1392, %s1409 [#allocation2]
                  %s1412 = scalar_lea.vmem %s1394, %s1410
                $region78: #{cifar_dend_conv_forward.5} parent=65 // loop_footer
                  %s1398 = sadd.s32 %s1396, 1
                $region79: #{cifar_dend_conv_forward.5} parent=65 // loop_footer_branch
                  %1395 = sbr.rel target = $region75
                $region80: #{cifar_dend_conv_forward.5} parent=65 // loop_exit
                  _
              $region66: #{cifar_dend_conv_forward.5} parent=43 // pred_fallthru
                _
              // Predicated region
              $region81: #{cifar_dend_conv_forward.5} parent=43 // pred_check
                _
              $region82: #{cifar_dend_conv_forward.5} parent=43 // pred_check_branch
                %1414 = sbr.rel target = $region84
              $region83: #{cifar_dend_conv_forward.5} parent=43 // pred_region
                _
              $region84: #{cifar_dend_conv_forward.5} parent=43 // pred_fallthru
                _
            $region44: #{cifar_dend_conv_forward.5} parent=39 // pred_fallthru
              _
            // Predicated region
            $region45: #{cifar_dend_conv_forward.5} parent=39 // pred_check
              _
            $region46: #{cifar_dend_conv_forward.5} parent=39 // pred_check_branch
              %1069 = sbr.rel target = $region48
            $region47: #{cifar_dend_conv_forward.5} parent=39 // pred_region
              %s1071 = sshrl.u32 %s1058, 6
              // While loop
              $region49: #{cifar_dend_conv_forward.5} parent=47 // loop_pre_header
                _
              $region50: #{cifar_dend_conv_forward.5} parent=47 // loop_header
                %s1073 = sphi 0, %s1075
                %p1074 = scmp.ge.s32.totalorder %s1073, %s1071
                %s1078 = sphi 0, %s1211
                %s1079 = sphi %s1051, %s1214
                %s1080 = sphi %s1062, %s1215
              $region51: #{cifar_dend_conv_forward.5} parent=47 // loop_header_branch
                %1077 = sbr.rel (%p1074) target = $region55
              $region52: #{cifar_dend_conv_forward.5} parent=47 // loop_body
                %v1081 = vld [vmem:[%s1079] sm:$0xff]
                %1082 = vst [vmem:[%s1080] sm:$0xff] %v1081
                %v1083 = vld [vmem:[%s1079 + $0x8] sm:$0xff]
                %1084 = vst [vmem:[%s1080 + $0x8] sm:$0xff] %v1083
                %v1085 = vld [vmem:[%s1079 + $0x10] sm:$0xff]
                %1086 = vst [vmem:[%s1080 + $0x10] sm:$0xff] %v1085
                %v1087 = vld [vmem:[%s1079 + $0x18] sm:$0xff]
                %1088 = vst [vmem:[%s1080 + $0x18] sm:$0xff] %v1087
                %v1089 = vld [vmem:[%s1079 + $0x20] sm:$0xff]
                %1090 = vst [vmem:[%s1080 + $0x20] sm:$0xff] %v1089
                %v1091 = vld [vmem:[%s1079 + $0x28] sm:$0xff]
                %1092 = vst [vmem:[%s1080 + $0x28] sm:$0xff] %v1091
                %v1093 = vld [vmem:[%s1079 + $0x30] sm:$0xff]
                %1094 = vst [vmem:[%s1080 + $0x30] sm:$0xff] %v1093
                %v1095 = vld [vmem:[%s1079 + $0x38] sm:$0xff]
                %1096 = vst [vmem:[%s1080 + $0x38] sm:$0xff] %v1095
                %v1097 = vld [vmem:[%s1079 + $0x40] sm:$0xff]
                %1098 = vst [vmem:[%s1080 + $0x40] sm:$0xff] %v1097
                %v1099 = vld [vmem:[%s1079 + $0x48] sm:$0xff]
                %1100 = vst [vmem:[%s1080 + $0x48] sm:$0xff] %v1099
                %v1101 = vld [vmem:[%s1079 + $0x50] sm:$0xff]
                %1102 = vst [vmem:[%s1080 + $0x50] sm:$0xff] %v1101
                %v1103 = vld [vmem:[%s1079 + $0x58] sm:$0xff]
                %1104 = vst [vmem:[%s1080 + $0x58] sm:$0xff] %v1103
                %v1105 = vld [vmem:[%s1079 + $0x60] sm:$0xff]
                %1106 = vst [vmem:[%s1080 + $0x60] sm:$0xff] %v1105
                %v1107 = vld [vmem:[%s1079 + $0x68] sm:$0xff]
                %1108 = vst [vmem:[%s1080 + $0x68] sm:$0xff] %v1107
                %v1109 = vld [vmem:[%s1079 + $0x70] sm:$0xff]
                %1110 = vst [vmem:[%s1080 + $0x70] sm:$0xff] %v1109
                %v1111 = vld [vmem:[%s1079 + $0x78] sm:$0xff]
                %1112 = vst [vmem:[%s1080 + $0x78] sm:$0xff] %v1111
                %v1113 = vld [vmem:[%s1079 + $0x80] sm:$0xff]
                %1114 = vst [vmem:[%s1080 + $0x80] sm:$0xff] %v1113
                %v1115 = vld [vmem:[%s1079 + $0x88] sm:$0xff]
                %1116 = vst [vmem:[%s1080 + $0x88] sm:$0xff] %v1115
                %v1117 = vld [vmem:[%s1079 + $0x90] sm:$0xff]
                %1118 = vst [vmem:[%s1080 + $0x90] sm:$0xff] %v1117
                %v1119 = vld [vmem:[%s1079 + $0x98] sm:$0xff]
                %1120 = vst [vmem:[%s1080 + $0x98] sm:$0xff] %v1119
                %v1121 = vld [vmem:[%s1079 + $0xa0] sm:$0xff]
                %1122 = vst [vmem:[%s1080 + $0xa0] sm:$0xff] %v1121
                %v1123 = vld [vmem:[%s1079 + $0xa8] sm:$0xff]
                %1124 = vst [vmem:[%s1080 + $0xa8] sm:$0xff] %v1123
                %v1125 = vld [vmem:[%s1079 + $0xb0] sm:$0xff]
                %1126 = vst [vmem:[%s1080 + $0xb0] sm:$0xff] %v1125
                %v1127 = vld [vmem:[%s1079 + $0xb8] sm:$0xff]
                %1128 = vst [vmem:[%s1080 + $0xb8] sm:$0xff] %v1127
                %v1129 = vld [vmem:[%s1079 + $0xc0] sm:$0xff]
                %1130 = vst [vmem:[%s1080 + $0xc0] sm:$0xff] %v1129
                %v1131 = vld [vmem:[%s1079 + $0xc8] sm:$0xff]
                %1132 = vst [vmem:[%s1080 + $0xc8] sm:$0xff] %v1131
                %v1133 = vld [vmem:[%s1079 + $0xd0] sm:$0xff]
                %1134 = vst [vmem:[%s1080 + $0xd0] sm:$0xff] %v1133
                %v1135 = vld [vmem:[%s1079 + $0xd8] sm:$0xff]
                %1136 = vst [vmem:[%s1080 + $0xd8] sm:$0xff] %v1135
                %v1137 = vld [vmem:[%s1079 + $0xe0] sm:$0xff]
                %1138 = vst [vmem:[%s1080 + $0xe0] sm:$0xff] %v1137
                %v1139 = vld [vmem:[%s1079 + $0xe8] sm:$0xff]
                %1140 = vst [vmem:[%s1080 + $0xe8] sm:$0xff] %v1139
                %v1141 = vld [vmem:[%s1079 + $0xf0] sm:$0xff]
                %1142 = vst [vmem:[%s1080 + $0xf0] sm:$0xff] %v1141
                %v1143 = vld [vmem:[%s1079 + $0xf8] sm:$0xff]
                %1144 = vst [vmem:[%s1080 + $0xf8] sm:$0xff] %v1143
                %v1145 = vld [vmem:[%s1079 + $0x100] sm:$0xff]
                %1146 = vst [vmem:[%s1080 + $0x100] sm:$0xff] %v1145
                %v1147 = vld [vmem:[%s1079 + $0x108] sm:$0xff]
                %1148 = vst [vmem:[%s1080 + $0x108] sm:$0xff] %v1147
                %v1149 = vld [vmem:[%s1079 + $0x110] sm:$0xff]
                %1150 = vst [vmem:[%s1080 + $0x110] sm:$0xff] %v1149
                %v1151 = vld [vmem:[%s1079 + $0x118] sm:$0xff]
                %1152 = vst [vmem:[%s1080 + $0x118] sm:$0xff] %v1151
                %v1153 = vld [vmem:[%s1079 + $0x120] sm:$0xff]
                %1154 = vst [vmem:[%s1080 + $0x120] sm:$0xff] %v1153
                %v1155 = vld [vmem:[%s1079 + $0x128] sm:$0xff]
                %1156 = vst [vmem:[%s1080 + $0x128] sm:$0xff] %v1155
                %v1157 = vld [vmem:[%s1079 + $0x130] sm:$0xff]
                %1158 = vst [vmem:[%s1080 + $0x130] sm:$0xff] %v1157
                %v1159 = vld [vmem:[%s1079 + $0x138] sm:$0xff]
                %1160 = vst [vmem:[%s1080 + $0x138] sm:$0xff] %v1159
                %v1161 = vld [vmem:[%s1079 + $0x140] sm:$0xff]
                %1162 = vst [vmem:[%s1080 + $0x140] sm:$0xff] %v1161
                %v1163 = vld [vmem:[%s1079 + $0x148] sm:$0xff]
                %1164 = vst [vmem:[%s1080 + $0x148] sm:$0xff] %v1163
                %v1165 = vld [vmem:[%s1079 + $0x150] sm:$0xff]
                %1166 = vst [vmem:[%s1080 + $0x150] sm:$0xff] %v1165
                %v1167 = vld [vmem:[%s1079 + $0x158] sm:$0xff]
                %1168 = vst [vmem:[%s1080 + $0x158] sm:$0xff] %v1167
                %v1169 = vld [vmem:[%s1079 + $0x160] sm:$0xff]
                %1170 = vst [vmem:[%s1080 + $0x160] sm:$0xff] %v1169
                %v1171 = vld [vmem:[%s1079 + $0x168] sm:$0xff]
                %1172 = vst [vmem:[%s1080 + $0x168] sm:$0xff] %v1171
                %v1173 = vld [vmem:[%s1079 + $0x170] sm:$0xff]
                %1174 = vst [vmem:[%s1080 + $0x170] sm:$0xff] %v1173
                %v1175 = vld [vmem:[%s1079 + $0x178] sm:$0xff]
                %1176 = vst [vmem:[%s1080 + $0x178] sm:$0xff] %v1175
                %v1177 = vld [vmem:[%s1079 + $0x180] sm:$0xff]
                %1178 = vst [vmem:[%s1080 + $0x180] sm:$0xff] %v1177
                %v1179 = vld [vmem:[%s1079 + $0x188] sm:$0xff]
                %1180 = vst [vmem:[%s1080 + $0x188] sm:$0xff] %v1179
                %v1181 = vld [vmem:[%s1079 + $0x190] sm:$0xff]
                %1182 = vst [vmem:[%s1080 + $0x190] sm:$0xff] %v1181
                %v1183 = vld [vmem:[%s1079 + $0x198] sm:$0xff]
                %1184 = vst [vmem:[%s1080 + $0x198] sm:$0xff] %v1183
                %v1185 = vld [vmem:[%s1079 + $0x1a0] sm:$0xff]
                %1186 = vst [vmem:[%s1080 + $0x1a0] sm:$0xff] %v1185
                %v1187 = vld [vmem:[%s1079 + $0x1a8] sm:$0xff]
                %1188 = vst [vmem:[%s1080 + $0x1a8] sm:$0xff] %v1187
                %v1189 = vld [vmem:[%s1079 + $0x1b0] sm:$0xff]
                %1190 = vst [vmem:[%s1080 + $0x1b0] sm:$0xff] %v1189
                %v1191 = vld [vmem:[%s1079 + $0x1b8] sm:$0xff]
                %1192 = vst [vmem:[%s1080 + $0x1b8] sm:$0xff] %v1191
                %v1193 = vld [vmem:[%s1079 + $0x1c0] sm:$0xff]
                %1194 = vst [vmem:[%s1080 + $0x1c0] sm:$0xff] %v1193
                %v1195 = vld [vmem:[%s1079 + $0x1c8] sm:$0xff]
                %1196 = vst [vmem:[%s1080 + $0x1c8] sm:$0xff] %v1195
                %v1197 = vld [vmem:[%s1079 + $0x1d0] sm:$0xff]
                %1198 = vst [vmem:[%s1080 + $0x1d0] sm:$0xff] %v1197
                %v1199 = vld [vmem:[%s1079 + $0x1d8] sm:$0xff]
                %1200 = vst [vmem:[%s1080 + $0x1d8] sm:$0xff] %v1199
                %v1201 = vld [vmem:[%s1079 + $0x1e0] sm:$0xff]
                %1202 = vst [vmem:[%s1080 + $0x1e0] sm:$0xff] %v1201
                %v1203 = vld [vmem:[%s1079 + $0x1e8] sm:$0xff]
                %1204 = vst [vmem:[%s1080 + $0x1e8] sm:$0xff] %v1203
                %v1205 = vld [vmem:[%s1079 + $0x1f0] sm:$0xff]
                %1206 = vst [vmem:[%s1080 + $0x1f0] sm:$0xff] %v1205
                %v1207 = vld [vmem:[%s1079 + $0x1f8] sm:$0xff]
                %1208 = vst [vmem:[%s1080 + $0x1f8] sm:$0xff] %v1207
                %s1209 = sadd.s32 1, %s1078
                %p1210 = scmp.ge.s32.totalorder %s1209, %s1071
                %s1211 = scalar_select %p1210, 0, %s1209
                %s1212 = smul.u32 %s1211, 512
                %s1213 = smul.u32 %s1211, 512
                %s1214 = scalar_lea.vmem %s1051, %s1212 [#allocation2]
                %s1215 = scalar_lea.vmem %s1062, %s1213
              $region53: #{cifar_dend_conv_forward.5} parent=47 // loop_footer
                %s1075 = sadd.s32 %s1073, 1
              $region54: #{cifar_dend_conv_forward.5} parent=47 // loop_footer_branch
                %1072 = sbr.rel target = $region50
              $region55: #{cifar_dend_conv_forward.5} parent=47 // loop_exit
                _
              %s1216 = sshrl.u32 %s1058, 6
              %s1217 = sand.u32 %s1058, 63
              %s1218 = smul.u32 %s1216, 64
              %s1219 = smul.u32 8, %s1218
              %s1220 = scalar_lea.vmem %s1051, %s1219 [#allocation2]
              %s1221 = smul.u32 8, %s1218
              %s1222 = scalar_lea.vmem %s1062, %s1221
              // While loop
              $region56: #{cifar_dend_conv_forward.5} parent=47 // loop_pre_header
                _
              $region57: #{cifar_dend_conv_forward.5} parent=47 // loop_header
                %s1224 = sphi 0, %s1226
                %p1225 = scmp.ge.s32.totalorder %s1224, %s1217
                %s1229 = sphi 0, %s1236
                %s1230 = sphi %s1220, %s1239
                %s1231 = sphi %s1222, %s1240
              $region58: #{cifar_dend_conv_forward.5} parent=47 // loop_header_branch
                %1228 = sbr.rel (%p1225) target = $region62
              $region59: #{cifar_dend_conv_forward.5} parent=47 // loop_body
                %v1232 = vld [vmem:[%s1230] sm:$0xff]
                %1233 = vst [vmem:[%s1231] sm:$0xff] %v1232
                %s1234 = sadd.s32 1, %s1229
                %p1235 = scmp.ge.s32.totalorder %s1234, %s1217
                %s1236 = scalar_select %p1235, 0, %s1234
                %s1237 = smul.u32 %s1236, 8
                %s1238 = smul.u32 %s1236, 8
                %s1239 = scalar_lea.vmem %s1220, %s1237 [#allocation2]
                %s1240 = scalar_lea.vmem %s1222, %s1238
              $region60: #{cifar_dend_conv_forward.5} parent=47 // loop_footer
                %s1226 = sadd.s32 %s1224, 1
              $region61: #{cifar_dend_conv_forward.5} parent=47 // loop_footer_branch
                %1223 = sbr.rel target = $region57
              $region62: #{cifar_dend_conv_forward.5} parent=47 // loop_exit
                _
            $region48: #{cifar_dend_conv_forward.5} parent=39 // pred_fallthru
              _
          $region40: #{cifar_dend_conv_forward.5} parent=35 // pred_fallthru
            _
          %1415 = vnop
        $region36: #{cifar_dend_conv_forward.5} parent=31 // pred_fallthru
          _
      $region32: #{cifar_dend_conv_forward.5} parent=5 // pred_fallthru
        _
      %p1416 = scmp.le.s32.totalorder 2, %s9
      // Predicated region
      $region85: #{cifar_dend_conv_forward.5} parent=5 // pred_check
        %p1417 = pneg %p1416
      $region86: #{cifar_dend_conv_forward.5} parent=5 // pred_check_branch
        %1419 = sbr.rel (%p1417) target = $region88
      $region87: #{cifar_dend_conv_forward.5} parent=5 // pred_region
        %s1420 = ssub.s32 %s9, 2
        // Predicated region
        $region89: #{cifar_dend_conv_forward.5} parent=87 // pred_check
          %p1421 = pneg %p106
        $region90: #{cifar_dend_conv_forward.5} parent=87 // pred_check_branch
          %1423 = sbr.rel (%p1421) target = $region92
        $region91: #{cifar_dend_conv_forward.5} parent=87 // pred_region
          %s1424 = sand.u32 %s91, 1
          %s1425 = sand.u32 %s91, 1
          %s1426 = smul.addr %s1425, 512
          %s1427 = scalar_lea.vmem [#allocation2], %s1426
        $region92: #{cifar_dend_conv_forward.5} parent=87 // pred_fallthru
          _
      $region88: #{cifar_dend_conv_forward.5} parent=5 // pred_fallthru
        _
    $region6: #{cifar_dend_conv_forward.5} parent=1 // loop_footer
      %s13 = sadd.s32 1, %s9
    $region7: #{cifar_dend_conv_forward.5} parent=1 // loop_footer_branch
      %8 = sbr.rel target = $region3
    $region8: #{cifar_dend_conv_forward.5} parent=1 // loop_exit
      _

// kernel: cifar_dend_conv_forward.6
$region0: #{cifar_dend_conv_forward.6}
  #allocation0 [shape = 'u32[]', space=smem, size = 0x4, offset = 0x4, fixed_abs, tag = 'smem constant byte address 0x4 - core index']
  #allocation1 [shape = 'u32[144,128]{1,0:T(1,128)}', space=vmem, size = 0x12000, scoped, tag = 'internal scratch']
  %s0 = inlined_call_operand.vmem [shape: f32[392,6], index: 0, kind: input, shape index: {}]
  %s1 = inlined_call_operand.vmem [shape: f32[392,6], index: 1, kind: input, shape index: {}]
  %s2 = inlined_call_operand.vmem [shape: f32[392,6], index: 2, kind: input, shape index: {}]
  %s3 = inlined_call_operand.vmem [shape: f32[392,6], index: 3, kind: input, shape index: {}]
  %s4 = inlined_call_operand.vmem [shape: f32[392,6], index: 4, kind: output, shape index: {}]
  %s5 = sld [smem:[#allocation0]]
  $region26: #{cifar_dend_conv_forward.6} parent=0
    _
  %s7 = ssub.s32 1, %s5
  %s8 = scalar_select 0, %s7, %s5
  // Predicated region
  $region2: #{cifar_dend_conv_forward.6} parent=0 // pred_check
    _
  $region3: #{cifar_dend_conv_forward.6} parent=0 // pred_check_branch
    %10 = sbr.rel (0) target = $region5
  $region4: #{cifar_dend_conv_forward.6} parent=0 // pred_region
    _
  $region5: #{cifar_dend_conv_forward.6} parent=0 // pred_fallthru
    _
  // Predicated region
  $region6: #{cifar_dend_conv_forward.6} parent=0 // pred_check
    _
  $region7: #{cifar_dend_conv_forward.6} parent=0 // pred_check_branch
    %12 = sbr.rel (0) target = $region9
  $region8: #{cifar_dend_conv_forward.6} parent=0 // pred_region
    _
  $region9: #{cifar_dend_conv_forward.6} parent=0 // pred_fallthru
    _
  // Predicated region
  $region10: #{cifar_dend_conv_forward.6} parent=0 // pred_check
    _
  $region11: #{cifar_dend_conv_forward.6} parent=0 // pred_check_branch
    %14 = sbr.rel (0) target = $region13
  $region12: #{cifar_dend_conv_forward.6} parent=0 // pred_region
    _
  $region13: #{cifar_dend_conv_forward.6} parent=0 // pred_fallthru
    _
  // Predicated region
  $region14: #{cifar_dend_conv_forward.6} parent=0 // pred_check
    _
  $region15: #{cifar_dend_conv_forward.6} parent=0 // pred_check_branch
    %16 = sbr.rel (0) target = $region17
  $region16: #{cifar_dend_conv_forward.6} parent=0 // pred_region
    _
  $region17: #{cifar_dend_conv_forward.6} parent=0 // pred_fallthru
    _
  %v17 = vld [vmem:[%s0] sm:$0xff]
  %v18 = vld [vmem:[%s0 + $0x8] sm:$0xff]
  %v19 = vld [vmem:[%s0 + $0x10] sm:$0xff]
  %v20 = vld [vmem:[%s0 + $0x18] sm:$0xff]
  %v21 = vld [vmem:[%s0 + $0x20] sm:$0xff]
  %v22 = vld [vmem:[%s0 + $0x28] sm:$0xff]
  %v23 = vld [vmem:[%s0 + $0x30] sm:$0xff]
  %v24 = vld [vmem:[%s0 + $0x38] sm:$0xff]
  %v25 = vld [vmem:[%s0 + $0x40] sm:$0xff]
  %v26 = vld [vmem:[%s0 + $0x48] sm:$0xff]
  %v27 = vld [vmem:[%s0 + $0x50] sm:$0xff]
  %v28 = vld [vmem:[%s0 + $0x58] sm:$0xff]
  %v29 = vld [vmem:[%s0 + $0x60] sm:$0xff]
  %v30 = vld [vmem:[%s0 + $0x68] sm:$0xff]
  %v31 = vld [vmem:[%s0 + $0x70] sm:$0xff]
  %v32 = vld [vmem:[%s0 + $0x78] sm:$0xff]
  %v33 = vld [vmem:[%s0 + $0x80] sm:$0xff]
  %v34 = vld [vmem:[%s0 + $0x88] sm:$0xff]
  %v35 = vld [vmem:[%s0 + $0x90] sm:$0xff]
  %v36 = vld [vmem:[%s0 + $0x98] sm:$0xff]
  %v37 = vld [vmem:[%s0 + $0xa0] sm:$0xff]
  %v38 = vld [vmem:[%s0 + $0xa8] sm:$0xff]
  %v39 = vld [vmem:[%s0 + $0xb0] sm:$0xff]
  %v40 = vld [vmem:[%s0 + $0xb8] sm:$0xff]
  %v41 = vld [vmem:[%s0 + $0xc0] sm:$0xff]
  %v42 = vld [vmem:[%s0 + $0xc8] sm:$0xff]
  %v43 = vld [vmem:[%s0 + $0xd0] sm:$0xff]
  %v44 = vld [vmem:[%s0 + $0xd8] sm:$0xff]
  %v45 = vld [vmem:[%s0 + $0xe0] sm:$0xff]
  %v46 = vld [vmem:[%s0 + $0xe8] sm:$0xff]
  %v47 = vld [vmem:[%s0 + $0xf0] sm:$0xff]
  %v48 = vld [vmem:[%s0 + $0xf8] sm:$0xff]
  %v49 = vld [vmem:[%s0 + $0x100] sm:$0xff]
  %v50 = vld [vmem:[%s0 + $0x108] sm:$0xff]
  %v51 = vld [vmem:[%s0 + $0x110] sm:$0xff]
  %v52 = vld [vmem:[%s0 + $0x118] sm:$0xff]
  %v53 = vld [vmem:[%s0 + $0x120] sm:$0xff]
  %v54 = vld [vmem:[%s0 + $0x128] sm:$0xff]
  %v55 = vld [vmem:[%s0 + $0x130] sm:$0xff]
  %v56 = vld [vmem:[%s0 + $0x138] sm:$0xff]
  %v57 = vld [vmem:[%s0 + $0x140] sm:$0xff]
  %v58 = vld [vmem:[%s0 + $0x148] sm:$0xff]
  %v59 = vld [vmem:[%s0 + $0x150] sm:$0xff]
  %v60 = vld [vmem:[%s0 + $0x158] sm:$0xff]
  %v61 = vld [vmem:[%s0 + $0x160] sm:$0xff]
  %v62 = vld [vmem:[%s0 + $0x168] sm:$0xff]
  %v63 = vld [vmem:[%s0 + $0x170] sm:$0xff]
  %v64 = vld [vmem:[%s0 + $0x178] sm:$0xff]
  %v65 = vld [vmem:[%s0 + $0x180] sm:$0xff]
  %v66 = vld [vmem:[%s1] sm:$0xff]
  %v67 = vld [vmem:[%s1 + $0x8] sm:$0xff]
  %v68 = vld [vmem:[%s1 + $0x10] sm:$0xff]
  %v69 = vld [vmem:[%s1 + $0x18] sm:$0xff]
  %v70 = vld [vmem:[%s1 + $0x20] sm:$0xff]
  %v71 = vld [vmem:[%s1 + $0x28] sm:$0xff]
  %v72 = vld [vmem:[%s1 + $0x30] sm:$0xff]
  %v73 = vld [vmem:[%s1 + $0x38] sm:$0xff]
  %v74 = vld [vmem:[%s1 + $0x40] sm:$0xff]
  %v75 = vld [vmem:[%s1 + $0x48] sm:$0xff]
  %v76 = vld [vmem:[%s1 + $0x50] sm:$0xff]
  %v77 = vld [vmem:[%s1 + $0x58] sm:$0xff]
  %v78 = vld [vmem:[%s1 + $0x60] sm:$0xff]
  %v79 = vld [vmem:[%s1 + $0x68] sm:$0xff]
  %v80 = vld [vmem:[%s1 + $0x70] sm:$0xff]
  %v81 = vld [vmem:[%s1 + $0x78] sm:$0xff]
  %v82 = vld [vmem:[%s1 + $0x80] sm:$0xff]
  %v83 = vld [vmem:[%s1 + $0x88] sm:$0xff]
  %v84 = vld [vmem:[%s1 + $0x90] sm:$0xff]
  %v85 = vld [vmem:[%s1 + $0x98] sm:$0xff]
  %v86 = vld [vmem:[%s1 + $0xa0] sm:$0xff]
  %v87 = vld [vmem:[%s1 + $0xa8] sm:$0xff]
  %v88 = vld [vmem:[%s1 + $0xb0] sm:$0xff]
  %v89 = vld [vmem:[%s1 + $0xb8] sm:$0xff]
  %v90 = vld [vmem:[%s1 + $0xc0] sm:$0xff]
  %v91 = vld [vmem:[%s1 + $0xc8] sm:$0xff]
  %v92 = vld [vmem:[%s1 + $0xd0] sm:$0xff]
  %v93 = vld [vmem:[%s1 + $0xd8] sm:$0xff]
  %v94 = vld [vmem:[%s1 + $0xe0] sm:$0xff]
  %v95 = vld [vmem:[%s1 + $0xe8] sm:$0xff]
  %v96 = vld [vmem:[%s1 + $0xf0] sm:$0xff]
  %v97 = vld [vmem:[%s1 + $0xf8] sm:$0xff]
  %v98 = vld [vmem:[%s1 + $0x100] sm:$0xff]
  %v99 = vld [vmem:[%s1 + $0x108] sm:$0xff]
  %v100 = vld [vmem:[%s1 + $0x110] sm:$0xff]
  %v101 = vld [vmem:[%s1 + $0x118] sm:$0xff]
  %v102 = vld [vmem:[%s1 + $0x120] sm:$0xff]
  %v103 = vld [vmem:[%s1 + $0x128] sm:$0xff]
  %v104 = vld [vmem:[%s1 + $0x130] sm:$0xff]
  %v105 = vld [vmem:[%s1 + $0x138] sm:$0xff]
  %v106 = vld [vmem:[%s1 + $0x140] sm:$0xff]
  %v107 = vld [vmem:[%s1 + $0x148] sm:$0xff]
  %v108 = vld [vmem:[%s1 + $0x150] sm:$0xff]
  %v109 = vld [vmem:[%s1 + $0x158] sm:$0xff]
  %v110 = vld [vmem:[%s1 + $0x160] sm:$0xff]
  %v111 = vld [vmem:[%s1 + $0x168] sm:$0xff]
  %v112 = vld [vmem:[%s1 + $0x170] sm:$0xff]
  %v113 = vld [vmem:[%s1 + $0x178] sm:$0xff]
  %v114 = vld [vmem:[%s1 + $0x180] sm:$0xff]
  %v115 = vmax.f32 %v17, %v66
  %v116 = vmax.f32 %v18, %v67
  %v117 = vmax.f32 %v19, %v68
  %v118 = vmax.f32 %v20, %v69
  %v119 = vmax.f32 %v21, %v70
  %v120 = vmax.f32 %v22, %v71
  %v121 = vmax.f32 %v23, %v72
  %v122 = vmax.f32 %v24, %v73
  %v123 = vmax.f32 %v25, %v74
  %v124 = vmax.f32 %v26, %v75
  %v125 = vmax.f32 %v27, %v76
  %v126 = vmax.f32 %v28, %v77
  %v127 = vmax.f32 %v29, %v78
  %v128 = vmax.f32 %v30, %v79
  %v129 = vmax.f32 %v31, %v80
  %v130 = vmax.f32 %v32, %v81
  %v131 = vmax.f32 %v33, %v82
  %v132 = vmax.f32 %v34, %v83
  %v133 = vmax.f32 %v35, %v84
  %v134 = vmax.f32 %v36, %v85
  %v135 = vmax.f32 %v37, %v86
  %v136 = vmax.f32 %v38, %v87
  %v137 = vmax.f32 %v39, %v88
  %v138 = vmax.f32 %v40, %v89
  %v139 = vmax.f32 %v41, %v90
  %v140 = vmax.f32 %v42, %v91
  %v141 = vmax.f32 %v43, %v92
  %v142 = vmax.f32 %v44, %v93
  %v143 = vmax.f32 %v45, %v94
  %v144 = vmax.f32 %v46, %v95
  %v145 = vmax.f32 %v47, %v96
  %v146 = vmax.f32 %v48, %v97
  %v147 = vmax.f32 %v49, %v98
  %v148 = vmax.f32 %v50, %v99
  %v149 = vmax.f32 %v51, %v100
  %v150 = vmax.f32 %v52, %v101
  %v151 = vmax.f32 %v53, %v102
  %v152 = vmax.f32 %v54, %v103
  %v153 = vmax.f32 %v55, %v104
  %v154 = vmax.f32 %v56, %v105
  %v155 = vmax.f32 %v57, %v106
  %v156 = vmax.f32 %v58, %v107
  %v157 = vmax.f32 %v59, %v108
  %v158 = vmax.f32 %v60, %v109
  %v159 = vmax.f32 %v61, %v110
  %v160 = vmax.f32 %v62, %v111
  %v161 = vmax.f32 %v63, %v112
  %v162 = vmax.f32 %v64, %v113
  %v163 = vmax.f32 %v65, %v114
  %v164 = vld [vmem:[%s2] sm:$0xff]
  %v165 = vld [vmem:[%s2 + $0x8] sm:$0xff]
  %v166 = vld [vmem:[%s2 + $0x10] sm:$0xff]
  %v167 = vld [vmem:[%s2 + $0x18] sm:$0xff]
  %v168 = vld [vmem:[%s2 + $0x20] sm:$0xff]
  %v169 = vld [vmem:[%s2 + $0x28] sm:$0xff]
  %v170 = vld [vmem:[%s2 + $0x30] sm:$0xff]
  %v171 = vld [vmem:[%s2 + $0x38] sm:$0xff]
  %v172 = vld [vmem:[%s2 + $0x40] sm:$0xff]
  %v173 = vld [vmem:[%s2 + $0x48] sm:$0xff]
  %v174 = vld [vmem:[%s2 + $0x50] sm:$0xff]
  %v175 = vld [vmem:[%s2 + $0x58] sm:$0xff]
  %v176 = vld [vmem:[%s2 + $0x60] sm:$0xff]
  %v177 = vld [vmem:[%s2 + $0x68] sm:$0xff]
  %v178 = vld [vmem:[%s2 + $0x70] sm:$0xff]
  %v179 = vld [vmem:[%s2 + $0x78] sm:$0xff]
  %v180 = vld [vmem:[%s2 + $0x80] sm:$0xff]
  %v181 = vld [vmem:[%s2 + $0x88] sm:$0xff]
  %v182 = vld [vmem:[%s2 + $0x90] sm:$0xff]
  %v183 = vld [vmem:[%s2 + $0x98] sm:$0xff]
  %v184 = vld [vmem:[%s2 + $0xa0] sm:$0xff]
  %v185 = vld [vmem:[%s2 + $0xa8] sm:$0xff]
  %v186 = vld [vmem:[%s2 + $0xb0] sm:$0xff]
  %v187 = vld [vmem:[%s2 + $0xb8] sm:$0xff]
  %v188 = vld [vmem:[%s2 + $0xc0] sm:$0xff]
  %v189 = vld [vmem:[%s2 + $0xc8] sm:$0xff]
  %v190 = vld [vmem:[%s2 + $0xd0] sm:$0xff]
  %v191 = vld [vmem:[%s2 + $0xd8] sm:$0xff]
  %v192 = vld [vmem:[%s2 + $0xe0] sm:$0xff]
  %v193 = vld [vmem:[%s2 + $0xe8] sm:$0xff]
  %v194 = vld [vmem:[%s2 + $0xf0] sm:$0xff]
  %v195 = vld [vmem:[%s2 + $0xf8] sm:$0xff]
  %v196 = vld [vmem:[%s2 + $0x100] sm:$0xff]
  %v197 = vld [vmem:[%s2 + $0x108] sm:$0xff]
  %v198 = vld [vmem:[%s2 + $0x110] sm:$0xff]
  %v199 = vld [vmem:[%s2 + $0x118] sm:$0xff]
  %v200 = vld [vmem:[%s2 + $0x120] sm:$0xff]
  %v201 = vld [vmem:[%s2 + $0x128] sm:$0xff]
  %v202 = vld [vmem:[%s2 + $0x130] sm:$0xff]
  %v203 = vld [vmem:[%s2 + $0x138] sm:$0xff]
  %v204 = vld [vmem:[%s2 + $0x140] sm:$0xff]
  %v205 = vld [vmem:[%s2 + $0x148] sm:$0xff]
  %v206 = vld [vmem:[%s2 + $0x150] sm:$0xff]
  %v207 = vld [vmem:[%s2 + $0x158] sm:$0xff]
  %v208 = vld [vmem:[%s2 + $0x160] sm:$0xff]
  %v209 = vld [vmem:[%s2 + $0x168] sm:$0xff]
  %v210 = vld [vmem:[%s2 + $0x170] sm:$0xff]
  %v211 = vld [vmem:[%s2 + $0x178] sm:$0xff]
  %v212 = vld [vmem:[%s2 + $0x180] sm:$0xff]
  %v213 = vld [vmem:[%s3] sm:$0xff]
  %v214 = vld [vmem:[%s3 + $0x8] sm:$0xff]
  %v215 = vld [vmem:[%s3 + $0x10] sm:$0xff]
  %v216 = vld [vmem:[%s3 + $0x18] sm:$0xff]
  %v217 = vld [vmem:[%s3 + $0x20] sm:$0xff]
  %v218 = vld [vmem:[%s3 + $0x28] sm:$0xff]
  %v219 = vld [vmem:[%s3 + $0x30] sm:$0xff]
  %v220 = vld [vmem:[%s3 + $0x38] sm:$0xff]
  %v221 = vld [vmem:[%s3 + $0x40] sm:$0xff]
  %v222 = vld [vmem:[%s3 + $0x48] sm:$0xff]
  %v223 = vld [vmem:[%s3 + $0x50] sm:$0xff]
  %v224 = vld [vmem:[%s3 + $0x58] sm:$0xff]
  %v225 = vld [vmem:[%s3 + $0x60] sm:$0xff]
  %v226 = vld [vmem:[%s3 + $0x68] sm:$0xff]
  %v227 = vld [vmem:[%s3 + $0x70] sm:$0xff]
  %v228 = vld [vmem:[%s3 + $0x78] sm:$0xff]
  %v229 = vld [vmem:[%s3 + $0x80] sm:$0xff]
  %v230 = vld [vmem:[%s3 + $0x88] sm:$0xff]
  %v231 = vld [vmem:[%s3 + $0x90] sm:$0xff]
  %v232 = vld [vmem:[%s3 + $0x98] sm:$0xff]
  %v233 = vld [vmem:[%s3 + $0xa0] sm:$0xff]
  %v234 = vld [vmem:[%s3 + $0xa8] sm:$0xff]
  %v235 = vld [vmem:[%s3 + $0xb0] sm:$0xff]
  %v236 = vld [vmem:[%s3 + $0xb8] sm:$0xff]
  %v237 = vld [vmem:[%s3 + $0xc0] sm:$0xff]
  %v238 = vld [vmem:[%s3 + $0xc8] sm:$0xff]
  %v239 = vld [vmem:[%s3 + $0xd0] sm:$0xff]
  %v240 = vld [vmem:[%s3 + $0xd8] sm:$0xff]
  %v241 = vld [vmem:[%s3 + $0xe0] sm:$0xff]
  %v242 = vld [vmem:[%s3 + $0xe8] sm:$0xff]
  %v243 = vld [vmem:[%s3 + $0xf0] sm:$0xff]
  %v244 = vld [vmem:[%s3 + $0xf8] sm:$0xff]
  %v245 = vld [vmem:[%s3 + $0x100] sm:$0xff]
  %v246 = vld [vmem:[%s3 + $0x108] sm:$0xff]
  %v247 = vld [vmem:[%s3 + $0x110] sm:$0xff]
  %v248 = vld [vmem:[%s3 + $0x118] sm:$0xff]
  %v249 = vld [vmem:[%s3 + $0x120] sm:$0xff]
  %v250 = vld [vmem:[%s3 + $0x128] sm:$0xff]
  %v251 = vld [vmem:[%s3 + $0x130] sm:$0xff]
  %v252 = vld [vmem:[%s3 + $0x138] sm:$0xff]
  %v253 = vld [vmem:[%s3 + $0x140] sm:$0xff]
  %v254 = vld [vmem:[%s3 + $0x148] sm:$0xff]
  %v255 = vld [vmem:[%s3 + $0x150] sm:$0xff]
  %v256 = vld [vmem:[%s3 + $0x158] sm:$0xff]
  %v257 = vld [vmem:[%s3 + $0x160] sm:$0xff]
  %v258 = vld [vmem:[%s3 + $0x168] sm:$0xff]
  %v259 = vld [vmem:[%s3 + $0x170] sm:$0xff]
  %v260 = vld [vmem:[%s3 + $0x178] sm:$0xff]
  %v261 = vld [vmem:[%s3 + $0x180] sm:$0xff]
  %v262 = vmax.f32 %v164, %v213
  %v263 = vmax.f32 %v165, %v214
  %v264 = vmax.f32 %v166, %v215
  %v265 = vmax.f32 %v167, %v216
  %v266 = vmax.f32 %v168, %v217
  %v267 = vmax.f32 %v169, %v218
  %v268 = vmax.f32 %v170, %v219
  %v269 = vmax.f32 %v171, %v220
  %v270 = vmax.f32 %v172, %v221
  %v271 = vmax.f32 %v173, %v222
  %v272 = vmax.f32 %v174, %v223
  %v273 = vmax.f32 %v175, %v224
  %v274 = vmax.f32 %v176, %v225
  %v275 = vmax.f32 %v177, %v226
  %v276 = vmax.f32 %v178, %v227
  %v277 = vmax.f32 %v179, %v228
  %v278 = vmax.f32 %v180, %v229
  %v279 = vmax.f32 %v181, %v230
  %v280 = vmax.f32 %v182, %v231
  %v281 = vmax.f32 %v183, %v232
  %v282 = vmax.f32 %v184, %v233
  %v283 = vmax.f32 %v185, %v234
  %v284 = vmax.f32 %v186, %v235
  %v285 = vmax.f32 %v187, %v236
  %v286 = vmax.f32 %v188, %v237
  %v287 = vmax.f32 %v189, %v238
  %v288 = vmax.f32 %v190, %v239
  %v289 = vmax.f32 %v191, %v240
  %v290 = vmax.f32 %v192, %v241
  %v291 = vmax.f32 %v193, %v242
  %v292 = vmax.f32 %v194, %v243
  %v293 = vmax.f32 %v195, %v244
  %v294 = vmax.f32 %v196, %v245
  %v295 = vmax.f32 %v197, %v246
  %v296 = vmax.f32 %v198, %v247
  %v297 = vmax.f32 %v199, %v248
  %v298 = vmax.f32 %v200, %v249
  %v299 = vmax.f32 %v201, %v250
  %v300 = vmax.f32 %v202, %v251
  %v301 = vmax.f32 %v203, %v252
  %v302 = vmax.f32 %v204, %v253
  %v303 = vmax.f32 %v205, %v254
  %v304 = vmax.f32 %v206, %v255
  %v305 = vmax.f32 %v207, %v256
  %v306 = vmax.f32 %v208, %v257
  %v307 = vmax.f32 %v209, %v258
  %v308 = vmax.f32 %v210, %v259
  %v309 = vmax.f32 %v211, %v260
  %v310 = vmax.f32 %v212, %v261
  %v311 = vmax.f32 %v115, %v262
  %v312 = vmax.f32 %v116, %v263
  %v313 = vmax.f32 %v117, %v264
  %v314 = vmax.f32 %v118, %v265
  %v315 = vmax.f32 %v119, %v266
  %v316 = vmax.f32 %v120, %v267
  %v317 = vmax.f32 %v121, %v268
  %v318 = vmax.f32 %v122, %v269
  %v319 = vmax.f32 %v123, %v270
  %v320 = vmax.f32 %v124, %v271
  %v321 = vmax.f32 %v125, %v272
  %v322 = vmax.f32 %v126, %v273
  %v323 = vmax.f32 %v127, %v274
  %v324 = vmax.f32 %v128, %v275
  %v325 = vmax.f32 %v129, %v276
  %v326 = vmax.f32 %v130, %v277
  %v327 = vmax.f32 %v131, %v278
  %v328 = vmax.f32 %v132, %v279
  %v329 = vmax.f32 %v133, %v280
  %v330 = vmax.f32 %v134, %v281
  %v331 = vmax.f32 %v135, %v282
  %v332 = vmax.f32 %v136, %v283
  %v333 = vmax.f32 %v137, %v284
  %v334 = vmax.f32 %v138, %v285
  %v335 = vmax.f32 %v139, %v286
  %v336 = vmax.f32 %v140, %v287
  %v337 = vmax.f32 %v141, %v288
  %v338 = vmax.f32 %v142, %v289
  %v339 = vmax.f32 %v143, %v290
  %v340 = vmax.f32 %v144, %v291
  %v341 = vmax.f32 %v145, %v292
  %v342 = vmax.f32 %v146, %v293
  %v343 = vmax.f32 %v147, %v294
  %v344 = vmax.f32 %v148, %v295
  %v345 = vmax.f32 %v149, %v296
  %v346 = vmax.f32 %v150, %v297
  %v347 = vmax.f32 %v151, %v298
  %v348 = vmax.f32 %v152, %v299
  %v349 = vmax.f32 %v153, %v300
  %v350 = vmax.f32 %v154, %v301
  %v351 = vmax.f32 %v155, %v302
  %v352 = vmax.f32 %v156, %v303
  %v353 = vmax.f32 %v157, %v304
  %v354 = vmax.f32 %v158, %v305
  %v355 = vmax.f32 %v159, %v306
  %v356 = vmax.f32 %v160, %v307
  %v357 = vmax.f32 %v161, %v308
  %v358 = vmax.f32 %v162, %v309
  %v359 = vmax.f32 %v163, %v310
  %vm360 = vcmask 48128
  %361 = vst.msk [vmem:[%s4] sm:$0xff] %vm360, %v311
  %362 = vst.msk [vmem:[%s4 + $0x8] sm:$0xff] %vm360, %v312
  %363 = vst.msk [vmem:[%s4 + $0x10] sm:$0xff] %vm360, %v313
  %364 = vst.msk [vmem:[%s4 + $0x18] sm:$0xff] %vm360, %v314
  %365 = vst.msk [vmem:[%s4 + $0x20] sm:$0xff] %vm360, %v315
  %366 = vst.msk [vmem:[%s4 + $0x28] sm:$0xff] %vm360, %v316
  %367 = vst.msk [vmem:[%s4 + $0x30] sm:$0xff] %vm360, %v317
  %368 = vst.msk [vmem:[%s4 + $0x38] sm:$0xff] %vm360, %v318
  %369 = vst.msk [vmem:[%s4 + $0x40] sm:$0xff] %vm360, %v319
  %370 = vst.msk [vmem:[%s4 + $0x48] sm:$0xff] %vm360, %v320
  %371 = vst.msk [vmem:[%s4 + $0x50] sm:$0xff] %vm360, %v321
  %372 = vst.msk [vmem:[%s4 + $0x58] sm:$0xff] %vm360, %v322
  %373 = vst.msk [vmem:[%s4 + $0x60] sm:$0xff] %vm360, %v323
  %374 = vst.msk [vmem:[%s4 + $0x68] sm:$0xff] %vm360, %v324
  %375 = vst.msk [vmem:[%s4 + $0x70] sm:$0xff] %vm360, %v325
  %376 = vst.msk [vmem:[%s4 + $0x78] sm:$0xff] %vm360, %v326
  %377 = vst.msk [vmem:[%s4 + $0x80] sm:$0xff] %vm360, %v327
  %378 = vst.msk [vmem:[%s4 + $0x88] sm:$0xff] %vm360, %v328
  %379 = vst.msk [vmem:[%s4 + $0x90] sm:$0xff] %vm360, %v329
  %380 = vst.msk [vmem:[%s4 + $0x98] sm:$0xff] %vm360, %v330
  %381 = vst.msk [vmem:[%s4 + $0xa0] sm:$0xff] %vm360, %v331
  %382 = vst.msk [vmem:[%s4 + $0xa8] sm:$0xff] %vm360, %v332
  %383 = vst.msk [vmem:[%s4 + $0xb0] sm:$0xff] %vm360, %v333
  %384 = vst.msk [vmem:[%s4 + $0xb8] sm:$0xff] %vm360, %v334
  %385 = vst.msk [vmem:[%s4 + $0xc0] sm:$0xff] %vm360, %v335
  %386 = vst.msk [vmem:[%s4 + $0xc8] sm:$0xff] %vm360, %v336
  %387 = vst.msk [vmem:[%s4 + $0xd0] sm:$0xff] %vm360, %v337
  %388 = vst.msk [vmem:[%s4 + $0xd8] sm:$0xff] %vm360, %v338
  %389 = vst.msk [vmem:[%s4 + $0xe0] sm:$0xff] %vm360, %v339
  %390 = vst.msk [vmem:[%s4 + $0xe8] sm:$0xff] %vm360, %v340
  %391 = vst.msk [vmem:[%s4 + $0xf0] sm:$0xff] %vm360, %v341
  %392 = vst.msk [vmem:[%s4 + $0xf8] sm:$0xff] %vm360, %v342
  %393 = vst.msk [vmem:[%s4 + $0x100] sm:$0xff] %vm360, %v343
  %394 = vst.msk [vmem:[%s4 + $0x108] sm:$0xff] %vm360, %v344
  %395 = vst.msk [vmem:[%s4 + $0x110] sm:$0xff] %vm360, %v345
  %396 = vst.msk [vmem:[%s4 + $0x118] sm:$0xff] %vm360, %v346
  %397 = vst.msk [vmem:[%s4 + $0x120] sm:$0xff] %vm360, %v347
  %398 = vst.msk [vmem:[%s4 + $0x128] sm:$0xff] %vm360, %v348
  %399 = vst.msk [vmem:[%s4 + $0x130] sm:$0xff] %vm360, %v349
  %400 = vst.msk [vmem:[%s4 + $0x138] sm:$0xff] %vm360, %v350
  %401 = vst.msk [vmem:[%s4 + $0x140] sm:$0xff] %vm360, %v351
  %402 = vst.msk [vmem:[%s4 + $0x148] sm:$0xff] %vm360, %v352
  %403 = vst.msk [vmem:[%s4 + $0x150] sm:$0xff] %vm360, %v353
  %404 = vst.msk [vmem:[%s4 + $0x158] sm:$0xff] %vm360, %v354
  %405 = vst.msk [vmem:[%s4 + $0x160] sm:$0xff] %vm360, %v355
  %406 = vst.msk [vmem:[%s4 + $0x168] sm:$0xff] %vm360, %v356
  %407 = vst.msk [vmem:[%s4 + $0x170] sm:$0xff] %vm360, %v357
  %408 = vst.msk [vmem:[%s4 + $0x178] sm:$0xff] %vm360, %v358
  %409 = vst.msk [vmem:[%s4 + $0x180] sm:$0xff] %vm360, %v359
  // Predicated region
  $region18: #{cifar_dend_conv_forward.6} parent=0 // pred_check
    _
  $region19: #{cifar_dend_conv_forward.6} parent=0 // pred_check_branch
    %411 = sbr.rel (0) target = $region21
  $region20: #{cifar_dend_conv_forward.6} parent=0 // pred_region
    _
  $region21: #{cifar_dend_conv_forward.6} parent=0 // pred_fallthru
    _
  // Predicated region
  $region22: #{cifar_dend_conv_forward.6} parent=0 // pred_check
    _
  $region23: #{cifar_dend_conv_forward.6} parent=0 // pred_check_branch
    %413 = sbr.rel (0) target = $region25
  $region24: #{cifar_dend_conv_forward.6} parent=0 // pred_region
    _
  $region25: #{cifar_dend_conv_forward.6} parent=0 // pred_fallthru
    _

// kernel: cifar_dend_conv_forward.7
$region0: #{cifar_dend_conv_forward.7}
  #allocation0 [shape = 'u32[]', space=smem, size = 0x4, offset = 0x4, fixed_abs, tag = 'smem constant byte address 0x4 - core index']
  #allocation1 [shape = 'u32[144,128]{1,0:T(1,128)}', space=vmem, size = 0x12000, scoped, tag = 'internal scratch']
  %s0 = inlined_call_operand.vmem [shape: f32[200,150], index: 0, kind: input, shape index: {}]
  %s1 = inlined_call_operand.vmem [shape: f32[150,16], index: 1, kind: input, shape index: {}]
  %s2 = inlined_call_operand.vmem [shape: f32[1,16], index: 2, kind: input, shape index: {}]
  %s3 = inlined_call_operand.vmem [shape: f32[200,16], index: 3, kind: output, shape index: {}]
  %s4 = sld [smem:[#allocation0]]
  $region22: #{cifar_dend_conv_forward.7} parent=0
    _
  %s6 = ssub.s32 1, %s4
  %s7 = scalar_select 0, %s6, %s4
  // Predicated region
  $region2: #{cifar_dend_conv_forward.7} parent=0 // pred_check
    _
  $region3: #{cifar_dend_conv_forward.7} parent=0 // pred_check_branch
    %9 = sbr.rel (0) target = $region5
  $region4: #{cifar_dend_conv_forward.7} parent=0 // pred_region
    _
  $region5: #{cifar_dend_conv_forward.7} parent=0 // pred_fallthru
    _
  // Predicated region
  $region6: #{cifar_dend_conv_forward.7} parent=0 // pred_check
    _
  $region7: #{cifar_dend_conv_forward.7} parent=0 // pred_check_branch
    %11 = sbr.rel (0) target = $region9
  $region8: #{cifar_dend_conv_forward.7} parent=0 // pred_region
    _
  $region9: #{cifar_dend_conv_forward.7} parent=0 // pred_fallthru
    _
  // Predicated region
  $region10: #{cifar_dend_conv_forward.7} parent=0 // pred_check
    _
  $region11: #{cifar_dend_conv_forward.7} parent=0 // pred_check_branch
    %13 = sbr.rel (0) target = $region13
  $region12: #{cifar_dend_conv_forward.7} parent=0 // pred_region
    _
  $region13: #{cifar_dend_conv_forward.7} parent=0 // pred_fallthru
    _
  %v14 = vld [vmem:[%s0] sm:$0xff]
  %v15 = vld [vmem:[%s0 + $0x8] sm:$0xff]
  %v16 = vld [vmem:[%s0 + $0x10] sm:$0xff]
  %v17 = vld [vmem:[%s0 + $0x18] sm:$0xff]
  %v18 = vld [vmem:[%s0 + $0x20] sm:$0xff]
  %v19 = vld [vmem:[%s0 + $0x28] sm:$0xff]
  %v20 = vld [vmem:[%s0 + $0x30] sm:$0xff]
  %v21 = vld [vmem:[%s0 + $0x38] sm:$0xff]
  %v22 = vld [vmem:[%s0 + $0x40] sm:$0xff]
  %v23 = vld [vmem:[%s0 + $0x48] sm:$0xff]
  %v24 = vld [vmem:[%s0 + $0x50] sm:$0xff]
  %v25 = vld [vmem:[%s0 + $0x58] sm:$0xff]
  %v26 = vld [vmem:[%s0 + $0x60] sm:$0xff]
  %v27 = vld [vmem:[%s0 + $0x68] sm:$0xff]
  %v28 = vld [vmem:[%s0 + $0x70] sm:$0xff]
  %v29 = vld [vmem:[%s0 + $0x78] sm:$0xff]
  %v30 = vld [vmem:[%s0 + $0x80] sm:$0xff]
  %v31 = vld [vmem:[%s0 + $0x88] sm:$0xff]
  %v32 = vld [vmem:[%s0 + $0x90] sm:$0xff]
  %v33 = vld [vmem:[%s0 + $0x98] sm:$0xff]
  %v34 = vld [vmem:[%s0 + $0xa0] sm:$0xff]
  %v35 = vld [vmem:[%s0 + $0xa8] sm:$0xff]
  %v36 = vld [vmem:[%s0 + $0xb0] sm:$0xff]
  %v37 = vld [vmem:[%s0 + $0xb8] sm:$0xff]
  %v38 = vld [vmem:[%s0 + $0xc0] sm:$0xff]
  %v39 = vld [vmem:[%s0 + $0xc8] sm:$0xff]
  %v40 = vld [vmem:[%s0 + $0xd0] sm:$0xff]
  %v41 = vld [vmem:[%s0 + $0xd8] sm:$0xff]
  %v42 = vld [vmem:[%s0 + $0xe0] sm:$0xff]
  %v43 = vld [vmem:[%s0 + $0xe8] sm:$0xff]
  %v44 = vld [vmem:[%s0 + $0xf0] sm:$0xff]
  %v45 = vld [vmem:[%s0 + $0xf8] sm:$0xff]
  %v46 = vld [vmem:[%s0 + $0x100] sm:$0xff]
  %v47 = vld [vmem:[%s0 + $0x108] sm:$0xff]
  %v48 = vld [vmem:[%s0 + $0x110] sm:$0xff]
  %v49 = vld [vmem:[%s0 + $0x118] sm:$0xff]
  %v50 = vld [vmem:[%s0 + $0x120] sm:$0xff]
  %v51 = vld [vmem:[%s0 + $0x128] sm:$0xff]
  %v52 = vld [vmem:[%s0 + $0x130] sm:$0xff]
  %v53 = vld [vmem:[%s0 + $0x138] sm:$0xff]
  %v54 = vld [vmem:[%s0 + $0x140] sm:$0xff]
  %v55 = vld [vmem:[%s0 + $0x148] sm:$0xff]
  %v56 = vld [vmem:[%s0 + $0x150] sm:$0xff]
  %v57 = vld [vmem:[%s0 + $0x158] sm:$0xff]
  %v58 = vld [vmem:[%s0 + $0x160] sm:$0xff]
  %v59 = vld [vmem:[%s0 + $0x168] sm:$0xff]
  %v60 = vld [vmem:[%s0 + $0x170] sm:$0xff]
  %v61 = vld [vmem:[%s0 + $0x178] sm:$0xff]
  %v62 = vld [vmem:[%s0 + $0x180] sm:$0xff]
  %v63 = vld [vmem:[%s0 + $0x188] sm:$0xff]
  %v64 = vld [vmem:[%s1] sm:$0xff]
  %v65 = vld [vmem:[%s1 + $0x8] sm:$0xff]
  %v66 = vld [vmem:[%s1 + $0x10] sm:$0xff]
  %v67 = vld [vmem:[%s1 + $0x18] sm:$0xff]
  %v68 = vld [vmem:[%s1 + $0x20] sm:$0xff]
  %v69 = vld [vmem:[%s1 + $0x28] sm:$0xff]
  %v70 = vld [vmem:[%s1 + $0x30] sm:$0xff]
  %v71 = vld [vmem:[%s1 + $0x38] sm:$0xff]
  %v72 = vld [vmem:[%s1 + $0x40] sm:$0xff]
  %v73 = vld [vmem:[%s1 + $0x48] sm:$0xff]
  %v74 = vld [vmem:[%s1 + $0x50] sm:$0xff]
  %v75 = vld [vmem:[%s1 + $0x58] sm:$0xff]
  %v76 = vld [vmem:[%s1 + $0x60] sm:$0xff]
  %v77 = vld [vmem:[%s1 + $0x68] sm:$0xff]
  %v78 = vld [vmem:[%s1 + $0x70] sm:$0xff]
  %v79 = vld [vmem:[%s1 + $0x78] sm:$0xff]
  %v80 = vld [vmem:[%s1 + $0x80] sm:$0xff]
  %v81 = vld [vmem:[%s1 + $0x88] sm:$0xff]
  %v82 = vld [vmem:[%s1 + $0x90] sm:$0x3f]
  %v83 = vld [vmem:[%s2] sm:$0x1]
  %v85 = vlaneseq
  %v86 = vshrl.u32 %v85, 7
  %v87 = vsub.s32 0, %v86
  %v88 = vrot.slane %v83, %v87
  %vm90 = vcmask 179200
  %v92 = vsel %vm90, %v15, 0
  %v95 = vsel %vm90, %v17, 0
  %v98 = vsel %vm90, %v19, 0
  %v101 = vsel %vm90, %v21, 0
  %v104 = vsel %vm90, %v23, 0
  %v107 = vsel %vm90, %v25, 0
  %v110 = vsel %vm90, %v27, 0
  %v113 = vsel %vm90, %v29, 0
  %v116 = vsel %vm90, %v31, 0
  %v119 = vsel %vm90, %v33, 0
  %v122 = vsel %vm90, %v35, 0
  %v125 = vsel %vm90, %v37, 0
  %v128 = vsel %vm90, %v39, 0
  %v131 = vsel %vm90, %v41, 0
  %v134 = vsel %vm90, %v43, 0
  %v137 = vsel %vm90, %v45, 0
  %v140 = vsel %vm90, %v47, 0
  %v143 = vsel %vm90, %v49, 0
  %v146 = vsel %vm90, %v51, 0
  %v149 = vsel %vm90, %v53, 0
  %v152 = vsel %vm90, %v55, 0
  %v155 = vsel %vm90, %v57, 0
  %v158 = vsel %vm90, %v59, 0
  %v161 = vsel %vm90, %v61, 0
  %v164 = vsel %vm90, %v63, 0
  %vm166 = vcmask 1045504
  %v168 = vsel %vm166, %v82, 0
  %170 = vmatprep.subr.mxu0 0.0
  %171 = vmatpush1.msra.mxu0 %v64
  %172 = vmatprep.subr.mxu0 0.0
  %173 = vmatpush1.msra.mxu0 %v65
  %174 = vmatprep.subr.mxu0 0.0
  %175 = vmatpush1.msra.mxu0 %v66
  %176 = vmatprep.subr.mxu0 0.0
  %177 = vmatpush1.msra.mxu0 %v67
  %178 = vmatprep.subr.mxu0 0.0
  %179 = vmatpush1.msra.mxu0 %v68
  %180 = vmatprep.subr.mxu0 0.0
  %181 = vmatpush1.msra.mxu0 %v69
  %182 = vmatprep.subr.mxu0 0.0
  %183 = vmatpush1.msra.mxu0 %v70
  %184 = vmatprep.subr.mxu0 0.0
  %185 = vmatpush1.msra.mxu0 %v71
  %186 = vmatprep.subr.mxu0 0.0
  %187 = vmatpush1.msra.mxu0 %v72
  %188 = vmatprep.subr.mxu0 0.0
  %189 = vmatpush1.msra.mxu0 %v73
  %190 = vmatprep.subr.mxu0 0.0
  %191 = vmatpush1.msra.mxu0 %v74
  %192 = vmatprep.subr.mxu0 0.0
  %193 = vmatpush1.msra.mxu0 %v75
  %194 = vmatprep.subr.mxu0 0.0
  %195 = vmatpush1.msra.mxu0 %v76
  %196 = vmatprep.subr.mxu0 0.0
  %197 = vmatpush1.msra.mxu0 %v77
  %198 = vmatprep.subr.mxu0 0.0
  %199 = vmatpush1.msra.mxu0 %v78
  %200 = vmatprep.subr.mxu0 0.0
  %201 = vmatpush1.msra.mxu0 %v79
  %202 = vmatprep.subr.mxu0 0.0
  %203 = vmatpush1.msra.mxu0 %v80
  %204 = vmatprep.subr.mxu0 0.0
  %205 = vmatpush1.msra.mxu0 %v81
  %206 = vmatprep.subr.mxu0 0.0
  %207 = vmatpush1.msra.mxu0 %v168
  %208 = vmatprep.subr.mxu0 0.0
  %209 = vmatpush1.msra.mxu0 0.0
  %210 = vmatprep.subr.mxu0 0.0
  %211 = vmatpush1.msra.mxu0 0.0
  %212 = vmatprep.subr.mxu0 0.0
  %213 = vmatpush1.msra.mxu0 0.0
  %214 = vmatprep.subr.mxu0 0.0
  %215 = vmatpush1.msra.mxu0 0.0
  %216 = vmatprep.subr.mxu0 0.0
  %217 = vmatpush1.msra.mxu0 0.0
  %218 = vmatprep.subr.mxu0 0.0
  %219 = vmatpush1.msra.mxu0 0.0
  %220 = vmatprep.subr.mxu0 0.0
  %221 = vmatpush1.msra.mxu0 0.0
  %222 = vmatprep.subr.mxu0 0.0
  %223 = vmatpush1.msra.mxu0 0.0
  %224 = vmatprep.subr.mxu0 0.0
  %225 = vmatpush1.msra.mxu0 0.0
  %226 = vmatprep.subr.mxu0 0.0
  %227 = vmatpush1.msra.mxu0 0.0
  %228 = vmatprep.subr.mxu0 0.0
  %229 = vmatpush1.msra.mxu0 0.0
  %230 = vmatprep.subr.mxu0 0.0
  %231 = vmatpush1.msra.mxu0 0.0
  %232 = vmatprep.subr.mxu0 0.0
  %233 = vmatpush1.msra.mxu0 0.0
  %234 = vmatprep.mubr.f32.mxu0 %v92
  %235 = vmatmul.mubr.f32.gmra.mrb[0].mxu0 %v14
  %v236 = vpop.f32.mrb[0].mxu0
  %v237 = vadd.f32 %v88, %v236
  %v238 = vpop.f32.mrb[0].mxu0
  %239 = vmatprep.mubr.f32.mxu0 %v95
  %240 = vmatmul.mubr.f32.gmra.mrb[0].mxu0 %v16
  %v241 = vpop.f32.mrb[0].mxu0
  %v242 = vadd.f32 %v88, %v241
  %v243 = vpop.f32.mrb[0].mxu0
  %244 = vmatprep.mubr.f32.mxu0 %v98
  %245 = vmatmul.mubr.f32.gmra.mrb[0].mxu0 %v18
  %v246 = vpop.f32.mrb[0].mxu0
  %v247 = vadd.f32 %v88, %v246
  %v248 = vpop.f32.mrb[0].mxu0
  %249 = vmatprep.mubr.f32.mxu0 %v101
  %250 = vmatmul.mubr.f32.gmra.mrb[0].mxu0 %v20
  %v251 = vpop.f32.mrb[0].mxu0
  %v252 = vadd.f32 %v88, %v251
  %v253 = vpop.f32.mrb[0].mxu0
  %254 = vmatprep.mubr.f32.mxu0 %v104
  %255 = vmatmul.mubr.f32.gmra.mrb[0].mxu0 %v22
  %v256 = vpop.f32.mrb[0].mxu0
  %v257 = vadd.f32 %v88, %v256
  %v258 = vpop.f32.mrb[0].mxu0
  %259 = vmatprep.mubr.f32.mxu0 %v107
  %260 = vmatmul.mubr.f32.gmra.mrb[0].mxu0 %v24
  %v261 = vpop.f32.mrb[0].mxu0
  %v262 = vadd.f32 %v88, %v261
  %v263 = vpop.f32.mrb[0].mxu0
  %264 = vmatprep.mubr.f32.mxu0 %v110
  %265 = vmatmul.mubr.f32.gmra.mrb[0].mxu0 %v26
  %v266 = vpop.f32.mrb[0].mxu0
  %v267 = vadd.f32 %v88, %v266
  %v268 = vpop.f32.mrb[0].mxu0
  %269 = vmatprep.mubr.f32.mxu0 %v113
  %270 = vmatmul.mubr.f32.gmra.mrb[0].mxu0 %v28
  %v271 = vpop.f32.mrb[0].mxu0
  %v272 = vadd.f32 %v88, %v271
  %v273 = vpop.f32.mrb[0].mxu0
  %274 = vmatprep.mubr.f32.mxu0 %v116
  %275 = vmatmul.mubr.f32.gmra.mrb[0].mxu0 %v30
  %v276 = vpop.f32.mrb[0].mxu0
  %v277 = vadd.f32 %v88, %v276
  %v278 = vpop.f32.mrb[0].mxu0
  %279 = vmatprep.mubr.f32.mxu0 %v119
  %280 = vmatmul.mubr.f32.gmra.mrb[0].mxu0 %v32
  %v281 = vpop.f32.mrb[0].mxu0
  %v282 = vadd.f32 %v88, %v281
  %v283 = vpop.f32.mrb[0].mxu0
  %284 = vmatprep.mubr.f32.mxu0 %v122
  %285 = vmatmul.mubr.f32.gmra.mrb[0].mxu0 %v34
  %v286 = vpop.f32.mrb[0].mxu0
  %v287 = vadd.f32 %v88, %v286
  %v288 = vpop.f32.mrb[0].mxu0
  %289 = vmatprep.mubr.f32.mxu0 %v125
  %290 = vmatmul.mubr.f32.gmra.mrb[0].mxu0 %v36
  %v291 = vpop.f32.mrb[0].mxu0
  %v292 = vadd.f32 %v88, %v291
  %v293 = vpop.f32.mrb[0].mxu0
  %294 = vmatprep.mubr.f32.mxu0 %v128
  %295 = vmatmul.mubr.f32.gmra.mrb[0].mxu0 %v38
  %v296 = vpop.f32.mrb[0].mxu0
  %v297 = vadd.f32 %v88, %v296
  %v298 = vpop.f32.mrb[0].mxu0
  %299 = vmatprep.mubr.f32.mxu0 %v131
  %300 = vmatmul.mubr.f32.gmra.mrb[0].mxu0 %v40
  %v301 = vpop.f32.mrb[0].mxu0
  %v302 = vadd.f32 %v88, %v301
  %v303 = vpop.f32.mrb[0].mxu0
  %304 = vmatprep.mubr.f32.mxu0 %v134
  %305 = vmatmul.mubr.f32.gmra.mrb[0].mxu0 %v42
  %v306 = vpop.f32.mrb[0].mxu0
  %v307 = vadd.f32 %v88, %v306
  %v308 = vpop.f32.mrb[0].mxu0
  %309 = vmatprep.mubr.f32.mxu0 %v137
  %310 = vmatmul.mubr.f32.gmra.mrb[0].mxu0 %v44
  %v311 = vpop.f32.mrb[0].mxu0
  %v312 = vadd.f32 %v88, %v311
  %v313 = vpop.f32.mrb[0].mxu0
  %314 = vmatprep.mubr.f32.mxu0 %v140
  %315 = vmatmul.mubr.f32.gmra.mrb[0].mxu0 %v46
  %v316 = vpop.f32.mrb[0].mxu0
  %v317 = vadd.f32 %v88, %v316
  %v318 = vpop.f32.mrb[0].mxu0
  %319 = vmatprep.mubr.f32.mxu0 %v143
  %320 = vmatmul.mubr.f32.gmra.mrb[0].mxu0 %v48
  %v321 = vpop.f32.mrb[0].mxu0
  %v322 = vadd.f32 %v88, %v321
  %v323 = vpop.f32.mrb[0].mxu0
  %324 = vmatprep.mubr.f32.mxu0 %v146
  %325 = vmatmul.mubr.f32.gmra.mrb[0].mxu0 %v50
  %v326 = vpop.f32.mrb[0].mxu0
  %v327 = vadd.f32 %v88, %v326
  %v328 = vpop.f32.mrb[0].mxu0
  %329 = vmatprep.mubr.f32.mxu0 %v149
  %330 = vmatmul.mubr.f32.gmra.mrb[0].mxu0 %v52
  %v331 = vpop.f32.mrb[0].mxu0
  %v332 = vadd.f32 %v88, %v331
  %v333 = vpop.f32.mrb[0].mxu0
  %334 = vmatprep.mubr.f32.mxu0 %v152
  %335 = vmatmul.mubr.f32.gmra.mrb[0].mxu0 %v54
  %v336 = vpop.f32.mrb[0].mxu0
  %v337 = vadd.f32 %v88, %v336
  %v338 = vpop.f32.mrb[0].mxu0
  %339 = vmatprep.mubr.f32.mxu0 %v155
  %340 = vmatmul.mubr.f32.gmra.mrb[0].mxu0 %v56
  %v341 = vpop.f32.mrb[0].mxu0
  %v342 = vadd.f32 %v88, %v341
  %v343 = vpop.f32.mrb[0].mxu0
  %344 = vmatprep.mubr.f32.mxu0 %v158
  %345 = vmatmul.mubr.f32.gmra.mrb[0].mxu0 %v58
  %v346 = vpop.f32.mrb[0].mxu0
  %v347 = vadd.f32 %v88, %v346
  %v348 = vpop.f32.mrb[0].mxu0
  %349 = vmatprep.mubr.f32.mxu0 %v161
  %350 = vmatmul.mubr.f32.gmra.mrb[0].mxu0 %v60
  %v351 = vpop.f32.mrb[0].mxu0
  %v352 = vadd.f32 %v88, %v351
  %v353 = vpop.f32.mrb[0].mxu0
  %354 = vmatprep.mubr.f32.mxu0 %v164
  %355 = vmatmul.mubr.f32.gmra.mrb[0].mxu0 %v62
  %v356 = vpop.f32.mrb[0].mxu0
  %v357 = vadd.f32 %v88, %v356
  %v358 = vpop.f32.mrb[0].mxu0
  %359 = vdwg.mxu0
  %v360 = vmul.f32 %v237, 0.029569034
  %v361 = vmul.f32 %v242, 0.029569034
  %v362 = vmul.f32 %v247, 0.029569034
  %v363 = vmul.f32 %v252, 0.029569034
  %v364 = vmul.f32 %v257, 0.029569034
  %v365 = vmul.f32 %v262, 0.029569034
  %v366 = vmul.f32 %v267, 0.029569034
  %v367 = vmul.f32 %v272, 0.029569034
  %v368 = vmul.f32 %v277, 0.029569034
  %v369 = vmul.f32 %v282, 0.029569034
  %v370 = vmul.f32 %v287, 0.029569034
  %v371 = vmul.f32 %v292, 0.029569034
  %v372 = vmul.f32 %v297, 0.029569034
  %v373 = vmul.f32 %v302, 0.029569034
  %v374 = vmul.f32 %v307, 0.029569034
  %v375 = vmul.f32 %v312, 0.029569034
  %v376 = vmul.f32 %v317, 0.029569034
  %v377 = vmul.f32 %v322, 0.029569034
  %v378 = vmul.f32 %v327, 0.029569034
  %v379 = vmul.f32 %v332, 0.029569034
  %v380 = vmul.f32 %v337, 0.029569034
  %v381 = vmul.f32 %v342, 0.029569034
  %v382 = vmul.f32 %v347, 0.029569034
  %v383 = vmul.f32 %v352, 0.029569034
  %v384 = vmul.f32 %v357, 0.029569034
  %v385 = vmax.f32 %v360, 0.0
  %v386 = vmax.f32 %v361, 0.0
  %v387 = vmax.f32 %v362, 0.0
  %v388 = vmax.f32 %v363, 0.0
  %v389 = vmax.f32 %v364, 0.0
  %v390 = vmax.f32 %v365, 0.0
  %v391 = vmax.f32 %v366, 0.0
  %v392 = vmax.f32 %v367, 0.0
  %v393 = vmax.f32 %v368, 0.0
  %v394 = vmax.f32 %v369, 0.0
  %v395 = vmax.f32 %v370, 0.0
  %v396 = vmax.f32 %v371, 0.0
  %v397 = vmax.f32 %v372, 0.0
  %v398 = vmax.f32 %v373, 0.0
  %v399 = vmax.f32 %v374, 0.0
  %v400 = vmax.f32 %v375, 0.0
  %v401 = vmax.f32 %v376, 0.0
  %v402 = vmax.f32 %v377, 0.0
  %v403 = vmax.f32 %v378, 0.0
  %v404 = vmax.f32 %v379, 0.0
  %v405 = vmax.f32 %v380, 0.0
  %v406 = vmax.f32 %v381, 0.0
  %v407 = vmax.f32 %v382, 0.0
  %v408 = vmax.f32 %v383, 0.0
  %v409 = vmax.f32 %v384, 0.0
  %vm410 = vcmask 130048
  %411 = vst.msk [vmem:[%s3] sm:$0xff] %vm410, %v385
  %412 = vst.msk [vmem:[%s3 + $0x8] sm:$0xff] %vm410, %v386
  %413 = vst.msk [vmem:[%s3 + $0x10] sm:$0xff] %vm410, %v387
  %414 = vst.msk [vmem:[%s3 + $0x18] sm:$0xff] %vm410, %v388
  %415 = vst.msk [vmem:[%s3 + $0x20] sm:$0xff] %vm410, %v389
  %416 = vst.msk [vmem:[%s3 + $0x28] sm:$0xff] %vm410, %v390
  %417 = vst.msk [vmem:[%s3 + $0x30] sm:$0xff] %vm410, %v391
  %418 = vst.msk [vmem:[%s3 + $0x38] sm:$0xff] %vm410, %v392
  %419 = vst.msk [vmem:[%s3 + $0x40] sm:$0xff] %vm410, %v393
  %420 = vst.msk [vmem:[%s3 + $0x48] sm:$0xff] %vm410, %v394
  %421 = vst.msk [vmem:[%s3 + $0x50] sm:$0xff] %vm410, %v395
  %422 = vst.msk [vmem:[%s3 + $0x58] sm:$0xff] %vm410, %v396
  %423 = vst.msk [vmem:[%s3 + $0x60] sm:$0xff] %vm410, %v397
  %424 = vst.msk [vmem:[%s3 + $0x68] sm:$0xff] %vm410, %v398
  %425 = vst.msk [vmem:[%s3 + $0x70] sm:$0xff] %vm410, %v399
  %426 = vst.msk [vmem:[%s3 + $0x78] sm:$0xff] %vm410, %v400
  %427 = vst.msk [vmem:[%s3 + $0x80] sm:$0xff] %vm410, %v401
  %428 = vst.msk [vmem:[%s3 + $0x88] sm:$0xff] %vm410, %v402
  %429 = vst.msk [vmem:[%s3 + $0x90] sm:$0xff] %vm410, %v403
  %430 = vst.msk [vmem:[%s3 + $0x98] sm:$0xff] %vm410, %v404
  %431 = vst.msk [vmem:[%s3 + $0xa0] sm:$0xff] %vm410, %v405
  %432 = vst.msk [vmem:[%s3 + $0xa8] sm:$0xff] %vm410, %v406
  %433 = vst.msk [vmem:[%s3 + $0xb0] sm:$0xff] %vm410, %v407
  %434 = vst.msk [vmem:[%s3 + $0xb8] sm:$0xff] %vm410, %v408
  %435 = vst.msk [vmem:[%s3 + $0xc0] sm:$0xff] %vm410, %v409
  // Predicated region
  $region14: #{cifar_dend_conv_forward.7} parent=0 // pred_check
    _
  $region15: #{cifar_dend_conv_forward.7} parent=0 // pred_check_branch
    %437 = sbr.rel (0) target = $region17
  $region16: #{cifar_dend_conv_forward.7} parent=0 // pred_region
    _
  $region17: #{cifar_dend_conv_forward.7} parent=0 // pred_fallthru
    _
  // Predicated region
  $region18: #{cifar_dend_conv_forward.7} parent=0 // pred_check
    _
  $region19: #{cifar_dend_conv_forward.7} parent=0 // pred_check_branch
    %439 = sbr.rel (0) target = $region21
  $region20: #{cifar_dend_conv_forward.7} parent=0 // pred_region
    _
  $region21: #{cifar_dend_conv_forward.7} parent=0 // pred_fallthru
    _

// kernel: cifar_dend_conv_forward.8
$region0: #{cifar_dend_conv_forward.8}
  #allocation0 [shape = 'u32[]', space=smem, size = 0x4, offset = 0x4, fixed_abs, tag = 'smem constant byte address 0x4 - core index']
  #allocation1 [shape = 'u32[144,128]{1,0:T(1,128)}', space=vmem, size = 0x12000, scoped, tag = 'internal scratch']
  %s0 = inlined_call_operand.vmem [shape: f32[50,16], index: 0, kind: input, shape index: {}]
  %s1 = inlined_call_operand.vmem [shape: f32[50,16], index: 1, kind: input, shape index: {}]
  %s2 = inlined_call_operand.vmem [shape: f32[50,16], index: 2, kind: input, shape index: {}]
  %s3 = inlined_call_operand.vmem [shape: f32[50,16], index: 3, kind: input, shape index: {}]
  %s4 = inlined_call_operand.vmem [shape: f32[50,16], index: 4, kind: output, shape index: {}]
  %s5 = sld [smem:[#allocation0]]
  $region26: #{cifar_dend_conv_forward.8} parent=0
    _
  %s7 = ssub.s32 1, %s5
  %s8 = scalar_select 0, %s7, %s5
  // Predicated region
  $region2: #{cifar_dend_conv_forward.8} parent=0 // pred_check
    _
  $region3: #{cifar_dend_conv_forward.8} parent=0 // pred_check_branch
    %10 = sbr.rel (0) target = $region5
  $region4: #{cifar_dend_conv_forward.8} parent=0 // pred_region
    _
  $region5: #{cifar_dend_conv_forward.8} parent=0 // pred_fallthru
    _
  // Predicated region
  $region6: #{cifar_dend_conv_forward.8} parent=0 // pred_check
    _
  $region7: #{cifar_dend_conv_forward.8} parent=0 // pred_check_branch
    %12 = sbr.rel (0) target = $region9
  $region8: #{cifar_dend_conv_forward.8} parent=0 // pred_region
    _
  $region9: #{cifar_dend_conv_forward.8} parent=0 // pred_fallthru
    _
  // Predicated region
  $region10: #{cifar_dend_conv_forward.8} parent=0 // pred_check
    _
  $region11: #{cifar_dend_conv_forward.8} parent=0 // pred_check_branch
    %14 = sbr.rel (0) target = $region13
  $region12: #{cifar_dend_conv_forward.8} parent=0 // pred_region
    _
  $region13: #{cifar_dend_conv_forward.8} parent=0 // pred_fallthru
    _
  // Predicated region
  $region14: #{cifar_dend_conv_forward.8} parent=0 // pred_check
    _
  $region15: #{cifar_dend_conv_forward.8} parent=0 // pred_check_branch
    %16 = sbr.rel (0) target = $region17
  $region16: #{cifar_dend_conv_forward.8} parent=0 // pred_region
    _
  $region17: #{cifar_dend_conv_forward.8} parent=0 // pred_fallthru
    _
  %v17 = vld [vmem:[%s0] sm:$0xff]
  %v18 = vld [vmem:[%s0 + $0x8] sm:$0xff]
  %v19 = vld [vmem:[%s0 + $0x10] sm:$0xff]
  %v20 = vld [vmem:[%s0 + $0x18] sm:$0xff]
  %v21 = vld [vmem:[%s0 + $0x20] sm:$0xff]
  %v22 = vld [vmem:[%s0 + $0x28] sm:$0xff]
  %v23 = vld [vmem:[%s0 + $0x30] sm:$0x3]
  %v24 = vld [vmem:[%s1] sm:$0xff]
  %v25 = vld [vmem:[%s1 + $0x8] sm:$0xff]
  %v26 = vld [vmem:[%s1 + $0x10] sm:$0xff]
  %v27 = vld [vmem:[%s1 + $0x18] sm:$0xff]
  %v28 = vld [vmem:[%s1 + $0x20] sm:$0xff]
  %v29 = vld [vmem:[%s1 + $0x28] sm:$0xff]
  %v30 = vld [vmem:[%s1 + $0x30] sm:$0x3]
  %v31 = vmax.f32 %v17, %v24
  %v32 = vmax.f32 %v18, %v25
  %v33 = vmax.f32 %v19, %v26
  %v34 = vmax.f32 %v20, %v27
  %v35 = vmax.f32 %v21, %v28
  %v36 = vmax.f32 %v22, %v29
  %v37 = vmax.f32 %v23, %v30
  %v38 = vld [vmem:[%s2] sm:$0xff]
  %v39 = vld [vmem:[%s2 + $0x8] sm:$0xff]
  %v40 = vld [vmem:[%s2 + $0x10] sm:$0xff]
  %v41 = vld [vmem:[%s2 + $0x18] sm:$0xff]
  %v42 = vld [vmem:[%s2 + $0x20] sm:$0xff]
  %v43 = vld [vmem:[%s2 + $0x28] sm:$0xff]
  %v44 = vld [vmem:[%s2 + $0x30] sm:$0x3]
  %v45 = vld [vmem:[%s3] sm:$0xff]
  %v46 = vld [vmem:[%s3 + $0x8] sm:$0xff]
  %v47 = vld [vmem:[%s3 + $0x10] sm:$0xff]
  %v48 = vld [vmem:[%s3 + $0x18] sm:$0xff]
  %v49 = vld [vmem:[%s3 + $0x20] sm:$0xff]
  %v50 = vld [vmem:[%s3 + $0x28] sm:$0xff]
  %v51 = vld [vmem:[%s3 + $0x30] sm:$0x3]
  %v52 = vmax.f32 %v38, %v45
  %v53 = vmax.f32 %v39, %v46
  %v54 = vmax.f32 %v40, %v47
  %v55 = vmax.f32 %v41, %v48
  %v56 = vmax.f32 %v42, %v49
  %v57 = vmax.f32 %v43, %v50
  %v58 = vmax.f32 %v44, %v51
  %v59 = vmax.f32 %v31, %v52
  %v60 = vmax.f32 %v32, %v53
  %v61 = vmax.f32 %v33, %v54
  %v62 = vmax.f32 %v34, %v55
  %v63 = vmax.f32 %v35, %v56
  %v64 = vmax.f32 %v36, %v57
  %v65 = vmax.f32 %v37, %v58
  %vm66 = vcmask 130048
  %67 = vst.msk [vmem:[%s4] sm:$0xff] %vm66, %v59
  %68 = vst.msk [vmem:[%s4 + $0x8] sm:$0xff] %vm66, %v60
  %69 = vst.msk [vmem:[%s4 + $0x10] sm:$0xff] %vm66, %v61
  %70 = vst.msk [vmem:[%s4 + $0x18] sm:$0xff] %vm66, %v62
  %71 = vst.msk [vmem:[%s4 + $0x20] sm:$0xff] %vm66, %v63
  %72 = vst.msk [vmem:[%s4 + $0x28] sm:$0xff] %vm66, %v64
  %vm73 = vcmask 123904
  %74 = vst.msk [vmem:[%s4 + $0x30] sm:$0x3] %vm73, %v65
  // Predicated region
  $region18: #{cifar_dend_conv_forward.8} parent=0 // pred_check
    _
  $region19: #{cifar_dend_conv_forward.8} parent=0 // pred_check_branch
    %76 = sbr.rel (0) target = $region21
  $region20: #{cifar_dend_conv_forward.8} parent=0 // pred_region
    _
  $region21: #{cifar_dend_conv_forward.8} parent=0 // pred_fallthru
    _
  // Predicated region
  $region22: #{cifar_dend_conv_forward.8} parent=0 // pred_check
    _
  $region23: #{cifar_dend_conv_forward.8} parent=0 // pred_check_branch
    %78 = sbr.rel (0) target = $region25
  $region24: #{cifar_dend_conv_forward.8} parent=0 // pred_region
    _
  $region25: #{cifar_dend_conv_forward.8} parent=0 // pred_fallthru
    _

// kernel: cifar_dend_conv_forward.9
$region0: #{cifar_dend_conv_forward.9}
  #allocation0 [shape = 'u32[]', space=smem, size = 0x4, offset = 0x4, fixed_abs, tag = 'smem constant byte address 0x4 - core index']
  #allocation1 [shape = 'u32[144,128]{1,0:T(1,128)}', space=vmem, size = 0x12000, scoped, tag = 'internal scratch']
  %s0 = inlined_call_operand.vmem [shape: f32[2,400], index: 0, kind: input, shape index: {}]
  %s1 = inlined_call_operand.vmem [shape: f32[400,120], index: 1, kind: input, shape index: {}]
  %s2 = inlined_call_operand.vmem [shape: f32[1,120], index: 2, kind: input, shape index: {}]
  %s3 = inlined_call_operand.vmem [shape: f32[120,84], index: 3, kind: input, shape index: {}]
  %s4 = inlined_call_operand.vmem [shape: f32[1,84], index: 4, kind: input, shape index: {}]
  %s5 = inlined_call_operand.vmem [shape: f32[84,10], index: 5, kind: input, shape index: {}]
  %s6 = inlined_call_operand.vmem [shape: f32[1,10], index: 6, kind: input, shape index: {}]
  %s7 = inlined_call_operand.hbm [shape: f32[2,10], index: 7, kind: output, shape index: {}]
  %s8 = sld [smem:[#allocation0]]
  $region38: #{cifar_dend_conv_forward.9} parent=0
    _
  %s10 = ssub.s32 1, %s8
  %s11 = scalar_select 0, %s10, %s8
  $region1: #{cifar_dend_conv_forward.9} parent=0
    #allocation2 [shape = 'u8[1024]{0}', space=vmem, size = 0x400, scoped, tag = 'output window, operand 0, single buffered']
    #allocation3 [shape = 's32[1]{0}', space=sflag, size = 0x4, scoped, tag = 'scoped memory for cifar_dend_conv_forward.9']
    %12 = vsyncpa [#allocation3], 0
    // Predicated region
    $region2: #{cifar_dend_conv_forward.9} parent=1 // pred_check
      _
    $region3: #{cifar_dend_conv_forward.9} parent=1 // pred_check_branch
      %14 = sbr.rel (0) target = $region5
    $region4: #{cifar_dend_conv_forward.9} parent=1 // pred_region
      _
    $region5: #{cifar_dend_conv_forward.9} parent=1 // pred_fallthru
      _
    // Predicated region
    $region6: #{cifar_dend_conv_forward.9} parent=1 // pred_check
      _
    $region7: #{cifar_dend_conv_forward.9} parent=1 // pred_check_branch
      %16 = sbr.rel (0) target = $region9
    $region8: #{cifar_dend_conv_forward.9} parent=1 // pred_region
      _
    $region9: #{cifar_dend_conv_forward.9} parent=1 // pred_fallthru
      _
    // Predicated region
    $region10: #{cifar_dend_conv_forward.9} parent=1 // pred_check
      _
    $region11: #{cifar_dend_conv_forward.9} parent=1 // pred_check_branch
      %18 = sbr.rel (0) target = $region13
    $region12: #{cifar_dend_conv_forward.9} parent=1 // pred_region
      _
    $region13: #{cifar_dend_conv_forward.9} parent=1 // pred_fallthru
      _
    // Predicated region
    $region14: #{cifar_dend_conv_forward.9} parent=1 // pred_check
      _
    $region15: #{cifar_dend_conv_forward.9} parent=1 // pred_check_branch
      %20 = sbr.rel (0) target = $region17
    $region16: #{cifar_dend_conv_forward.9} parent=1 // pred_region
      _
    $region17: #{cifar_dend_conv_forward.9} parent=1 // pred_fallthru
      _
    // Predicated region
    $region18: #{cifar_dend_conv_forward.9} parent=1 // pred_check
      _
    $region19: #{cifar_dend_conv_forward.9} parent=1 // pred_check_branch
      %22 = sbr.rel (0) target = $region21
    $region20: #{cifar_dend_conv_forward.9} parent=1 // pred_region
      _
    $region21: #{cifar_dend_conv_forward.9} parent=1 // pred_fallthru
      _
    // Predicated region
    $region22: #{cifar_dend_conv_forward.9} parent=1 // pred_check
      _
    $region23: #{cifar_dend_conv_forward.9} parent=1 // pred_check_branch
      %24 = sbr.rel (0) target = $region25
    $region24: #{cifar_dend_conv_forward.9} parent=1 // pred_region
      _
    $region25: #{cifar_dend_conv_forward.9} parent=1 // pred_fallthru
      _
    // Predicated region
    $region26: #{cifar_dend_conv_forward.9} parent=1 // pred_check
      _
    $region27: #{cifar_dend_conv_forward.9} parent=1 // pred_check_branch
      %26 = sbr.rel (0) target = $region29
    $region28: #{cifar_dend_conv_forward.9} parent=1 // pred_region
      _
    $region29: #{cifar_dend_conv_forward.9} parent=1 // pred_fallthru
      _
    %v27 = vld [vmem:[%s0] sm:$0xff]
    %v28 = vld [vmem:[%s1] sm:$0xff]
    %v29 = vld [vmem:[%s1 + $0x8] sm:$0xff]
    %v30 = vld [vmem:[%s1 + $0x10] sm:$0xff]
    %v31 = vld [vmem:[%s1 + $0x18] sm:$0xff]
    %v32 = vld [vmem:[%s1 + $0x20] sm:$0xff]
    %v33 = vld [vmem:[%s1 + $0x28] sm:$0xff]
    %v34 = vld [vmem:[%s1 + $0x30] sm:$0xff]
    %v35 = vld [vmem:[%s1 + $0x38] sm:$0xff]
    %v36 = vld [vmem:[%s1 + $0x40] sm:$0xff]
    %v37 = vld [vmem:[%s1 + $0x48] sm:$0xff]
    %v38 = vld [vmem:[%s1 + $0x50] sm:$0xff]
    %v39 = vld [vmem:[%s1 + $0x58] sm:$0xff]
    %v40 = vld [vmem:[%s1 + $0x60] sm:$0xff]
    %v41 = vld [vmem:[%s1 + $0x68] sm:$0xff]
    %v42 = vld [vmem:[%s1 + $0x70] sm:$0xff]
    %v43 = vld [vmem:[%s1 + $0x78] sm:$0xff]
    %v44 = vld [vmem:[%s1 + $0x80] sm:$0xff]
    %v45 = vld [vmem:[%s1 + $0x88] sm:$0xff]
    %v46 = vld [vmem:[%s1 + $0x90] sm:$0xff]
    %v47 = vld [vmem:[%s1 + $0x98] sm:$0xff]
    %v48 = vld [vmem:[%s1 + $0xa0] sm:$0xff]
    %v49 = vld [vmem:[%s1 + $0xa8] sm:$0xff]
    %v50 = vld [vmem:[%s1 + $0xb0] sm:$0xff]
    %v51 = vld [vmem:[%s1 + $0xb8] sm:$0xff]
    %v52 = vld [vmem:[%s1 + $0xc0] sm:$0xff]
    %v53 = vld [vmem:[%s1 + $0xc8] sm:$0xff]
    %v54 = vld [vmem:[%s1 + $0xd0] sm:$0xff]
    %v55 = vld [vmem:[%s1 + $0xd8] sm:$0xff]
    %v56 = vld [vmem:[%s1 + $0xe0] sm:$0xff]
    %v57 = vld [vmem:[%s1 + $0xe8] sm:$0xff]
    %v58 = vld [vmem:[%s1 + $0xf0] sm:$0xff]
    %v59 = vld [vmem:[%s1 + $0xf8] sm:$0xff]
    %v60 = vld [vmem:[%s1 + $0x100] sm:$0xff]
    %v61 = vld [vmem:[%s1 + $0x108] sm:$0xff]
    %v62 = vld [vmem:[%s1 + $0x110] sm:$0xff]
    %v63 = vld [vmem:[%s1 + $0x118] sm:$0xff]
    %v64 = vld [vmem:[%s1 + $0x120] sm:$0xff]
    %v65 = vld [vmem:[%s1 + $0x128] sm:$0xff]
    %v66 = vld [vmem:[%s1 + $0x130] sm:$0xff]
    %v67 = vld [vmem:[%s1 + $0x138] sm:$0xff]
    %v68 = vld [vmem:[%s1 + $0x140] sm:$0xff]
    %v69 = vld [vmem:[%s1 + $0x148] sm:$0xff]
    %v70 = vld [vmem:[%s1 + $0x150] sm:$0xff]
    %v71 = vld [vmem:[%s1 + $0x158] sm:$0xff]
    %v72 = vld [vmem:[%s1 + $0x160] sm:$0xff]
    %v73 = vld [vmem:[%s1 + $0x168] sm:$0xff]
    %v74 = vld [vmem:[%s1 + $0x170] sm:$0xff]
    %v75 = vld [vmem:[%s1 + $0x178] sm:$0xff]
    %v76 = vld [vmem:[%s1 + $0x180] sm:$0xff]
    %v77 = vld [vmem:[%s1 + $0x188] sm:$0xff]
    %v78 = vld [vmem:[%s2] sm:$0x1]
    %v80 = vlaneseq
    %v81 = vshrl.u32 %v80, 7
    %v82 = vsub.s32 0, %v81
    %v83 = vrot.slane %v78, %v82
    %v86 = vcombine.high %v27, %v27
    %v88 = vunpack.c.l.s4 1983009808
    %v89 = vunpack.c.0.s8 %v88
    %v90 = vlaneseq
    %v91 = vshrl.u32 %v90, 7
    %v92 = vsub.s32 %v89, %v91
    %v93 = vrot.slane %v27, %v92
    %v95 = vunpack.c.l.s4 1983009808
    %v96 = vunpack.c.0.s8 %v95
    %v97 = vlaneseq
    %v98 = vshrl.u32 %v97, 7
    %v99 = vsub.s32 %v96, %v98
    %v100 = vrot.slane %v86, %v99
    %v101 = vcombine.high %v93, %v93
    %v102 = vcombine.high %v100, %v100
    %vm106 = vcmask 130048
    %v107 = vsel %vm106, %v102, 0
    %109 = vmatprep.subr.mxu0 0.0
    %110 = vmatpush1.msra.mxu0 %v28
    %111 = vmatprep.subr.mxu0 0.0
    %112 = vmatpush1.msra.mxu0 %v29
    %113 = vmatprep.subr.mxu0 0.0
    %114 = vmatpush1.msra.mxu0 %v30
    %115 = vmatprep.subr.mxu0 0.0
    %116 = vmatpush1.msra.mxu0 %v31
    %117 = vmatprep.subr.mxu0 0.0
    %118 = vmatpush1.msra.mxu0 %v32
    %119 = vmatprep.subr.mxu0 0.0
    %120 = vmatpush1.msra.mxu0 %v33
    %121 = vmatprep.subr.mxu0 0.0
    %122 = vmatpush1.msra.mxu0 %v34
    %123 = vmatprep.subr.mxu0 0.0
    %124 = vmatpush1.msra.mxu0 %v35
    %125 = vmatprep.subr.mxu0 0.0
    %126 = vmatpush1.msra.mxu0 %v36
    %127 = vmatprep.subr.mxu0 0.0
    %128 = vmatpush1.msra.mxu0 %v37
    %129 = vmatprep.subr.mxu0 0.0
    %130 = vmatpush1.msra.mxu0 %v38
    %131 = vmatprep.subr.mxu0 0.0
    %132 = vmatpush1.msra.mxu0 %v39
    %133 = vmatprep.subr.mxu0 0.0
    %134 = vmatpush1.msra.mxu0 %v40
    %135 = vmatprep.subr.mxu0 0.0
    %136 = vmatpush1.msra.mxu0 %v41
    %137 = vmatprep.subr.mxu0 0.0
    %138 = vmatpush1.msra.mxu0 %v42
    %139 = vmatprep.subr.mxu0 0.0
    %140 = vmatpush1.msra.mxu0 %v43
    %141 = vmatprep.subr.mxu0 0.0
    %142 = vmatpush1.msra.mxu0 %v44
    %143 = vmatprep.subr.mxu0 0.0
    %144 = vmatpush1.msra.mxu0 %v45
    %145 = vmatprep.subr.mxu0 0.0
    %146 = vmatpush1.msra.mxu0 %v46
    %147 = vmatprep.subr.mxu0 0.0
    %148 = vmatpush1.msra.mxu0 %v47
    %149 = vmatprep.subr.mxu0 0.0
    %150 = vmatpush1.msra.mxu0 %v48
    %151 = vmatprep.subr.mxu0 0.0
    %152 = vmatpush1.msra.mxu0 %v49
    %153 = vmatprep.subr.mxu0 0.0
    %154 = vmatpush1.msra.mxu0 %v50
    %155 = vmatprep.subr.mxu0 0.0
    %156 = vmatpush1.msra.mxu0 %v51
    %157 = vmatprep.subr.mxu0 0.0
    %158 = vmatpush1.msra.mxu0 %v52
    %159 = vmatprep.subr.mxu0 0.0
    %160 = vmatpush1.msra.mxu0 %v53
    %161 = vmatprep.subr.mxu0 0.0
    %162 = vmatpush1.msra.mxu0 %v54
    %163 = vmatprep.subr.mxu0 0.0
    %164 = vmatpush1.msra.mxu0 %v55
    %165 = vmatprep.subr.mxu0 0.0
    %166 = vmatpush1.msra.mxu0 %v56
    %167 = vmatprep.subr.mxu0 0.0
    %168 = vmatpush1.msra.mxu0 %v57
    %169 = vmatprep.subr.mxu0 0.0
    %170 = vmatpush1.msra.mxu0 %v58
    %171 = vmatprep.subr.mxu0 0.0
    %172 = vmatpush1.msra.mxu0 %v59
    %173 = vmatprep.mubr.f32.mxu0 %v101
    %174 = vmatmul.mubr.f32.gmra.mrb[0].mxu0 %v93
    %v175 = vpop.f32.mrb[0].mxu0
    %v176 = vadd.f32 %v83, %v175
    %v177 = vpop.f32.mrb[0].mxu0
    %178 = vdwg.mxu0
    %179 = vmatprep.subr.mxu0 0.0
    %180 = vmatpush1.msra.mxu0 %v60
    %181 = vmatprep.subr.mxu0 0.0
    %182 = vmatpush1.msra.mxu0 %v61
    %183 = vmatprep.subr.mxu0 0.0
    %184 = vmatpush1.msra.mxu0 %v62
    %185 = vmatprep.subr.mxu0 0.0
    %186 = vmatpush1.msra.mxu0 %v63
    %187 = vmatprep.subr.mxu0 0.0
    %188 = vmatpush1.msra.mxu0 %v64
    %189 = vmatprep.subr.mxu0 0.0
    %190 = vmatpush1.msra.mxu0 %v65
    %191 = vmatprep.subr.mxu0 0.0
    %192 = vmatpush1.msra.mxu0 %v66
    %193 = vmatprep.subr.mxu0 0.0
    %194 = vmatpush1.msra.mxu0 %v67
    %195 = vmatprep.subr.mxu0 0.0
    %196 = vmatpush1.msra.mxu0 %v68
    %197 = vmatprep.subr.mxu0 0.0
    %198 = vmatpush1.msra.mxu0 %v69
    %199 = vmatprep.subr.mxu0 0.0
    %200 = vmatpush1.msra.mxu0 %v70
    %201 = vmatprep.subr.mxu0 0.0
    %202 = vmatpush1.msra.mxu0 %v71
    %203 = vmatprep.subr.mxu0 0.0
    %204 = vmatpush1.msra.mxu0 %v72
    %205 = vmatprep.subr.mxu0 0.0
    %206 = vmatpush1.msra.mxu0 %v73
    %207 = vmatprep.subr.mxu0 0.0
    %208 = vmatpush1.msra.mxu0 %v74
    %209 = vmatprep.subr.mxu0 0.0
    %210 = vmatpush1.msra.mxu0 %v75
    %211 = vmatprep.subr.mxu0 0.0
    %212 = vmatpush1.msra.mxu0 %v76
    %213 = vmatprep.subr.mxu0 0.0
    %214 = vmatpush1.msra.mxu0 %v77
    %215 = vmatprep.subr.mxu0 0.0
    %216 = vmatpush1.msra.mxu0 0.0
    %217 = vmatprep.subr.mxu0 0.0
    %218 = vmatpush1.msra.mxu0 0.0
    %219 = vmatprep.subr.mxu0 0.0
    %220 = vmatpush1.msra.mxu0 0.0
    %221 = vmatprep.subr.mxu0 0.0
    %222 = vmatpush1.msra.mxu0 0.0
    %223 = vmatprep.subr.mxu0 0.0
    %224 = vmatpush1.msra.mxu0 0.0
    %225 = vmatprep.subr.mxu0 0.0
    %226 = vmatpush1.msra.mxu0 0.0
    %227 = vmatprep.subr.mxu0 0.0
    %228 = vmatpush1.msra.mxu0 0.0
    %229 = vmatprep.subr.mxu0 0.0
    %230 = vmatpush1.msra.mxu0 0.0
    %231 = vmatprep.subr.mxu0 0.0
    %232 = vmatpush1.msra.mxu0 0.0
    %233 = vmatprep.subr.mxu0 0.0
    %234 = vmatpush1.msra.mxu0 0.0
    %235 = vmatprep.subr.mxu0 0.0
    %236 = vmatpush1.msra.mxu0 0.0
    %237 = vmatprep.subr.mxu0 0.0
    %238 = vmatpush1.msra.mxu0 0.0
    %239 = vmatprep.subr.mxu0 0.0
    %240 = vmatpush1.msra.mxu0 0.0
    %241 = vmatprep.subr.mxu0 0.0
    %242 = vmatpush1.msra.mxu0 0.0
    %243 = vmatprep.mubr.f32.mxu0 %v107
    %244 = vmatmul.mubr.f32.gmra.mrb[0].mxu0 %v100
    %v245 = vpop.f32.mrb[0].mxu0
    %v246 = vadd.f32 %v176, %v245
    %v247 = vpop.f32.mrb[0].mxu0
    %248 = vdwg.mxu0
    %v249 = vmul.f32 %v246, 0.029569034
    %v250 = vmax.f32 %v249, 0.0
    %v251 = vld [vmem:[%s3] sm:$0xff]
    %v252 = vld [vmem:[%s3 + $0x8] sm:$0xff]
    %v253 = vld [vmem:[%s3 + $0x10] sm:$0xff]
    %v254 = vld [vmem:[%s3 + $0x18] sm:$0xff]
    %v255 = vld [vmem:[%s3 + $0x20] sm:$0xff]
    %v256 = vld [vmem:[%s3 + $0x28] sm:$0xff]
    %v257 = vld [vmem:[%s3 + $0x30] sm:$0xff]
    %v258 = vld [vmem:[%s3 + $0x38] sm:$0xff]
    %v259 = vld [vmem:[%s3 + $0x40] sm:$0xff]
    %v260 = vld [vmem:[%s3 + $0x48] sm:$0xff]
    %v261 = vld [vmem:[%s3 + $0x50] sm:$0xff]
    %v262 = vld [vmem:[%s3 + $0x58] sm:$0xff]
    %v263 = vld [vmem:[%s3 + $0x60] sm:$0xff]
    %v264 = vld [vmem:[%s3 + $0x68] sm:$0xff]
    %v265 = vld [vmem:[%s3 + $0x70] sm:$0xff]
    %v266 = vld [vmem:[%s4] sm:$0x1]
    %v268 = vlaneseq
    %v269 = vshrl.u32 %v268, 7
    %v270 = vsub.s32 0, %v269
    %v271 = vrot.slane %v266, %v270
    %vm273 = vcmask 982016
    %v275 = vsel %vm273, %v250, 0
    %277 = vmatprep.subr.mxu0 0.0
    %278 = vmatpush1.msra.mxu0 %v251
    %279 = vmatprep.subr.mxu0 0.0
    %280 = vmatpush1.msra.mxu0 %v252
    %281 = vmatprep.subr.mxu0 0.0
    %282 = vmatpush1.msra.mxu0 %v253
    %283 = vmatprep.subr.mxu0 0.0
    %284 = vmatpush1.msra.mxu0 %v254
    %285 = vmatprep.subr.mxu0 0.0
    %286 = vmatpush1.msra.mxu0 %v255
    %287 = vmatprep.subr.mxu0 0.0
    %288 = vmatpush1.msra.mxu0 %v256
    %289 = vmatprep.subr.mxu0 0.0
    %290 = vmatpush1.msra.mxu0 %v257
    %291 = vmatprep.subr.mxu0 0.0
    %292 = vmatpush1.msra.mxu0 %v258
    %293 = vmatprep.subr.mxu0 0.0
    %294 = vmatpush1.msra.mxu0 %v259
    %295 = vmatprep.subr.mxu0 0.0
    %296 = vmatpush1.msra.mxu0 %v260
    %297 = vmatprep.subr.mxu0 0.0
    %298 = vmatpush1.msra.mxu0 %v261
    %299 = vmatprep.subr.mxu0 0.0
    %300 = vmatpush1.msra.mxu0 %v262
    %301 = vmatprep.subr.mxu0 0.0
    %302 = vmatpush1.msra.mxu0 %v263
    %303 = vmatprep.subr.mxu0 0.0
    %304 = vmatpush1.msra.mxu0 %v264
    %305 = vmatprep.subr.mxu0 0.0
    %306 = vmatpush1.msra.mxu0 %v265
    %307 = vmatprep.subr.mxu0 0.0
    %308 = vmatpush1.msra.mxu0 0.0
    %309 = vmatprep.subr.mxu0 0.0
    %310 = vmatpush1.msra.mxu0 0.0
    %311 = vmatprep.subr.mxu0 0.0
    %312 = vmatpush1.msra.mxu0 0.0
    %313 = vmatprep.subr.mxu0 0.0
    %314 = vmatpush1.msra.mxu0 0.0
    %315 = vmatprep.subr.mxu0 0.0
    %316 = vmatpush1.msra.mxu0 0.0
    %317 = vmatprep.subr.mxu0 0.0
    %318 = vmatpush1.msra.mxu0 0.0
    %319 = vmatprep.subr.mxu0 0.0
    %320 = vmatpush1.msra.mxu0 0.0
    %321 = vmatprep.subr.mxu0 0.0
    %322 = vmatpush1.msra.mxu0 0.0
    %323 = vmatprep.subr.mxu0 0.0
    %324 = vmatpush1.msra.mxu0 0.0
    %325 = vmatprep.subr.mxu0 0.0
    %326 = vmatpush1.msra.mxu0 0.0
    %327 = vmatprep.subr.mxu0 0.0
    %328 = vmatpush1.msra.mxu0 0.0
    %329 = vmatprep.subr.mxu0 0.0
    %330 = vmatpush1.msra.mxu0 0.0
    %331 = vmatprep.subr.mxu0 0.0
    %332 = vmatpush1.msra.mxu0 0.0
    %333 = vmatprep.subr.mxu0 0.0
    %334 = vmatpush1.msra.mxu0 0.0
    %335 = vmatprep.subr.mxu0 0.0
    %336 = vmatpush1.msra.mxu0 0.0
    %337 = vmatprep.subr.mxu0 0.0
    %338 = vmatpush1.msra.mxu0 0.0
    %339 = vmatprep.subr.mxu0 0.0
    %340 = vmatpush1.msra.mxu0 0.0
    %341 = vmatprep.mubr.f32.mxu0 0.0
    %342 = vmatmul.mubr.f32.gmra.mrb[0].mxu0 %v275
    %v343 = vpop.f32.mrb[0].mxu0
    %v344 = vadd.f32 %v271, %v343
    %v345 = vpop.f32.mrb[0].mxu0
    %346 = vdwg.mxu0
    %v347 = vmul.f32 %v344, 0.029569034
    %v348 = vmax.f32 %v347, 0.0
    %v349 = vld [vmem:[%s5] sm:$0xff]
    %v350 = vld [vmem:[%s5 + $0x8] sm:$0xff]
    %v351 = vld [vmem:[%s5 + $0x10] sm:$0xff]
    %v352 = vld [vmem:[%s5 + $0x18] sm:$0xff]
    %v353 = vld [vmem:[%s5 + $0x20] sm:$0xff]
    %v354 = vld [vmem:[%s5 + $0x28] sm:$0xff]
    %v355 = vld [vmem:[%s5 + $0x30] sm:$0xff]
    %v356 = vld [vmem:[%s5 + $0x38] sm:$0xff]
    %v357 = vld [vmem:[%s5 + $0x40] sm:$0xff]
    %v358 = vld [vmem:[%s5 + $0x48] sm:$0xff]
    %v359 = vld [vmem:[%s5 + $0x50] sm:$0xf]
    %v360 = vld [vmem:[%s6] sm:$0x1]
    %v362 = vlaneseq
    %v363 = vshrl.u32 %v362, 7
    %v364 = vsub.s32 0, %v363
    %v365 = vrot.slane %v360, %v364
    %vm367 = vcmask 687104
    %v369 = vsel %vm367, %v348, 0
    %vm371 = vcmask 1043456
    %v373 = vsel %vm371, %v359, 0
    %375 = vmatprep.subr.mxu0 0.0
    %376 = vmatpush1.msra.mxu0 %v349
    %377 = vmatprep.subr.mxu0 0.0
    %378 = vmatpush1.msra.mxu0 %v350
    %379 = vmatprep.subr.mxu0 0.0
    %380 = vmatpush1.msra.mxu0 %v351
    %381 = vmatprep.subr.mxu0 0.0
    %382 = vmatpush1.msra.mxu0 %v352
    %383 = vmatprep.subr.mxu0 0.0
    %384 = vmatpush1.msra.mxu0 %v353
    %385 = vmatprep.subr.mxu0 0.0
    %386 = vmatpush1.msra.mxu0 %v354
    %387 = vmatprep.subr.mxu0 0.0
    %388 = vmatpush1.msra.mxu0 %v355
    %389 = vmatprep.subr.mxu0 0.0
    %390 = vmatpush1.msra.mxu0 %v356
    %391 = vmatprep.subr.mxu0 0.0
    %392 = vmatpush1.msra.mxu0 %v357
    %393 = vmatprep.subr.mxu0 0.0
    %394 = vmatpush1.msra.mxu0 %v358
    %395 = vmatprep.subr.mxu0 0.0
    %396 = vmatpush1.msra.mxu0 %v373
    %397 = vmatprep.subr.mxu0 0.0
    %398 = vmatpush1.msra.mxu0 0.0
    %399 = vmatprep.subr.mxu0 0.0
    %400 = vmatpush1.msra.mxu0 0.0
    %401 = vmatprep.subr.mxu0 0.0
    %402 = vmatpush1.msra.mxu0 0.0
    %403 = vmatprep.subr.mxu0 0.0
    %404 = vmatpush1.msra.mxu0 0.0
    %405 = vmatprep.subr.mxu0 0.0
    %406 = vmatpush1.msra.mxu0 0.0
    %407 = vmatprep.subr.mxu0 0.0
    %408 = vmatpush1.msra.mxu0 0.0
    %409 = vmatprep.subr.mxu0 0.0
    %410 = vmatpush1.msra.mxu0 0.0
    %411 = vmatprep.subr.mxu0 0.0
    %412 = vmatpush1.msra.mxu0 0.0
    %413 = vmatprep.subr.mxu0 0.0
    %414 = vmatpush1.msra.mxu0 0.0
    %415 = vmatprep.subr.mxu0 0.0
    %416 = vmatpush1.msra.mxu0 0.0
    %417 = vmatprep.subr.mxu0 0.0
    %418 = vmatpush1.msra.mxu0 0.0
    %419 = vmatprep.subr.mxu0 0.0
    %420 = vmatpush1.msra.mxu0 0.0
    %421 = vmatprep.subr.mxu0 0.0
    %422 = vmatpush1.msra.mxu0 0.0
    %423 = vmatprep.subr.mxu0 0.0
    %424 = vmatpush1.msra.mxu0 0.0
    %425 = vmatprep.subr.mxu0 0.0
    %426 = vmatpush1.msra.mxu0 0.0
    %427 = vmatprep.subr.mxu0 0.0
    %428 = vmatpush1.msra.mxu0 0.0
    %429 = vmatprep.subr.mxu0 0.0
    %430 = vmatpush1.msra.mxu0 0.0
    %431 = vmatprep.subr.mxu0 0.0
    %432 = vmatpush1.msra.mxu0 0.0
    %433 = vmatprep.subr.mxu0 0.0
    %434 = vmatpush1.msra.mxu0 0.0
    %435 = vmatprep.subr.mxu0 0.0
    %436 = vmatpush1.msra.mxu0 0.0
    %437 = vmatprep.subr.mxu0 0.0
    %438 = vmatpush1.msra.mxu0 0.0
    %439 = vmatprep.mubr.f32.mxu0 0.0
    %440 = vmatmul.mubr.f32.gmra.mrb[0].mxu0 %v369
    %v441 = vpop.f32.mrb[0].mxu0
    %v442 = vadd.f32 %v365, %v441
    %v443 = vpop.f32.mrb[0].mxu0
    %444 = vdwg.mxu0
    %v445 = vmul.f32 %v442, 0.029569034
    %vm446 = vcmask 74752
    %447 = vst.msk [vmem:[#allocation2] sm:$0x3] %vm446, %v445
    // Predicated region
    $region30: #{cifar_dend_conv_forward.9} parent=1 // pred_check
      _
    $region31: #{cifar_dend_conv_forward.9} parent=1 // pred_check_branch
      %449 = sbr.rel (0) target = $region33
    $region32: #{cifar_dend_conv_forward.9} parent=1 // pred_region
      %s451 = ssub.s32 32, 32
      %452 = vsyncadd [#allocation3], %s451
      %s454 = sshll.u32 [#allocation2], 4
      %s455 = int_to_ptr.vmem [resolvable:$true] %s454
      %457 = dma.vmem_to_hbm [thread:$0]  %s455, 32, %s7, [#allocation3]
    $region33: #{cifar_dend_conv_forward.9} parent=1 // pred_fallthru
      _
    // Predicated region
    $region34: #{cifar_dend_conv_forward.9} parent=1 // pred_check
      _
    $region35: #{cifar_dend_conv_forward.9} parent=1 // pred_check_branch
      %459 = sbr.rel (0) target = $region37
    $region36: #{cifar_dend_conv_forward.9} parent=1 // pred_region
      %460 = dma.done [#allocation3], 32
    $region37: #{cifar_dend_conv_forward.9} parent=1 // pred_fallthru
      _
    %461 = vsyncpa [#allocation3], 1

</llo_original>
